<compile_context>
chip_gen: v7x
topology: tpu7x:2x2x1
jax: 0.10.0
libtpu: 0.0.40
codegen_flags: <defaults>
</compile_context>

<pallas_src>
import jax
import jax.numpy as jnp
from jax.experimental import pallas as pl
from jax.experimental.pallas import tpu as pltpu

INPUT_DIM = 5
HIDDEN1 = 256
HIDDEN2 = 1024
OUTPUT_DIM = 784

IN_PAD = 8           # 5  -> 8    (clean sublane tile for w1)
OUT_PAD = 896        # 784 -> 896 = 7 * 128 (lane-dense output stores)
MIN_TILE_B = 128
MAX_TILE_B = 512


def vad_kernel(x_ref, w1_ref, b1_ref, w2_ref, b2_ref, w3_ref, b3_ref, out_ref):
    # fc1 + ReLU (bf16 inputs, fp32 MXU accumulate)
    h1 = jnp.dot(x_ref[...], w1_ref[...], preferred_element_type=jnp.float32)
    h1 = jnp.maximum(h1 + b1_ref[...], 0.0)
    # fc2 + ReLU
    h2 = jnp.dot(h1.astype(jnp.bfloat16), w2_ref[...],
                 preferred_element_type=jnp.float32)
    h2 = jnp.maximum(h2 + b2_ref[...], 0.0)
    # mean head + Sigmoid
    z = jnp.dot(h2.astype(jnp.bfloat16), w3_ref[...],
                preferred_element_type=jnp.float32)
    z = z + b3_ref[...]
    # sigmoid(z) = 1 / (1 + exp(-z)); exp and the approx reciprocal both run in
    # the EUP slot, keeping the divide off the VALU.  Store bf16 (halves HBM
    # write traffic).
    sig = pl.reciprocal(1.0 + jnp.exp(-z), approx=True)
    out_ref[...] = sig.astype(out_ref.dtype)


def init_params(key, input_dim=INPUT_DIM, output_dim=OUTPUT_DIM):
    """Deterministic init matching the module's shapes.

    Weights: xavier_normal (as in the PyTorch __init__), stored pre-transposed
    as (in_features, out_features). Biases: U(-1/sqrt(fan_in), 1/sqrt(fan_in))
    like PyTorch nn.Linear's default bias init. Returned in fp32, unpadded.
    """
    dims = [(input_dim, HIDDEN1), (HIDDEN1, HIDDEN2), (HIDDEN2, output_dim)]
    params = []
    for (fan_in, fan_out) in dims:
        key, kw, kb = jax.random.split(key, 3)
        std = (2.0 / (fan_in + fan_out)) ** 0.5
        w = std * jax.random.normal(kw, (fan_in, fan_out), dtype=jnp.float32)
        bound = 1.0 / (fan_in ** 0.5)
        b = jax.random.uniform(
            kb, (1, fan_out), dtype=jnp.float32, minval=-bound, maxval=bound
        )
        params += [w, b]
    return tuple(params)


def prepare_params(params):
    """Pad (K: 5->8, N: 784->896) and cast weights to bf16; biases stay fp32."""
    w1, b1, w2, b2, w3, b3 = params
    w1p = jnp.zeros((IN_PAD, HIDDEN1), jnp.float32).at[:w1.shape[0]].set(w1)
    w3p = jnp.zeros((HIDDEN2, OUT_PAD), jnp.float32).at[:, :w3.shape[1]].set(w3)
    b3p = jnp.zeros((1, OUT_PAD), jnp.float32).at[:, :b3.shape[1]].set(b3)
    return (
        w1p.astype(jnp.bfloat16), b1,
        w2.astype(jnp.bfloat16), b2,
        w3p.astype(jnp.bfloat16), b3p,
    )


def _choose_tiling(batch):
    """Pick the batch tile.

    Prefer big tiles (multiples of 256 -> full 2x256 MXU M on v6e/v7x) while
    keeping >=2 grid steps when the batch allows it (v7x megacore sharding),
    and avoid over-padding tiny batches.
    """
    padded128 = pl.cdiv(batch, MIN_TILE_B) * MIN_TILE_B
    if padded128 <= MAX_TILE_B:
        tile = padded128                 # tiny problem: single grid step
    elif padded128 % 512 == 0:
        tile = 512                       # big batch: 512-row tiles, grid >= 2
    else:
        tile = 256                       # keeps grid >= 2 and 256-aligned M
    padded = pl.cdiv(batch, tile) * tile
    return tile, padded


@jax.jit
def mnist_vad_forward(x, prepared):
    w1, b1, w2, b2, w3, b3 = prepared
    batch, in_dim = x.shape
    tile_b, padded_batch = _choose_tiling(batch)

    # Zero-pad batch and K dim, cast activations to bf16.
    x_p = jnp.zeros((padded_batch, IN_PAD), dtype=jnp.bfloat16)
    x_p = x_p.at[:batch, :in_dim].set(x.astype(jnp.bfloat16))

    grid = (padded_batch // tile_b,)
    pinned = lambda i: (0, 0)  # weights/biases: same block every step -> VMEM-resident

    out = pl.pallas_call(
        vad_kernel,
        out_shape=jax.ShapeDtypeStruct((padded_batch, OUT_PAD), jnp.bfloat16),
        grid=grid,
        in_specs=[
            pl.BlockSpec((tile_b, IN_PAD), lambda i: (i, 0)),   # x tile
            pl.BlockSpec(w1.shape, pinned),
            pl.BlockSpec(b1.shape, pinned),
            pl.BlockSpec(w2.shape, pinned),
            pl.BlockSpec(b2.shape, pinned),
            pl.BlockSpec(w3.shape, pinned),
            pl.BlockSpec(b3.shape, pinned),
        ],
        out_specs=pl.BlockSpec((tile_b, OUT_PAD), lambda i: (i, 0)),
        compiler_params=pltpu.CompilerParams(
            dimension_semantics=("parallel",),
            vmem_limit_bytes=48 * 1024 * 1024,
        ),
    )(x_p, w1, b1, w2, b2, w3, b3)

    # Drop padded batch rows and padded output columns; output is bf16
    # (consistent with the bf16 weights/activations used throughout).
    return out[:batch, :OUTPUT_DIM]


def reference_forward(x, prepared):
    """Pure-JAX reference mirroring the kernel's bf16 quantization."""
    w1, b1, w2, b2, w3, b3 = [p.astype(jnp.float32) for p in prepared]
    hi = jax.lax.Precision.HIGHEST
    xq = x.astype(jnp.bfloat16).astype(jnp.float32)
    xq = jnp.pad(xq, ((0, 0), (0, IN_PAD - x.shape[1])))
    h1 = jnp.maximum(jnp.dot(xq, w1, precision=hi) + b1, 0.0)
    h1 = h1.astype(jnp.bfloat16).astype(jnp.float32)
    h2 = jnp.maximum(jnp.dot(h1, w2, precision=hi) + b2, 0.0)
    h2 = h2.astype(jnp.bfloat16).astype(jnp.float32)
    z = jnp.dot(h2, w3, precision=hi) + b3
    return jax.nn.sigmoid(z).astype(jnp.bfloat16)[:, :OUTPUT_DIM]


if __name__ == "__main__":
    key = jax.random.PRNGKey(0)
    key, kx = jax.random.split(key)

    batch = 8
    x = jax.random.normal(kx, (batch, INPUT_DIM), dtype=jnp.float32)
    params = init_params(key)
    prepared = prepare_params(params)

    out = mnist_vad_forward(x, prepared)
    out = jax.block_until_ready(out)

    ref = reference_forward(x, prepared)
    assert out.shape == (batch, OUTPUT_DIM)
    assert out.dtype == jnp.bfloat16
    # bf16 weights/activations/output + approx reciprocal -> compare against the
    # bf16-mirrored reference within ~2 bf16 ulps of 1.0.
    diff = float(jnp.max(jnp.abs(out.astype(jnp.float32) - ref.astype(jnp.float32))))
    assert diff <= 2e-2, diff

    print("KERNEL_OK")
</pallas_src>

<mosaic_0001>
module attributes {stable_mosaic.version = 11 : i64} {
  func.func @vad_kernel(%arg0: i32, %arg1: memref<128x8xbf16, #tpu.memory_space<vmem>>, %arg2: memref<8x256xbf16, #tpu.memory_space<vmem>>, %arg3: memref<1x256xf32, #tpu.memory_space<vmem>>, %arg4: memref<256x1024xbf16, #tpu.memory_space<vmem>>, %arg5: memref<1x1024xf32, #tpu.memory_space<vmem>>, %arg6: memref<1024x896xbf16, #tpu.memory_space<vmem>>, %arg7: memref<1x896xf32, #tpu.memory_space<vmem>>, %arg8: memref<128x896xbf16, #tpu.memory_space<vmem>>) attributes {dimension_semantics = [#tpu.dimension_semantics<parallel>], iteration_bounds = array<i64: 1>, scalar_prefetch = 0 : i64, scratch_operands = 0 : i64, tpu.core_type = #tpu.core_type<tc>, window_params = [{transform_indices = @transform_0, window_bounds = array<i64: 128, 8>}, {pipeline_mode = #tpu.pipeline_mode<synchronous>, transform_indices = @transform_1, window_bounds = array<i64: 8, 256>}, {pipeline_mode = #tpu.pipeline_mode<synchronous>, transform_indices = @transform_2, window_bounds = array<i64: 1, 256>}, {pipeline_mode = #tpu.pipeline_mode<synchronous>, transform_indices = @transform_3, window_bounds = array<i64: 256, 1024>}, {pipeline_mode = #tpu.pipeline_mode<synchronous>, transform_indices = @transform_4, window_bounds = array<i64: 1, 1024>}, {pipeline_mode = #tpu.pipeline_mode<synchronous>, transform_indices = @transform_5, window_bounds = array<i64: 1024, 896>}, {pipeline_mode = #tpu.pipeline_mode<synchronous>, transform_indices = @transform_6, window_bounds = array<i64: 1, 896>}, {transform_indices = @transform_7, window_bounds = array<i64: 128, 896>}]} {
    %c0 = arith.constant 0 : index
    %c0_0 = arith.constant 0 : index
    %0 = vector.load %arg1[%c0, %c0_0] : memref<128x8xbf16, #tpu.memory_space<vmem>>, vector<128x8xbf16>
    %c0_1 = arith.constant 0 : index
    %c0_2 = arith.constant 0 : index
    %1 = vector.load %arg2[%c0_1, %c0_2] : memref<8x256xbf16, #tpu.memory_space<vmem>>, vector<8x256xbf16>
    %cst = arith.constant dense<0.000000e+00> : vector<128x256xf32>
    %2 = tpu.matmul %0, %1, %cst {dimension_numbers = #tpu.dot_dimension_numbers<[1], [0], [0], [1], [0, 0, 1, 1], [], []>} : vector<128x8xbf16>, vector<8x256xbf16>, vector<128x256xf32> -> vector<128x256xf32>
    %c0_3 = arith.constant 0 : index
    %c0_4 = arith.constant 0 : index
    %3 = vector.load %arg3[%c0_3, %c0_4] : memref<1x256xf32, #tpu.memory_space<vmem>>, vector<1x256xf32>
    %4 = vector.broadcast %3 : vector<1x256xf32> to vector<128x256xf32>
    %5 = arith.addf %2, %4 : vector<128x256xf32>
    %cst_5 = arith.constant 0.000000e+00 : f32
    %6 = vector.broadcast %cst_5 : f32 to vector<128x256xf32>
    %7 = arith.maximumf %5, %6 : vector<128x256xf32>
    %8 = arith.truncf %7 : vector<128x256xf32> to vector<128x256xbf16>
    %c0_6 = arith.constant 0 : index
    %c0_7 = arith.constant 0 : index
    %9 = vector.load %arg4[%c0_6, %c0_7] : memref<256x1024xbf16, #tpu.memory_space<vmem>>, vector<256x1024xbf16>
    %cst_8 = arith.constant dense<0.000000e+00> : vector<128x1024xf32>
    %10 = tpu.matmul %8, %9, %cst_8 {dimension_numbers = #tpu.dot_dimension_numbers<[1], [0], [0], [1], [0, 0, 1, 1], [], []>} : vector<128x256xbf16>, vector<256x1024xbf16>, vector<128x1024xf32> -> vector<128x1024xf32>
    %c0_9 = arith.constant 0 : index
    %c0_10 = arith.constant 0 : index
    %11 = vector.load %arg5[%c0_9, %c0_10] : memref<1x1024xf32, #tpu.memory_space<vmem>>, vector<1x1024xf32>
    %12 = vector.broadcast %11 : vector<1x1024xf32> to vector<128x1024xf32>
    %13 = arith.addf %10, %12 : vector<128x1024xf32>
    %cst_11 = arith.constant 0.000000e+00 : f32
    %14 = vector.broadcast %cst_11 : f32 to vector<128x1024xf32>
    %15 = arith.maximumf %13, %14 : vector<128x1024xf32>
    %16 = arith.truncf %15 : vector<128x1024xf32> to vector<128x1024xbf16>
    %c0_12 = arith.constant 0 : index
    %c0_13 = arith.constant 0 : index
    %17 = vector.load %arg6[%c0_12, %c0_13] : memref<1024x896xbf16, #tpu.memory_space<vmem>>, vector<1024x896xbf16>
    %cst_14 = arith.constant dense<0.000000e+00> : vector<128x896xf32>
    %18 = tpu.matmul %16, %17, %cst_14 {dimension_numbers = #tpu.dot_dimension_numbers<[1], [0], [0], [1], [0, 0, 1, 1], [], []>} : vector<128x1024xbf16>, vector<1024x896xbf16>, vector<128x896xf32> -> vector<128x896xf32>
    %c0_15 = arith.constant 0 : index
    %c0_16 = arith.constant 0 : index
    %19 = vector.load %arg7[%c0_15, %c0_16] : memref<1x896xf32, #tpu.memory_space<vmem>>, vector<1x896xf32>
    %20 = vector.broadcast %19 : vector<1x896xf32> to vector<128x896xf32>
    %21 = arith.addf %18, %20 : vector<128x896xf32>
    %cst_17 = arith.constant 0.000000e+00 : f32
    %22 = vector.broadcast %cst_17 : f32 to vector<128x896xf32>
    %23 = arith.subf %22, %21 : vector<128x896xf32>
    %24 = math.exp %23 : vector<128x896xf32>
    %cst_18 = arith.constant 1.000000e+00 : f32
    %25 = vector.broadcast %cst_18 : f32 to vector<128x896xf32>
    %26 = arith.addf %25, %24 : vector<128x896xf32>
    %27 = tpu.reciprocal %26 {approx = true} : vector<128x896xf32> -> vector<128x896xf32>
    %28 = arith.truncf %27 : vector<128x896xf32> to vector<128x896xbf16>
    %c0_19 = arith.constant 0 : index
    %c0_20 = arith.constant 0 : index
    %29 = vector.load %arg8[%c0_19, %c0_20] : memref<128x896xbf16, #tpu.memory_space<vmem>>, vector<128x896xbf16>
    tpu.vector_store %arg8[%c0_19, %c0_20], %28 {strides = array<i32>} : memref<128x896xbf16, #tpu.memory_space<vmem>>, vector<128x896xbf16>,
    return
  }
  func.func @transform_0(%arg0: i32) -> (i32, i32) {
    %c0_i32 = arith.constant 0 : i32
    %c0_i32_0 = arith.constant 0 : i32
    return %arg0, %c0_i32 : i32, i32
  }
  func.func @transform_1(%arg0: i32) -> (i32, i32) {
    %c0_i32 = arith.constant 0 : i32
    %c0_i32_0 = arith.constant 0 : i32
    %c0_i32_1 = arith.constant 0 : i32
    return %c0_i32, %c0_i32_0 : i32, i32
  }
  func.func @transform_2(%arg0: i32) -> (i32, i32) {
    %c0_i32 = arith.constant 0 : i32
    %c0_i32_0 = arith.constant 0 : i32
    %c0_i32_1 = arith.constant 0 : i32
    return %c0_i32, %c0_i32_0 : i32, i32
  }
  func.func @transform_3(%arg0: i32) -> (i32, i32) {
    %c0_i32 = arith.constant 0 : i32
    %c0_i32_0 = arith.constant 0 : i32
    %c0_i32_1 = arith.constant 0 : i32
    return %c0_i32, %c0_i32_0 : i32, i32
  }
  func.func @transform_4(%arg0: i32) -> (i32, i32) {
    %c0_i32 = arith.constant 0 : i32
    %c0_i32_0 = arith.constant 0 : i32
    %c0_i32_1 = arith.constant 0 : i32
    return %c0_i32, %c0_i32_0 : i32, i32
  }
  func.func @transform_5(%arg0: i32) -> (i32, i32) {
    %c0_i32 = arith.constant 0 : i32
    %c0_i32_0 = arith.constant 0 : i32
    %c0_i32_1 = arith.constant 0 : i32
    return %c0_i32, %c0_i32_0 : i32, i32
  }
  func.func @transform_6(%arg0: i32) -> (i32, i32) {
    %c0_i32 = arith.constant 0 : i32
    %c0_i32_0 = arith.constant 0 : i32
    %c0_i32_1 = arith.constant 0 : i32
    return %c0_i32, %c0_i32_0 : i32, i32
  }
  func.func @transform_7(%arg0: i32) -> (i32, i32) {
    %c0_i32 = arith.constant 0 : i32
    %c0_i32_0 = arith.constant 0 : i32
    return %arg0, %c0_i32 : i32, i32
  }
}

</mosaic_0001>

<llo_original>
// kernel: mnist_vad_forward.1
$region0: #{mnist_vad_forward.1}
  #allocation0 [shape = 'u32[]', space=smem, size = 0x4, offset = 0x4, fixed_abs, tag = 'smem constant byte address 0x4 - core index']
  #allocation1 [shape = 'u32[144,128]{1,0:T(1,128)}', space=vmem, size = 0x12000, scoped, tag = 'internal scratch']
  %s0 = inlined_call_operand.vmem [shape: bf16[128,8], index: 0, kind: input, shape index: {}]
  %s1 = inlined_call_operand.hbm [shape: bf16[8,256], index: 1, kind: input, shape index: {}]
  %s2 = inlined_call_operand.hbm [shape: f32[1,256], index: 2, kind: input, shape index: {}]
  %s3 = inlined_call_operand.hbm [shape: bf16[256,1024], index: 3, kind: input, shape index: {}]
  %s4 = inlined_call_operand.hbm [shape: f32[1,1024], index: 4, kind: input, shape index: {}]
  %s5 = inlined_call_operand.hbm [shape: bf16[1024,896], index: 5, kind: input, shape index: {}]
  %s6 = inlined_call_operand.hbm [shape: f32[1,896], index: 6, kind: input, shape index: {}]
  %s7 = inlined_call_operand.vmem [shape: bf16[128,896], index: 7, kind: output, shape index: {}]
  %s8 = sld [smem:[#allocation0]]
  $region62: #{mnist_vad_forward.1} parent=0
    _
  %s10 = ssub.s32 1, %s8
  %s11 = scalar_select 0, %s10, %s8
  $region1: #{mnist_vad_forward.1} parent=0
    #allocation2 [shape = 'u8[4096]{0}', space=vmem, size = 0x1000, scoped, tag = 'input window, operand 1, single buffered']
    #allocation3 [shape = 's32[1]{0}', space=sflag, size = 0x4, scoped, tag = 'scoped memory for mnist_vad_forward.1']
    #allocation4 [shape = 'u8[1024]{0}', space=vmem, size = 0x400, scoped, tag = 'input window, operand 2, single buffered']
    #allocation5 [shape = 's32[1]{0}', space=sflag, size = 0x4, scoped, tag = 'scoped memory for mnist_vad_forward.1']
    #allocation6 [shape = 'u8[524288]{0}', space=vmem, size = 0x80000, scoped, tag = 'input window, operand 3, single buffered']
    #allocation7 [shape = 'u8[4096]{0}', space=vmem, size = 0x1000, scoped, tag = 'input window, operand 4, single buffered']
    #allocation8 [shape = 's32[1]{0}', space=sflag, size = 0x4, scoped, tag = 'scoped memory for mnist_vad_forward.1']
    #allocation9 [shape = 'u8[1835008]{0}', space=vmem, size = 0x1c0000, scoped, tag = 'input window, operand 5, single buffered']
    #allocation10 [shape = 'u8[3584]{0}', space=vmem, size = 0x1000, scoped, tag = 'input window, operand 6, single buffered']
    #allocation11 [shape = 's32[1]{0}', space=sflag, size = 0x4, scoped, tag = 'scoped memory for mnist_vad_forward.1']
    %12 = vsyncpa [#allocation3], 0
    %13 = vsyncpa [#allocation5], 0
    %14 = vsyncpa [#allocation8], 0
    %15 = vsyncpa [#allocation11], 0
    // Predicated region
    $region2: #{mnist_vad_forward.1} parent=1 // pred_check
      _
    $region3: #{mnist_vad_forward.1} parent=1 // pred_check_branch
      %17 = sbr.rel (0) target = $region5
    $region4: #{mnist_vad_forward.1} parent=1 // pred_region
      _
    $region5: #{mnist_vad_forward.1} parent=1 // pred_fallthru
      _
    // Predicated region
    $region6: #{mnist_vad_forward.1} parent=1 // pred_check
      _
    $region7: #{mnist_vad_forward.1} parent=1 // pred_check_branch
      %19 = sbr.rel (0) target = $region9
    $region8: #{mnist_vad_forward.1} parent=1 // pred_region
      %s21 = ssub.s32 128, 128
      %22 = vsyncadd [#allocation3], %s21
      %s24 = sshll.u32 [#allocation2], 4
      %s25 = int_to_ptr.vmem [resolvable:$true] %s24
      %27 = dma.hbm_to_vmem [thread:$0]  %s1, 128, %s25, [#allocation3]
    $region9: #{mnist_vad_forward.1} parent=1 // pred_fallthru
      _
    // Predicated region
    $region10: #{mnist_vad_forward.1} parent=1 // pred_check
      _
    $region11: #{mnist_vad_forward.1} parent=1 // pred_check_branch
      %29 = sbr.rel (0) target = $region13
    $region12: #{mnist_vad_forward.1} parent=1 // pred_region
      %s31 = ssub.s32 32, 32
      %32 = vsyncadd [#allocation5], %s31
      %s34 = sshll.u32 [#allocation4], 4
      %s35 = int_to_ptr.vmem [resolvable:$true] %s34
      %37 = dma.hbm_to_vmem [thread:$0]  %s2, 32, %s35, [#allocation5]
    $region13: #{mnist_vad_forward.1} parent=1 // pred_fallthru
      _
    // Predicated region
    $region14: #{mnist_vad_forward.1} parent=1 // pred_check
      _
    $region15: #{mnist_vad_forward.1} parent=1 // pred_check_branch
      %39 = sbr.rel (0) target = $region17
    $region16: #{mnist_vad_forward.1} parent=1 // pred_region
      %s41 = ssub.s32 16384, 16384
      %42 = vsyncadd [#allocation5], %s41
      %s43 = sshll.u32 [#allocation6], 4
      %s44 = int_to_ptr.vmem [resolvable:$true] %s43
      %49 = dma.hbm_to_vmem [thread:$0]  %s3, 16384, %s44, [#allocation5], 512, 512, 32
    $region17: #{mnist_vad_forward.1} parent=1 // pred_fallthru
      _
    // Predicated region
    $region18: #{mnist_vad_forward.1} parent=1 // pred_check
      _
    $region19: #{mnist_vad_forward.1} parent=1 // pred_check_branch
      %51 = sbr.rel (0) target = $region21
    $region20: #{mnist_vad_forward.1} parent=1 // pred_region
      %s53 = ssub.s32 128, 128
      %54 = vsyncadd [#allocation8], %s53
      %s56 = sshll.u32 [#allocation7], 4
      %s57 = int_to_ptr.vmem [resolvable:$true] %s56
      %59 = dma.hbm_to_vmem [thread:$0]  %s4, 128, %s57, [#allocation8]
    $region21: #{mnist_vad_forward.1} parent=1 // pred_fallthru
      _
    // Predicated region
    $region22: #{mnist_vad_forward.1} parent=1 // pred_check
      _
    $region23: #{mnist_vad_forward.1} parent=1 // pred_check_branch
      %61 = sbr.rel (0) target = $region25
    $region24: #{mnist_vad_forward.1} parent=1 // pred_region
      %s63 = ssub.s32 57344, 57344
      %64 = vsyncadd [#allocation8], %s63
      %s65 = sshll.u32 [#allocation9], 4
      %s66 = int_to_ptr.vmem [resolvable:$true] %s65
      %71 = dma.hbm_to_vmem [thread:$0]  %s5, 57344, %s66, [#allocation8], 448, 448, 28
    $region25: #{mnist_vad_forward.1} parent=1 // pred_fallthru
      _
    // Predicated region
    $region26: #{mnist_vad_forward.1} parent=1 // pred_check
      _
    $region27: #{mnist_vad_forward.1} parent=1 // pred_check_branch
      %73 = sbr.rel (0) target = $region29
    $region28: #{mnist_vad_forward.1} parent=1 // pred_region
      %s75 = ssub.s32 112, 112
      %76 = vsyncadd [#allocation11], %s75
      %s78 = sshll.u32 [#allocation10], 4
      %s79 = int_to_ptr.vmem [resolvable:$true] %s78
      %81 = dma.hbm_to_vmem [thread:$0]  %s6, 112, %s79, [#allocation11]
    $region29: #{mnist_vad_forward.1} parent=1 // pred_fallthru
      _
    // Predicated region
    $region30: #{mnist_vad_forward.1} parent=1 // pred_check
      _
    $region31: #{mnist_vad_forward.1} parent=1 // pred_check_branch
      %83 = sbr.rel (0) target = $region33
    $region32: #{mnist_vad_forward.1} parent=1 // pred_region
      %84 = dma.done [#allocation3], 128
    $region33: #{mnist_vad_forward.1} parent=1 // pred_fallthru
      _
    // Predicated region
    $region34: #{mnist_vad_forward.1} parent=1 // pred_check
      _
    $region35: #{mnist_vad_forward.1} parent=1 // pred_check_branch
      %86 = sbr.rel (0) target = $region37
    $region36: #{mnist_vad_forward.1} parent=1 // pred_region
      %87 = dma.done [#allocation5], 32
    $region37: #{mnist_vad_forward.1} parent=1 // pred_fallthru
      _
    // Predicated region
    $region38: #{mnist_vad_forward.1} parent=1 // pred_check
      _
    $region39: #{mnist_vad_forward.1} parent=1 // pred_check_branch
      %89 = sbr.rel (0) target = $region41
    $region40: #{mnist_vad_forward.1} parent=1 // pred_region
      %90 = dma.done [#allocation5], 16384
    $region41: #{mnist_vad_forward.1} parent=1 // pred_fallthru
      _
    // Predicated region
    $region42: #{mnist_vad_forward.1} parent=1 // pred_check
      _
    $region43: #{mnist_vad_forward.1} parent=1 // pred_check_branch
      %92 = sbr.rel (0) target = $region45
    $region44: #{mnist_vad_forward.1} parent=1 // pred_region
      %93 = dma.done [#allocation8], 128
    $region45: #{mnist_vad_forward.1} parent=1 // pred_fallthru
      _
    // Predicated region
    $region46: #{mnist_vad_forward.1} parent=1 // pred_check
      _
    $region47: #{mnist_vad_forward.1} parent=1 // pred_check_branch
      %95 = sbr.rel (0) target = $region49
    $region48: #{mnist_vad_forward.1} parent=1 // pred_region
      %96 = dma.done [#allocation8], 57344
    $region49: #{mnist_vad_forward.1} parent=1 // pred_fallthru
      _
    // Predicated region
    $region50: #{mnist_vad_forward.1} parent=1 // pred_check
      _
    $region51: #{mnist_vad_forward.1} parent=1 // pred_check_branch
      %98 = sbr.rel (0) target = $region53
    $region52: #{mnist_vad_forward.1} parent=1 // pred_region
      %99 = dma.done [#allocation11], 112
    $region53: #{mnist_vad_forward.1} parent=1 // pred_fallthru
      _
    %v101 = vld [vmem:[%s0] sm:$0xf]
    %v102 = vld [vmem:[%s0 + $0x4] sm:$0xf]
    %v103 = vld [vmem:[%s0 + $0x8] sm:$0xf]
    %v104 = vld [vmem:[%s0 + $0xc] sm:$0xf]
    %v105 = vld [vmem:[%s0 + $0x10] sm:$0xf]
    %v106 = vld [vmem:[%s0 + $0x14] sm:$0xf]
    %v107 = vld [vmem:[%s0 + $0x18] sm:$0xf]
    %v108 = vld [vmem:[%s0 + $0x1c] sm:$0xf]
    %v109 = vld [vmem:[%s0 + $0x20] sm:$0xf]
    %v110 = vld [vmem:[%s0 + $0x24] sm:$0xf]
    %v111 = vld [vmem:[%s0 + $0x28] sm:$0xf]
    %v112 = vld [vmem:[%s0 + $0x2c] sm:$0xf]
    %v113 = vld [vmem:[%s0 + $0x30] sm:$0xf]
    %v114 = vld [vmem:[%s0 + $0x34] sm:$0xf]
    %v115 = vld [vmem:[%s0 + $0x38] sm:$0xf]
    %v116 = vld [vmem:[%s0 + $0x3c] sm:$0xf]
    %v117 = vld [vmem:[#allocation2] sm:$0xff]
    %v118 = vld [vmem:[#allocation4] sm:$0x3]
    %v120 = vlaneseq
    %v121 = vshrl.u32 %v120, 7
    %v122 = vsub.s32 0, %v121
    %v123 = vrot.slane %v118, %v122
    %v124 = vlaneseq
    %v125 = vshrl.u32 %v124, 7
    %v126 = vsub.s32 1, %v125
    %v127 = vrot.slane %v118, %v126
    %v146 = vunpack.c.l.b16 %v101
    %v147 = vunpack.c.l.b16 %v102
    %v148 = vunpack.c.l.b16 %v103
    %v149 = vunpack.c.l.b16 %v104
    %v150 = vunpack.c.l.b16 %v105
    %v151 = vunpack.c.l.b16 %v106
    %v152 = vunpack.c.l.b16 %v107
    %v153 = vunpack.c.l.b16 %v108
    %v154 = vunpack.c.l.b16 %v109
    %v155 = vunpack.c.l.b16 %v110
    %v156 = vunpack.c.l.b16 %v111
    %v157 = vunpack.c.l.b16 %v112
    %v158 = vunpack.c.l.b16 %v113
    %v159 = vunpack.c.l.b16 %v114
    %v160 = vunpack.c.l.b16 %v115
    %v161 = vunpack.c.l.b16 %v116
    %v162 = vpack.c.b16 %v147, %v146
    %v163 = vpack.c.b16 %v149, %v148
    %v164 = vpack.c.b16 %v151, %v150
    %v165 = vpack.c.b16 %v153, %v152
    %v166 = vpack.c.b16 %v155, %v154
    %v167 = vpack.c.b16 %v157, %v156
    %v168 = vpack.c.b16 %v159, %v158
    %v169 = vpack.c.b16 %v161, %v160
    %v171 = vunpack.c.l.b16 %v117
    %v172 = vunpack.c.h.b16 %v117
    %v173 = vpack.c.b16 %v171, %v171
    %v174 = vpack.c.b16 %v172, %v172
    %vm175 = vcmask 64512
    %v177 = vsel %vm175, %v162, 0
    %v180 = vsel %vm175, %v163, 0
    %v183 = vsel %vm175, %v164, 0
    %v186 = vsel %vm175, %v165, 0
    %v189 = vsel %vm175, %v166, 0
    %v192 = vsel %vm175, %v167, 0
    %v195 = vsel %vm175, %v168, 0
    %v198 = vsel %vm175, %v169, 0
    %vm200 = vcmask 1043456
    %v202 = vsel %vm200, %v173, 0
    %v205 = vsel %vm200, %v174, 0
    %207 = vmatprep.subr.bf16.mxu0 %v205
    %208 = vmatpush1.bf16.msra.mxu0 %v202
    %209 = vmatprep.subr.bf16.mxu0 0
    %210 = vmatpush1.bf16.msra.mxu0 0
    %211 = vmatprep.subr.bf16.mxu0 0
    %212 = vmatpush1.bf16.msra.mxu0 0
    %213 = vmatprep.subr.bf16.mxu0 0
    %214 = vmatpush1.bf16.msra.mxu0 0
    %215 = vmatprep.subr.bf16.mxu0 0
    %216 = vmatpush1.bf16.msra.mxu0 0
    %217 = vmatprep.subr.bf16.mxu0 0
    %218 = vmatpush1.bf16.msra.mxu0 0
    %219 = vmatprep.subr.bf16.mxu0 0
    %220 = vmatpush1.bf16.msra.mxu0 0
    %221 = vmatprep.subr.bf16.mxu0 0
    %222 = vmatpush1.bf16.msra.mxu0 0
    %223 = vmatprep.subr.bf16.mxu0 0
    %224 = vmatpush1.bf16.msra.mxu0 0
    %225 = vmatprep.subr.bf16.mxu0 0
    %226 = vmatpush1.bf16.msra.mxu0 0
    %227 = vmatprep.subr.bf16.mxu0 0
    %228 = vmatpush1.bf16.msra.mxu0 0
    %229 = vmatprep.subr.bf16.mxu0 0
    %230 = vmatpush1.bf16.msra.mxu0 0
    %231 = vmatprep.subr.bf16.mxu0 0
    %232 = vmatpush1.bf16.msra.mxu0 0
    %233 = vmatprep.subr.bf16.mxu0 0
    %234 = vmatpush1.bf16.msra.mxu0 0
    %235 = vmatprep.subr.bf16.mxu0 0
    %236 = vmatpush1.bf16.msra.mxu0 0
    %237 = vmatprep.subr.bf16.mxu0 0
    %238 = vmatpush1.bf16.msra.mxu0 0
    %239 = vmatprep.mubr.bf16.mxu0 0
    %240 = vmatmul.mubr.bf16.gmra.mrb[0].mxu0 %v177
    %v241 = vpop.f32.mrb[0].mxu0
    %v242 = vadd.f32 %v123, %v241
    %v243 = vpop.f32.mrb[0].mxu0
    %v244 = vadd.f32 %v127, %v243
    %v245 = vpop.f32.mrb[0].mxu0
    %v246 = vadd.f32 %v123, %v245
    %v247 = vpop.f32.mrb[0].mxu0
    %v248 = vadd.f32 %v127, %v247
    %249 = vmatprep.mubr.bf16.mxu0 0
    %250 = vmatmul.mubr.bf16.gmra.mrb[0].mxu0 %v180
    %v251 = vpop.f32.mrb[0].mxu0
    %v252 = vadd.f32 %v123, %v251
    %v253 = vpop.f32.mrb[0].mxu0
    %v254 = vadd.f32 %v127, %v253
    %v255 = vpop.f32.mrb[0].mxu0
    %v256 = vadd.f32 %v123, %v255
    %v257 = vpop.f32.mrb[0].mxu0
    %v258 = vadd.f32 %v127, %v257
    %259 = vmatprep.mubr.bf16.mxu0 0
    %260 = vmatmul.mubr.bf16.gmra.mrb[0].mxu0 %v183
    %v261 = vpop.f32.mrb[0].mxu0
    %v262 = vadd.f32 %v123, %v261
    %v263 = vpop.f32.mrb[0].mxu0
    %v264 = vadd.f32 %v127, %v263
    %v265 = vpop.f32.mrb[0].mxu0
    %v266 = vadd.f32 %v123, %v265
    %v267 = vpop.f32.mrb[0].mxu0
    %v268 = vadd.f32 %v127, %v267
    %269 = vmatprep.mubr.bf16.mxu0 0
    %270 = vmatmul.mubr.bf16.gmra.mrb[0].mxu0 %v186
    %v271 = vpop.f32.mrb[0].mxu0
    %v272 = vadd.f32 %v123, %v271
    %v273 = vpop.f32.mrb[0].mxu0
    %v274 = vadd.f32 %v127, %v273
    %v275 = vpop.f32.mrb[0].mxu0
    %v276 = vadd.f32 %v123, %v275
    %v277 = vpop.f32.mrb[0].mxu0
    %v278 = vadd.f32 %v127, %v277
    %279 = vmatprep.mubr.bf16.mxu0 0
    %280 = vmatmul.mubr.bf16.gmra.mrb[0].mxu0 %v189
    %v281 = vpop.f32.mrb[0].mxu0
    %v282 = vadd.f32 %v123, %v281
    %v283 = vpop.f32.mrb[0].mxu0
    %v284 = vadd.f32 %v127, %v283
    %v285 = vpop.f32.mrb[0].mxu0
    %v286 = vadd.f32 %v123, %v285
    %v287 = vpop.f32.mrb[0].mxu0
    %v288 = vadd.f32 %v127, %v287
    %289 = vmatprep.mubr.bf16.mxu0 0
    %290 = vmatmul.mubr.bf16.gmra.mrb[0].mxu0 %v192
    %v291 = vpop.f32.mrb[0].mxu0
    %v292 = vadd.f32 %v123, %v291
    %v293 = vpop.f32.mrb[0].mxu0
    %v294 = vadd.f32 %v127, %v293
    %v295 = vpop.f32.mrb[0].mxu0
    %v296 = vadd.f32 %v123, %v295
    %v297 = vpop.f32.mrb[0].mxu0
    %v298 = vadd.f32 %v127, %v297
    %299 = vmatprep.mubr.bf16.mxu0 0
    %300 = vmatmul.mubr.bf16.gmra.mrb[0].mxu0 %v195
    %v301 = vpop.f32.mrb[0].mxu0
    %v302 = vadd.f32 %v123, %v301
    %v303 = vpop.f32.mrb[0].mxu0
    %v304 = vadd.f32 %v127, %v303
    %v305 = vpop.f32.mrb[0].mxu0
    %v306 = vadd.f32 %v123, %v305
    %v307 = vpop.f32.mrb[0].mxu0
    %v308 = vadd.f32 %v127, %v307
    %309 = vmatprep.mubr.bf16.mxu0 0
    %310 = vmatmul.mubr.bf16.gmra.mrb[0].mxu0 %v198
    %v311 = vpop.f32.mrb[0].mxu0
    %v312 = vadd.f32 %v123, %v311
    %v313 = vpop.f32.mrb[0].mxu0
    %v314 = vadd.f32 %v127, %v313
    %v315 = vpop.f32.mrb[0].mxu0
    %v316 = vadd.f32 %v123, %v315
    %v317 = vpop.f32.mrb[0].mxu0
    %v318 = vadd.f32 %v127, %v317
    %319 = vdwg.mxu0
    %v320 = vmax.f32 %v242, 0.0
    %v321 = vmax.f32 %v244, 0.0
    %v322 = vmax.f32 %v246, 0.0
    %v323 = vmax.f32 %v248, 0.0
    %v324 = vmax.f32 %v252, 0.0
    %v325 = vmax.f32 %v254, 0.0
    %v326 = vmax.f32 %v256, 0.0
    %v327 = vmax.f32 %v258, 0.0
    %v328 = vmax.f32 %v262, 0.0
    %v329 = vmax.f32 %v264, 0.0
    %v330 = vmax.f32 %v266, 0.0
    %v331 = vmax.f32 %v268, 0.0
    %v332 = vmax.f32 %v272, 0.0
    %v333 = vmax.f32 %v274, 0.0
    %v334 = vmax.f32 %v276, 0.0
    %v335 = vmax.f32 %v278, 0.0
    %v336 = vmax.f32 %v282, 0.0
    %v337 = vmax.f32 %v284, 0.0
    %v338 = vmax.f32 %v286, 0.0
    %v339 = vmax.f32 %v288, 0.0
    %v340 = vmax.f32 %v292, 0.0
    %v341 = vmax.f32 %v294, 0.0
    %v342 = vmax.f32 %v296, 0.0
    %v343 = vmax.f32 %v298, 0.0
    %v344 = vmax.f32 %v302, 0.0
    %v345 = vmax.f32 %v304, 0.0
    %v346 = vmax.f32 %v306, 0.0
    %v347 = vmax.f32 %v308, 0.0
    %v348 = vmax.f32 %v312, 0.0
    %v349 = vmax.f32 %v314, 0.0
    %v350 = vmax.f32 %v316, 0.0
    %v351 = vmax.f32 %v318, 0.0
    %v352 = vpack.c.bf16 %v322, %v320
    %v353 = vpack.c.bf16 %v323, %v321
    %v354 = vpack.c.bf16 %v326, %v324
    %v355 = vpack.c.bf16 %v327, %v325
    %v356 = vpack.c.bf16 %v330, %v328
    %v357 = vpack.c.bf16 %v331, %v329
    %v358 = vpack.c.bf16 %v334, %v332
    %v359 = vpack.c.bf16 %v335, %v333
    %v360 = vpack.c.bf16 %v338, %v336
    %v361 = vpack.c.bf16 %v339, %v337
    %v362 = vpack.c.bf16 %v342, %v340
    %v363 = vpack.c.bf16 %v343, %v341
    %v364 = vpack.c.bf16 %v346, %v344
    %v365 = vpack.c.bf16 %v347, %v345
    %v366 = vpack.c.bf16 %v350, %v348
    %v367 = vpack.c.bf16 %v351, %v349
    %v368 = vld [vmem:[#allocation6] sm:$0xff]
    %v369 = vld [vmem:[#allocation6 + $0x8] sm:$0xff]
    %v370 = vld [vmem:[#allocation6 + $0x10] sm:$0xff]
    %v371 = vld [vmem:[#allocation6 + $0x18] sm:$0xff]
    %v372 = vld [vmem:[#allocation6 + $0x20] sm:$0xff]
    %v373 = vld [vmem:[#allocation6 + $0x28] sm:$0xff]
    %v374 = vld [vmem:[#allocation6 + $0x30] sm:$0xff]
    %v375 = vld [vmem:[#allocation6 + $0x38] sm:$0xff]
    %v376 = vld [vmem:[#allocation6 + $0x40] sm:$0xff]
    %v377 = vld [vmem:[#allocation6 + $0x48] sm:$0xff]
    %v378 = vld [vmem:[#allocation6 + $0x50] sm:$0xff]
    %v379 = vld [vmem:[#allocation6 + $0x58] sm:$0xff]
    %v380 = vld [vmem:[#allocation6 + $0x60] sm:$0xff]
    %v381 = vld [vmem:[#allocation6 + $0x68] sm:$0xff]
    %v382 = vld [vmem:[#allocation6 + $0x70] sm:$0xff]
    %v383 = vld [vmem:[#allocation6 + $0x78] sm:$0xff]
    %v384 = vld [vmem:[#allocation6 + $0x80] sm:$0xff]
    %v385 = vld [vmem:[#allocation6 + $0x88] sm:$0xff]
    %v386 = vld [vmem:[#allocation6 + $0x90] sm:$0xff]
    %v387 = vld [vmem:[#allocation6 + $0x98] sm:$0xff]
    %v388 = vld [vmem:[#allocation6 + $0xa0] sm:$0xff]
    %v389 = vld [vmem:[#allocation6 + $0xa8] sm:$0xff]
    %v390 = vld [vmem:[#allocation6 + $0xb0] sm:$0xff]
    %v391 = vld [vmem:[#allocation6 + $0xb8] sm:$0xff]
    %v392 = vld [vmem:[#allocation6 + $0xc0] sm:$0xff]
    %v393 = vld [vmem:[#allocation6 + $0xc8] sm:$0xff]
    %v394 = vld [vmem:[#allocation6 + $0xd0] sm:$0xff]
    %v395 = vld [vmem:[#allocation6 + $0xd8] sm:$0xff]
    %v396 = vld [vmem:[#allocation6 + $0xe0] sm:$0xff]
    %v397 = vld [vmem:[#allocation6 + $0xe8] sm:$0xff]
    %v398 = vld [vmem:[#allocation6 + $0xf0] sm:$0xff]
    %v399 = vld [vmem:[#allocation6 + $0xf8] sm:$0xff]
    %v400 = vld [vmem:[#allocation6 + $0x100] sm:$0xff]
    %v401 = vld [vmem:[#allocation6 + $0x108] sm:$0xff]
    %v402 = vld [vmem:[#allocation6 + $0x110] sm:$0xff]
    %v403 = vld [vmem:[#allocation6 + $0x118] sm:$0xff]
    %v404 = vld [vmem:[#allocation6 + $0x120] sm:$0xff]
    %v405 = vld [vmem:[#allocation6 + $0x128] sm:$0xff]
    %v406 = vld [vmem:[#allocation6 + $0x130] sm:$0xff]
    %v407 = vld [vmem:[#allocation6 + $0x138] sm:$0xff]
    %v408 = vld [vmem:[#allocation6 + $0x140] sm:$0xff]
    %v409 = vld [vmem:[#allocation6 + $0x148] sm:$0xff]
    %v410 = vld [vmem:[#allocation6 + $0x150] sm:$0xff]
    %v411 = vld [vmem:[#allocation6 + $0x158] sm:$0xff]
    %v412 = vld [vmem:[#allocation6 + $0x160] sm:$0xff]
    %v413 = vld [vmem:[#allocation6 + $0x168] sm:$0xff]
    %v414 = vld [vmem:[#allocation6 + $0x170] sm:$0xff]
    %v415 = vld [vmem:[#allocation6 + $0x178] sm:$0xff]
    %v416 = vld [vmem:[#allocation6 + $0x180] sm:$0xff]
    %v417 = vld [vmem:[#allocation6 + $0x188] sm:$0xff]
    %v418 = vld [vmem:[#allocation6 + $0x190] sm:$0xff]
    %v419 = vld [vmem:[#allocation6 + $0x198] sm:$0xff]
    %v420 = vld [vmem:[#allocation6 + $0x1a0] sm:$0xff]
    %v421 = vld [vmem:[#allocation6 + $0x1a8] sm:$0xff]
    %v422 = vld [vmem:[#allocation6 + $0x1b0] sm:$0xff]
    %v423 = vld [vmem:[#allocation6 + $0x1b8] sm:$0xff]
    %v424 = vld [vmem:[#allocation6 + $0x1c0] sm:$0xff]
    %v425 = vld [vmem:[#allocation6 + $0x1c8] sm:$0xff]
    %v426 = vld [vmem:[#allocation6 + $0x1d0] sm:$0xff]
    %v427 = vld [vmem:[#allocation6 + $0x1d8] sm:$0xff]
    %v428 = vld [vmem:[#allocation6 + $0x1e0] sm:$0xff]
    %v429 = vld [vmem:[#allocation6 + $0x1e8] sm:$0xff]
    %v430 = vld [vmem:[#allocation6 + $0x1f0] sm:$0xff]
    %v431 = vld [vmem:[#allocation6 + $0x1f8] sm:$0xff]
    %v432 = vld [vmem:[#allocation6 + $0x200] sm:$0xff]
    %v433 = vld [vmem:[#allocation6 + $0x208] sm:$0xff]
    %v434 = vld [vmem:[#allocation6 + $0x210] sm:$0xff]
    %v435 = vld [vmem:[#allocation6 + $0x218] sm:$0xff]
    %v436 = vld [vmem:[#allocation6 + $0x220] sm:$0xff]
    %v437 = vld [vmem:[#allocation6 + $0x228] sm:$0xff]
    %v438 = vld [vmem:[#allocation6 + $0x230] sm:$0xff]
    %v439 = vld [vmem:[#allocation6 + $0x238] sm:$0xff]
    %v440 = vld [vmem:[#allocation6 + $0x240] sm:$0xff]
    %v441 = vld [vmem:[#allocation6 + $0x248] sm:$0xff]
    %v442 = vld [vmem:[#allocation6 + $0x250] sm:$0xff]
    %v443 = vld [vmem:[#allocation6 + $0x258] sm:$0xff]
    %v444 = vld [vmem:[#allocation6 + $0x260] sm:$0xff]
    %v445 = vld [vmem:[#allocation6 + $0x268] sm:$0xff]
    %v446 = vld [vmem:[#allocation6 + $0x270] sm:$0xff]
    %v447 = vld [vmem:[#allocation6 + $0x278] sm:$0xff]
    %v448 = vld [vmem:[#allocation6 + $0x280] sm:$0xff]
    %v449 = vld [vmem:[#allocation6 + $0x288] sm:$0xff]
    %v450 = vld [vmem:[#allocation6 + $0x290] sm:$0xff]
    %v451 = vld [vmem:[#allocation6 + $0x298] sm:$0xff]
    %v452 = vld [vmem:[#allocation6 + $0x2a0] sm:$0xff]
    %v453 = vld [vmem:[#allocation6 + $0x2a8] sm:$0xff]
    %v454 = vld [vmem:[#allocation6 + $0x2b0] sm:$0xff]
    %v455 = vld [vmem:[#allocation6 + $0x2b8] sm:$0xff]
    %v456 = vld [vmem:[#allocation6 + $0x2c0] sm:$0xff]
    %v457 = vld [vmem:[#allocation6 + $0x2c8] sm:$0xff]
    %v458 = vld [vmem:[#allocation6 + $0x2d0] sm:$0xff]
    %v459 = vld [vmem:[#allocation6 + $0x2d8] sm:$0xff]
    %v460 = vld [vmem:[#allocation6 + $0x2e0] sm:$0xff]
    %v461 = vld [vmem:[#allocation6 + $0x2e8] sm:$0xff]
    %v462 = vld [vmem:[#allocation6 + $0x2f0] sm:$0xff]
    %v463 = vld [vmem:[#allocation6 + $0x2f8] sm:$0xff]
    %v464 = vld [vmem:[#allocation6 + $0x300] sm:$0xff]
    %v465 = vld [vmem:[#allocation6 + $0x308] sm:$0xff]
    %v466 = vld [vmem:[#allocation6 + $0x310] sm:$0xff]
    %v467 = vld [vmem:[#allocation6 + $0x318] sm:$0xff]
    %v468 = vld [vmem:[#allocation6 + $0x320] sm:$0xff]
    %v469 = vld [vmem:[#allocation6 + $0x328] sm:$0xff]
    %v470 = vld [vmem:[#allocation6 + $0x330] sm:$0xff]
    %v471 = vld [vmem:[#allocation6 + $0x338] sm:$0xff]
    %v472 = vld [vmem:[#allocation6 + $0x340] sm:$0xff]
    %v473 = vld [vmem:[#allocation6 + $0x348] sm:$0xff]
    %v474 = vld [vmem:[#allocation6 + $0x350] sm:$0xff]
    %v475 = vld [vmem:[#allocation6 + $0x358] sm:$0xff]
    %v476 = vld [vmem:[#allocation6 + $0x360] sm:$0xff]
    %v477 = vld [vmem:[#allocation6 + $0x368] sm:$0xff]
    %v478 = vld [vmem:[#allocation6 + $0x370] sm:$0xff]
    %v479 = vld [vmem:[#allocation6 + $0x378] sm:$0xff]
    %v480 = vld [vmem:[#allocation6 + $0x380] sm:$0xff]
    %v481 = vld [vmem:[#allocation6 + $0x388] sm:$0xff]
    %v482 = vld [vmem:[#allocation6 + $0x390] sm:$0xff]
    %v483 = vld [vmem:[#allocation6 + $0x398] sm:$0xff]
    %v484 = vld [vmem:[#allocation6 + $0x3a0] sm:$0xff]
    %v485 = vld [vmem:[#allocation6 + $0x3a8] sm:$0xff]
    %v486 = vld [vmem:[#allocation6 + $0x3b0] sm:$0xff]
    %v487 = vld [vmem:[#allocation6 + $0x3b8] sm:$0xff]
    %v488 = vld [vmem:[#allocation6 + $0x3c0] sm:$0xff]
    %v489 = vld [vmem:[#allocation6 + $0x3c8] sm:$0xff]
    %v490 = vld [vmem:[#allocation6 + $0x3d0] sm:$0xff]
    %v491 = vld [vmem:[#allocation6 + $0x3d8] sm:$0xff]
    %v492 = vld [vmem:[#allocation6 + $0x3e0] sm:$0xff]
    %v493 = vld [vmem:[#allocation6 + $0x3e8] sm:$0xff]
    %v494 = vld [vmem:[#allocation6 + $0x3f0] sm:$0xff]
    %v495 = vld [vmem:[#allocation6 + $0x3f8] sm:$0xff]
    %v496 = vld [vmem:[#allocation7] sm:$0xff]
    %v498 = vlaneseq
    %v499 = vshrl.u32 %v498, 7
    %v500 = vsub.s32 0, %v499
    %v501 = vrot.slane %v496, %v500
    %v502 = vlaneseq
    %v503 = vshrl.u32 %v502, 7
    %v504 = vsub.s32 1, %v503
    %v505 = vrot.slane %v496, %v504
    %v506 = vlaneseq
    %v507 = vshrl.u32 %v506, 7
    %v508 = vsub.s32 2, %v507
    %v509 = vrot.slane %v496, %v508
    %v510 = vlaneseq
    %v511 = vshrl.u32 %v510, 7
    %v512 = vsub.s32 3, %v511
    %v513 = vrot.slane %v496, %v512
    %v514 = vlaneseq
    %v515 = vshrl.u32 %v514, 7
    %v516 = vsub.s32 4, %v515
    %v517 = vrot.slane %v496, %v516
    %v518 = vlaneseq
    %v519 = vshrl.u32 %v518, 7
    %v520 = vsub.s32 5, %v519
    %v521 = vrot.slane %v496, %v520
    %v522 = vlaneseq
    %v523 = vshrl.u32 %v522, 7
    %v524 = vsub.s32 6, %v523
    %v525 = vrot.slane %v496, %v524
    %v526 = vlaneseq
    %v527 = vshrl.u32 %v526, 7
    %v528 = vsub.s32 7, %v527
    %v529 = vrot.slane %v496, %v528
    %v666 = vunpack.c.l.b16 %v368
    %v667 = vunpack.c.h.b16 %v368
    %v668 = vunpack.c.l.b16 %v369
    %v669 = vunpack.c.h.b16 %v369
    %v670 = vunpack.c.l.b16 %v370
    %v671 = vunpack.c.h.b16 %v370
    %v672 = vunpack.c.l.b16 %v371
    %v673 = vunpack.c.h.b16 %v371
    %v674 = vunpack.c.l.b16 %v372
    %v675 = vunpack.c.h.b16 %v372
    %v676 = vunpack.c.l.b16 %v373
    %v677 = vunpack.c.h.b16 %v373
    %v678 = vunpack.c.l.b16 %v374
    %v679 = vunpack.c.h.b16 %v374
    %v680 = vunpack.c.l.b16 %v375
    %v681 = vunpack.c.h.b16 %v375
    %v682 = vunpack.c.l.b16 %v376
    %v683 = vunpack.c.h.b16 %v376
    %v684 = vunpack.c.l.b16 %v377
    %v685 = vunpack.c.h.b16 %v377
    %v686 = vunpack.c.l.b16 %v378
    %v687 = vunpack.c.h.b16 %v378
    %v688 = vunpack.c.l.b16 %v379
    %v689 = vunpack.c.h.b16 %v379
    %v690 = vunpack.c.l.b16 %v380
    %v691 = vunpack.c.h.b16 %v380
    %v692 = vunpack.c.l.b16 %v381
    %v693 = vunpack.c.h.b16 %v381
    %v694 = vunpack.c.l.b16 %v382
    %v695 = vunpack.c.h.b16 %v382
    %v696 = vunpack.c.l.b16 %v383
    %v697 = vunpack.c.h.b16 %v383
    %v698 = vunpack.c.l.b16 %v384
    %v699 = vunpack.c.h.b16 %v384
    %v700 = vunpack.c.l.b16 %v385
    %v701 = vunpack.c.h.b16 %v385
    %v702 = vunpack.c.l.b16 %v386
    %v703 = vunpack.c.h.b16 %v386
    %v704 = vunpack.c.l.b16 %v387
    %v705 = vunpack.c.h.b16 %v387
    %v706 = vunpack.c.l.b16 %v388
    %v707 = vunpack.c.h.b16 %v388
    %v708 = vunpack.c.l.b16 %v389
    %v709 = vunpack.c.h.b16 %v389
    %v710 = vunpack.c.l.b16 %v390
    %v711 = vunpack.c.h.b16 %v390
    %v712 = vunpack.c.l.b16 %v391
    %v713 = vunpack.c.h.b16 %v391
    %v714 = vunpack.c.l.b16 %v392
    %v715 = vunpack.c.h.b16 %v392
    %v716 = vunpack.c.l.b16 %v393
    %v717 = vunpack.c.h.b16 %v393
    %v718 = vunpack.c.l.b16 %v394
    %v719 = vunpack.c.h.b16 %v394
    %v720 = vunpack.c.l.b16 %v395
    %v721 = vunpack.c.h.b16 %v395
    %v722 = vunpack.c.l.b16 %v396
    %v723 = vunpack.c.h.b16 %v396
    %v724 = vunpack.c.l.b16 %v397
    %v725 = vunpack.c.h.b16 %v397
    %v726 = vunpack.c.l.b16 %v398
    %v727 = vunpack.c.h.b16 %v398
    %v728 = vunpack.c.l.b16 %v399
    %v729 = vunpack.c.h.b16 %v399
    %v730 = vunpack.c.l.b16 %v400
    %v731 = vunpack.c.h.b16 %v400
    %v732 = vunpack.c.l.b16 %v401
    %v733 = vunpack.c.h.b16 %v401
    %v734 = vunpack.c.l.b16 %v402
    %v735 = vunpack.c.h.b16 %v402
    %v736 = vunpack.c.l.b16 %v403
    %v737 = vunpack.c.h.b16 %v403
    %v738 = vunpack.c.l.b16 %v404
    %v739 = vunpack.c.h.b16 %v404
    %v740 = vunpack.c.l.b16 %v405
    %v741 = vunpack.c.h.b16 %v405
    %v742 = vunpack.c.l.b16 %v406
    %v743 = vunpack.c.h.b16 %v406
    %v744 = vunpack.c.l.b16 %v407
    %v745 = vunpack.c.h.b16 %v407
    %v746 = vunpack.c.l.b16 %v408
    %v747 = vunpack.c.h.b16 %v408
    %v748 = vunpack.c.l.b16 %v409
    %v749 = vunpack.c.h.b16 %v409
    %v750 = vunpack.c.l.b16 %v410
    %v751 = vunpack.c.h.b16 %v410
    %v752 = vunpack.c.l.b16 %v411
    %v753 = vunpack.c.h.b16 %v411
    %v754 = vunpack.c.l.b16 %v412
    %v755 = vunpack.c.h.b16 %v412
    %v756 = vunpack.c.l.b16 %v413
    %v757 = vunpack.c.h.b16 %v413
    %v758 = vunpack.c.l.b16 %v414
    %v759 = vunpack.c.h.b16 %v414
    %v760 = vunpack.c.l.b16 %v415
    %v761 = vunpack.c.h.b16 %v415
    %v762 = vunpack.c.l.b16 %v416
    %v763 = vunpack.c.h.b16 %v416
    %v764 = vunpack.c.l.b16 %v417
    %v765 = vunpack.c.h.b16 %v417
    %v766 = vunpack.c.l.b16 %v418
    %v767 = vunpack.c.h.b16 %v418
    %v768 = vunpack.c.l.b16 %v419
    %v769 = vunpack.c.h.b16 %v419
    %v770 = vunpack.c.l.b16 %v420
    %v771 = vunpack.c.h.b16 %v420
    %v772 = vunpack.c.l.b16 %v421
    %v773 = vunpack.c.h.b16 %v421
    %v774 = vunpack.c.l.b16 %v422
    %v775 = vunpack.c.h.b16 %v422
    %v776 = vunpack.c.l.b16 %v423
    %v777 = vunpack.c.h.b16 %v423
    %v778 = vunpack.c.l.b16 %v424
    %v779 = vunpack.c.h.b16 %v424
    %v780 = vunpack.c.l.b16 %v425
    %v781 = vunpack.c.h.b16 %v425
    %v782 = vunpack.c.l.b16 %v426
    %v783 = vunpack.c.h.b16 %v426
    %v784 = vunpack.c.l.b16 %v427
    %v785 = vunpack.c.h.b16 %v427
    %v786 = vunpack.c.l.b16 %v428
    %v787 = vunpack.c.h.b16 %v428
    %v788 = vunpack.c.l.b16 %v429
    %v789 = vunpack.c.h.b16 %v429
    %v790 = vunpack.c.l.b16 %v430
    %v791 = vunpack.c.h.b16 %v430
    %v792 = vunpack.c.l.b16 %v431
    %v793 = vunpack.c.h.b16 %v431
    %v794 = vunpack.c.l.b16 %v432
    %v795 = vunpack.c.h.b16 %v432
    %v796 = vunpack.c.l.b16 %v433
    %v797 = vunpack.c.h.b16 %v433
    %v798 = vunpack.c.l.b16 %v434
    %v799 = vunpack.c.h.b16 %v434
    %v800 = vunpack.c.l.b16 %v435
    %v801 = vunpack.c.h.b16 %v435
    %v802 = vunpack.c.l.b16 %v436
    %v803 = vunpack.c.h.b16 %v436
    %v804 = vunpack.c.l.b16 %v437
    %v805 = vunpack.c.h.b16 %v437
    %v806 = vunpack.c.l.b16 %v438
    %v807 = vunpack.c.h.b16 %v438
    %v808 = vunpack.c.l.b16 %v439
    %v809 = vunpack.c.h.b16 %v439
    %v810 = vunpack.c.l.b16 %v440
    %v811 = vunpack.c.h.b16 %v440
    %v812 = vunpack.c.l.b16 %v441
    %v813 = vunpack.c.h.b16 %v441
    %v814 = vunpack.c.l.b16 %v442
    %v815 = vunpack.c.h.b16 %v442
    %v816 = vunpack.c.l.b16 %v443
    %v817 = vunpack.c.h.b16 %v443
    %v818 = vunpack.c.l.b16 %v444
    %v819 = vunpack.c.h.b16 %v444
    %v820 = vunpack.c.l.b16 %v445
    %v821 = vunpack.c.h.b16 %v445
    %v822 = vunpack.c.l.b16 %v446
    %v823 = vunpack.c.h.b16 %v446
    %v824 = vunpack.c.l.b16 %v447
    %v825 = vunpack.c.h.b16 %v447
    %v826 = vunpack.c.l.b16 %v448
    %v827 = vunpack.c.h.b16 %v448
    %v828 = vunpack.c.l.b16 %v449
    %v829 = vunpack.c.h.b16 %v449
    %v830 = vunpack.c.l.b16 %v450
    %v831 = vunpack.c.h.b16 %v450
    %v832 = vunpack.c.l.b16 %v451
    %v833 = vunpack.c.h.b16 %v451
    %v834 = vunpack.c.l.b16 %v452
    %v835 = vunpack.c.h.b16 %v452
    %v836 = vunpack.c.l.b16 %v453
    %v837 = vunpack.c.h.b16 %v453
    %v838 = vunpack.c.l.b16 %v454
    %v839 = vunpack.c.h.b16 %v454
    %v840 = vunpack.c.l.b16 %v455
    %v841 = vunpack.c.h.b16 %v455
    %v842 = vunpack.c.l.b16 %v456
    %v843 = vunpack.c.h.b16 %v456
    %v844 = vunpack.c.l.b16 %v457
    %v845 = vunpack.c.h.b16 %v457
    %v846 = vunpack.c.l.b16 %v458
    %v847 = vunpack.c.h.b16 %v458
    %v848 = vunpack.c.l.b16 %v459
    %v849 = vunpack.c.h.b16 %v459
    %v850 = vunpack.c.l.b16 %v460
    %v851 = vunpack.c.h.b16 %v460
    %v852 = vunpack.c.l.b16 %v461
    %v853 = vunpack.c.h.b16 %v461
    %v854 = vunpack.c.l.b16 %v462
    %v855 = vunpack.c.h.b16 %v462
    %v856 = vunpack.c.l.b16 %v463
    %v857 = vunpack.c.h.b16 %v463
    %v858 = vunpack.c.l.b16 %v464
    %v859 = vunpack.c.h.b16 %v464
    %v860 = vunpack.c.l.b16 %v465
    %v861 = vunpack.c.h.b16 %v465
    %v862 = vunpack.c.l.b16 %v466
    %v863 = vunpack.c.h.b16 %v466
    %v864 = vunpack.c.l.b16 %v467
    %v865 = vunpack.c.h.b16 %v467
    %v866 = vunpack.c.l.b16 %v468
    %v867 = vunpack.c.h.b16 %v468
    %v868 = vunpack.c.l.b16 %v469
    %v869 = vunpack.c.h.b16 %v469
    %v870 = vunpack.c.l.b16 %v470
    %v871 = vunpack.c.h.b16 %v470
    %v872 = vunpack.c.l.b16 %v471
    %v873 = vunpack.c.h.b16 %v471
    %v874 = vunpack.c.l.b16 %v472
    %v875 = vunpack.c.h.b16 %v472
    %v876 = vunpack.c.l.b16 %v473
    %v877 = vunpack.c.h.b16 %v473
    %v878 = vunpack.c.l.b16 %v474
    %v879 = vunpack.c.h.b16 %v474
    %v880 = vunpack.c.l.b16 %v475
    %v881 = vunpack.c.h.b16 %v475
    %v882 = vunpack.c.l.b16 %v476
    %v883 = vunpack.c.h.b16 %v476
    %v884 = vunpack.c.l.b16 %v477
    %v885 = vunpack.c.h.b16 %v477
    %v886 = vunpack.c.l.b16 %v478
    %v887 = vunpack.c.h.b16 %v478
    %v888 = vunpack.c.l.b16 %v479
    %v889 = vunpack.c.h.b16 %v479
    %v890 = vunpack.c.l.b16 %v480
    %v891 = vunpack.c.h.b16 %v480
    %v892 = vunpack.c.l.b16 %v481
    %v893 = vunpack.c.h.b16 %v481
    %v894 = vunpack.c.l.b16 %v482
    %v895 = vunpack.c.h.b16 %v482
    %v896 = vunpack.c.l.b16 %v483
    %v897 = vunpack.c.h.b16 %v483
    %v898 = vunpack.c.l.b16 %v484
    %v899 = vunpack.c.h.b16 %v484
    %v900 = vunpack.c.l.b16 %v485
    %v901 = vunpack.c.h.b16 %v485
    %v902 = vunpack.c.l.b16 %v486
    %v903 = vunpack.c.h.b16 %v486
    %v904 = vunpack.c.l.b16 %v487
    %v905 = vunpack.c.h.b16 %v487
    %v906 = vunpack.c.l.b16 %v488
    %v907 = vunpack.c.h.b16 %v488
    %v908 = vunpack.c.l.b16 %v489
    %v909 = vunpack.c.h.b16 %v489
    %v910 = vunpack.c.l.b16 %v490
    %v911 = vunpack.c.h.b16 %v490
    %v912 = vunpack.c.l.b16 %v491
    %v913 = vunpack.c.h.b16 %v491
    %v914 = vunpack.c.l.b16 %v492
    %v915 = vunpack.c.h.b16 %v492
    %v916 = vunpack.c.l.b16 %v493
    %v917 = vunpack.c.h.b16 %v493
    %v918 = vunpack.c.l.b16 %v494
    %v919 = vunpack.c.h.b16 %v494
    %v920 = vunpack.c.l.b16 %v495
    %v921 = vunpack.c.h.b16 %v495
    %v922 = vpack.c.b16 %v674, %v666
    %v923 = vpack.c.b16 %v675, %v667
    %v924 = vpack.c.b16 %v676, %v668
    %v925 = vpack.c.b16 %v677, %v669
    %v926 = vpack.c.b16 %v678, %v670
    %v927 = vpack.c.b16 %v679, %v671
    %v928 = vpack.c.b16 %v680, %v672
    %v929 = vpack.c.b16 %v681, %v673
    %v930 = vpack.c.b16 %v690, %v682
    %v931 = vpack.c.b16 %v691, %v683
    %v932 = vpack.c.b16 %v692, %v684
    %v933 = vpack.c.b16 %v693, %v685
    %v934 = vpack.c.b16 %v694, %v686
    %v935 = vpack.c.b16 %v695, %v687
    %v936 = vpack.c.b16 %v696, %v688
    %v937 = vpack.c.b16 %v697, %v689
    %v938 = vpack.c.b16 %v706, %v698
    %v939 = vpack.c.b16 %v707, %v699
    %v940 = vpack.c.b16 %v708, %v700
    %v941 = vpack.c.b16 %v709, %v701
    %v942 = vpack.c.b16 %v710, %v702
    %v943 = vpack.c.b16 %v711, %v703
    %v944 = vpack.c.b16 %v712, %v704
    %v945 = vpack.c.b16 %v713, %v705
    %v946 = vpack.c.b16 %v722, %v714
    %v947 = vpack.c.b16 %v723, %v715
    %v948 = vpack.c.b16 %v724, %v716
    %v949 = vpack.c.b16 %v725, %v717
    %v950 = vpack.c.b16 %v726, %v718
    %v951 = vpack.c.b16 %v727, %v719
    %v952 = vpack.c.b16 %v728, %v720
    %v953 = vpack.c.b16 %v729, %v721
    %v954 = vpack.c.b16 %v738, %v730
    %v955 = vpack.c.b16 %v739, %v731
    %v956 = vpack.c.b16 %v740, %v732
    %v957 = vpack.c.b16 %v741, %v733
    %v958 = vpack.c.b16 %v742, %v734
    %v959 = vpack.c.b16 %v743, %v735
    %v960 = vpack.c.b16 %v744, %v736
    %v961 = vpack.c.b16 %v745, %v737
    %v962 = vpack.c.b16 %v754, %v746
    %v963 = vpack.c.b16 %v755, %v747
    %v964 = vpack.c.b16 %v756, %v748
    %v965 = vpack.c.b16 %v757, %v749
    %v966 = vpack.c.b16 %v758, %v750
    %v967 = vpack.c.b16 %v759, %v751
    %v968 = vpack.c.b16 %v760, %v752
    %v969 = vpack.c.b16 %v761, %v753
    %v970 = vpack.c.b16 %v770, %v762
    %v971 = vpack.c.b16 %v771, %v763
    %v972 = vpack.c.b16 %v772, %v764
    %v973 = vpack.c.b16 %v773, %v765
    %v974 = vpack.c.b16 %v774, %v766
    %v975 = vpack.c.b16 %v775, %v767
    %v976 = vpack.c.b16 %v776, %v768
    %v977 = vpack.c.b16 %v777, %v769
    %v978 = vpack.c.b16 %v786, %v778
    %v979 = vpack.c.b16 %v787, %v779
    %v980 = vpack.c.b16 %v788, %v780
    %v981 = vpack.c.b16 %v789, %v781
    %v982 = vpack.c.b16 %v790, %v782
    %v983 = vpack.c.b16 %v791, %v783
    %v984 = vpack.c.b16 %v792, %v784
    %v985 = vpack.c.b16 %v793, %v785
    %v986 = vpack.c.b16 %v802, %v794
    %v987 = vpack.c.b16 %v803, %v795
    %v988 = vpack.c.b16 %v804, %v796
    %v989 = vpack.c.b16 %v805, %v797
    %v990 = vpack.c.b16 %v806, %v798
    %v991 = vpack.c.b16 %v807, %v799
    %v992 = vpack.c.b16 %v808, %v800
    %v993 = vpack.c.b16 %v809, %v801
    %v994 = vpack.c.b16 %v818, %v810
    %v995 = vpack.c.b16 %v819, %v811
    %v996 = vpack.c.b16 %v820, %v812
    %v997 = vpack.c.b16 %v821, %v813
    %v998 = vpack.c.b16 %v822, %v814
    %v999 = vpack.c.b16 %v823, %v815
    %v1000 = vpack.c.b16 %v824, %v816
    %v1001 = vpack.c.b16 %v825, %v817
    %v1002 = vpack.c.b16 %v834, %v826
    %v1003 = vpack.c.b16 %v835, %v827
    %v1004 = vpack.c.b16 %v836, %v828
    %v1005 = vpack.c.b16 %v837, %v829
    %v1006 = vpack.c.b16 %v838, %v830
    %v1007 = vpack.c.b16 %v839, %v831
    %v1008 = vpack.c.b16 %v840, %v832
    %v1009 = vpack.c.b16 %v841, %v833
    %v1010 = vpack.c.b16 %v850, %v842
    %v1011 = vpack.c.b16 %v851, %v843
    %v1012 = vpack.c.b16 %v852, %v844
    %v1013 = vpack.c.b16 %v853, %v845
    %v1014 = vpack.c.b16 %v854, %v846
    %v1015 = vpack.c.b16 %v855, %v847
    %v1016 = vpack.c.b16 %v856, %v848
    %v1017 = vpack.c.b16 %v857, %v849
    %v1018 = vpack.c.b16 %v866, %v858
    %v1019 = vpack.c.b16 %v867, %v859
    %v1020 = vpack.c.b16 %v868, %v860
    %v1021 = vpack.c.b16 %v869, %v861
    %v1022 = vpack.c.b16 %v870, %v862
    %v1023 = vpack.c.b16 %v871, %v863
    %v1024 = vpack.c.b16 %v872, %v864
    %v1025 = vpack.c.b16 %v873, %v865
    %v1026 = vpack.c.b16 %v882, %v874
    %v1027 = vpack.c.b16 %v883, %v875
    %v1028 = vpack.c.b16 %v884, %v876
    %v1029 = vpack.c.b16 %v885, %v877
    %v1030 = vpack.c.b16 %v886, %v878
    %v1031 = vpack.c.b16 %v887, %v879
    %v1032 = vpack.c.b16 %v888, %v880
    %v1033 = vpack.c.b16 %v889, %v881
    %v1034 = vpack.c.b16 %v898, %v890
    %v1035 = vpack.c.b16 %v899, %v891
    %v1036 = vpack.c.b16 %v900, %v892
    %v1037 = vpack.c.b16 %v901, %v893
    %v1038 = vpack.c.b16 %v902, %v894
    %v1039 = vpack.c.b16 %v903, %v895
    %v1040 = vpack.c.b16 %v904, %v896
    %v1041 = vpack.c.b16 %v905, %v897
    %v1042 = vpack.c.b16 %v914, %v906
    %v1043 = vpack.c.b16 %v915, %v907
    %v1044 = vpack.c.b16 %v916, %v908
    %v1045 = vpack.c.b16 %v917, %v909
    %v1046 = vpack.c.b16 %v918, %v910
    %v1047 = vpack.c.b16 %v919, %v911
    %v1048 = vpack.c.b16 %v920, %v912
    %v1049 = vpack.c.b16 %v921, %v913
    %1178 = vmatprep.subr.bf16.mxu0 %v923
    %1179 = vmatpush1.bf16.msra.mxu0 %v922
    %1180 = vmatprep.subr.bf16.mxu0 %v931
    %1181 = vmatpush1.bf16.msra.mxu0 %v930
    %1182 = vmatprep.subr.bf16.mxu0 %v939
    %1183 = vmatpush1.bf16.msra.mxu0 %v938
    %1184 = vmatprep.subr.bf16.mxu0 %v947
    %1185 = vmatpush1.bf16.msra.mxu0 %v946
    %1186 = vmatprep.subr.bf16.mxu0 %v955
    %1187 = vmatpush1.bf16.msra.mxu0 %v954
    %1188 = vmatprep.subr.bf16.mxu0 %v963
    %1189 = vmatpush1.bf16.msra.mxu0 %v962
    %1190 = vmatprep.subr.bf16.mxu0 %v971
    %1191 = vmatpush1.bf16.msra.mxu0 %v970
    %1192 = vmatprep.subr.bf16.mxu0 %v979
    %1193 = vmatpush1.bf16.msra.mxu0 %v978
    %1194 = vmatprep.subr.bf16.mxu0 %v987
    %1195 = vmatpush1.bf16.msra.mxu0 %v986
    %1196 = vmatprep.subr.bf16.mxu0 %v995
    %1197 = vmatpush1.bf16.msra.mxu0 %v994
    %1198 = vmatprep.subr.bf16.mxu0 %v1003
    %1199 = vmatpush1.bf16.msra.mxu0 %v1002
    %1200 = vmatprep.subr.bf16.mxu0 %v1011
    %1201 = vmatpush1.bf16.msra.mxu0 %v1010
    %1202 = vmatprep.subr.bf16.mxu0 %v1019
    %1203 = vmatpush1.bf16.msra.mxu0 %v1018
    %1204 = vmatprep.subr.bf16.mxu0 %v1027
    %1205 = vmatpush1.bf16.msra.mxu0 %v1026
    %1206 = vmatprep.subr.bf16.mxu0 %v1035
    %1207 = vmatpush1.bf16.msra.mxu0 %v1034
    %1208 = vmatprep.subr.bf16.mxu0 %v1043
    %1209 = vmatpush1.bf16.msra.mxu0 %v1042
    %1210 = vmatprep.mubr.bf16.mxu0 %v353
    %1211 = vmatmul.mubr.bf16.gmra.mrb[0].mxu0 %v352
    %v1212 = vpop.f32.mrb[0].mxu0
    %v1213 = vadd.f32 %v501, %v1212
    %v1214 = vpop.f32.mrb[0].mxu0
    %v1215 = vadd.f32 %v505, %v1214
    %v1216 = vpop.f32.mrb[0].mxu0
    %v1217 = vadd.f32 %v501, %v1216
    %v1218 = vpop.f32.mrb[0].mxu0
    %v1219 = vadd.f32 %v505, %v1218
    %1220 = vmatprep.mubr.bf16.mxu0 %v355
    %1221 = vmatmul.mubr.bf16.gmra.mrb[0].mxu0 %v354
    %v1222 = vpop.f32.mrb[0].mxu0
    %v1223 = vadd.f32 %v501, %v1222
    %v1224 = vpop.f32.mrb[0].mxu0
    %v1225 = vadd.f32 %v505, %v1224
    %v1226 = vpop.f32.mrb[0].mxu0
    %v1227 = vadd.f32 %v501, %v1226
    %v1228 = vpop.f32.mrb[0].mxu0
    %v1229 = vadd.f32 %v505, %v1228
    %1230 = vmatprep.mubr.bf16.mxu0 %v357
    %1231 = vmatmul.mubr.bf16.gmra.mrb[0].mxu0 %v356
    %v1232 = vpop.f32.mrb[0].mxu0
    %v1233 = vadd.f32 %v501, %v1232
    %v1234 = vpop.f32.mrb[0].mxu0
    %v1235 = vadd.f32 %v505, %v1234
    %v1236 = vpop.f32.mrb[0].mxu0
    %v1237 = vadd.f32 %v501, %v1236
    %v1238 = vpop.f32.mrb[0].mxu0
    %v1239 = vadd.f32 %v505, %v1238
    %1240 = vmatprep.mubr.bf16.mxu0 %v359
    %1241 = vmatmul.mubr.bf16.gmra.mrb[0].mxu0 %v358
    %v1242 = vpop.f32.mrb[0].mxu0
    %v1243 = vadd.f32 %v501, %v1242
    %v1244 = vpop.f32.mrb[0].mxu0
    %v1245 = vadd.f32 %v505, %v1244
    %v1246 = vpop.f32.mrb[0].mxu0
    %v1247 = vadd.f32 %v501, %v1246
    %v1248 = vpop.f32.mrb[0].mxu0
    %v1249 = vadd.f32 %v505, %v1248
    %1250 = vmatprep.mubr.bf16.mxu0 %v361
    %1251 = vmatmul.mubr.bf16.gmra.mrb[0].mxu0 %v360
    %v1252 = vpop.f32.mrb[0].mxu0
    %v1253 = vadd.f32 %v501, %v1252
    %v1254 = vpop.f32.mrb[0].mxu0
    %v1255 = vadd.f32 %v505, %v1254
    %v1256 = vpop.f32.mrb[0].mxu0
    %v1257 = vadd.f32 %v501, %v1256
    %v1258 = vpop.f32.mrb[0].mxu0
    %v1259 = vadd.f32 %v505, %v1258
    %1260 = vmatprep.mubr.bf16.mxu0 %v363
    %1261 = vmatmul.mubr.bf16.gmra.mrb[0].mxu0 %v362
    %v1262 = vpop.f32.mrb[0].mxu0
    %v1263 = vadd.f32 %v501, %v1262
    %v1264 = vpop.f32.mrb[0].mxu0
    %v1265 = vadd.f32 %v505, %v1264
    %v1266 = vpop.f32.mrb[0].mxu0
    %v1267 = vadd.f32 %v501, %v1266
    %v1268 = vpop.f32.mrb[0].mxu0
    %v1269 = vadd.f32 %v505, %v1268
    %1270 = vmatprep.mubr.bf16.mxu0 %v365
    %1271 = vmatmul.mubr.bf16.gmra.mrb[0].mxu0 %v364
    %v1272 = vpop.f32.mrb[0].mxu0
    %v1273 = vadd.f32 %v501, %v1272
    %v1274 = vpop.f32.mrb[0].mxu0
    %v1275 = vadd.f32 %v505, %v1274
    %v1276 = vpop.f32.mrb[0].mxu0
    %v1277 = vadd.f32 %v501, %v1276
    %v1278 = vpop.f32.mrb[0].mxu0
    %v1279 = vadd.f32 %v505, %v1278
    %1280 = vmatprep.mubr.bf16.mxu0 %v367
    %1281 = vmatmul.mubr.bf16.gmra.mrb[0].mxu0 %v366
    %v1282 = vpop.f32.mrb[0].mxu0
    %v1283 = vadd.f32 %v501, %v1282
    %v1284 = vpop.f32.mrb[0].mxu0
    %v1285 = vadd.f32 %v505, %v1284
    %v1286 = vpop.f32.mrb[0].mxu0
    %v1287 = vadd.f32 %v501, %v1286
    %v1288 = vpop.f32.mrb[0].mxu0
    %v1289 = vadd.f32 %v505, %v1288
    %1290 = vdwg.mxu0
    %1291 = vmatprep.subr.bf16.mxu0 %v925
    %1292 = vmatpush1.bf16.msra.mxu0 %v924
    %1293 = vmatprep.subr.bf16.mxu0 %v933
    %1294 = vmatpush1.bf16.msra.mxu0 %v932
    %1295 = vmatprep.subr.bf16.mxu0 %v941
    %1296 = vmatpush1.bf16.msra.mxu0 %v940
    %1297 = vmatprep.subr.bf16.mxu0 %v949
    %1298 = vmatpush1.bf16.msra.mxu0 %v948
    %1299 = vmatprep.subr.bf16.mxu0 %v957
    %1300 = vmatpush1.bf16.msra.mxu0 %v956
    %1301 = vmatprep.subr.bf16.mxu0 %v965
    %1302 = vmatpush1.bf16.msra.mxu0 %v964
    %1303 = vmatprep.subr.bf16.mxu0 %v973
    %1304 = vmatpush1.bf16.msra.mxu0 %v972
    %1305 = vmatprep.subr.bf16.mxu0 %v981
    %1306 = vmatpush1.bf16.msra.mxu0 %v980
    %1307 = vmatprep.subr.bf16.mxu0 %v989
    %1308 = vmatpush1.bf16.msra.mxu0 %v988
    %1309 = vmatprep.subr.bf16.mxu0 %v997
    %1310 = vmatpush1.bf16.msra.mxu0 %v996
    %1311 = vmatprep.subr.bf16.mxu0 %v1005
    %1312 = vmatpush1.bf16.msra.mxu0 %v1004
    %1313 = vmatprep.subr.bf16.mxu0 %v1013
    %1314 = vmatpush1.bf16.msra.mxu0 %v1012
    %1315 = vmatprep.subr.bf16.mxu0 %v1021
    %1316 = vmatpush1.bf16.msra.mxu0 %v1020
    %1317 = vmatprep.subr.bf16.mxu0 %v1029
    %1318 = vmatpush1.bf16.msra.mxu0 %v1028
    %1319 = vmatprep.subr.bf16.mxu0 %v1037
    %1320 = vmatpush1.bf16.msra.mxu0 %v1036
    %1321 = vmatprep.subr.bf16.mxu0 %v1045
    %1322 = vmatpush1.bf16.msra.mxu0 %v1044
    %1323 = vmatprep.mubr.bf16.mxu0 %v353
    %1324 = vmatmul.mubr.bf16.gmra.mrb[0].mxu0 %v352
    %v1325 = vpop.f32.mrb[0].mxu0
    %v1326 = vadd.f32 %v509, %v1325
    %v1327 = vpop.f32.mrb[0].mxu0
    %v1328 = vadd.f32 %v513, %v1327
    %v1329 = vpop.f32.mrb[0].mxu0
    %v1330 = vadd.f32 %v509, %v1329
    %v1331 = vpop.f32.mrb[0].mxu0
    %v1332 = vadd.f32 %v513, %v1331
    %1333 = vmatprep.mubr.bf16.mxu0 %v355
    %1334 = vmatmul.mubr.bf16.gmra.mrb[0].mxu0 %v354
    %v1335 = vpop.f32.mrb[0].mxu0
    %v1336 = vadd.f32 %v509, %v1335
    %v1337 = vpop.f32.mrb[0].mxu0
    %v1338 = vadd.f32 %v513, %v1337
    %v1339 = vpop.f32.mrb[0].mxu0
    %v1340 = vadd.f32 %v509, %v1339
    %v1341 = vpop.f32.mrb[0].mxu0
    %v1342 = vadd.f32 %v513, %v1341
    %1343 = vmatprep.mubr.bf16.mxu0 %v357
    %1344 = vmatmul.mubr.bf16.gmra.mrb[0].mxu0 %v356
    %v1345 = vpop.f32.mrb[0].mxu0
    %v1346 = vadd.f32 %v509, %v1345
    %v1347 = vpop.f32.mrb[0].mxu0
    %v1348 = vadd.f32 %v513, %v1347
    %v1349 = vpop.f32.mrb[0].mxu0
    %v1350 = vadd.f32 %v509, %v1349
    %v1351 = vpop.f32.mrb[0].mxu0
    %v1352 = vadd.f32 %v513, %v1351
    %1353 = vmatprep.mubr.bf16.mxu0 %v359
    %1354 = vmatmul.mubr.bf16.gmra.mrb[0].mxu0 %v358
    %v1355 = vpop.f32.mrb[0].mxu0
    %v1356 = vadd.f32 %v509, %v1355
    %v1357 = vpop.f32.mrb[0].mxu0
    %v1358 = vadd.f32 %v513, %v1357
    %v1359 = vpop.f32.mrb[0].mxu0
    %v1360 = vadd.f32 %v509, %v1359
    %v1361 = vpop.f32.mrb[0].mxu0
    %v1362 = vadd.f32 %v513, %v1361
    %1363 = vmatprep.mubr.bf16.mxu0 %v361
    %1364 = vmatmul.mubr.bf16.gmra.mrb[0].mxu0 %v360
    %v1365 = vpop.f32.mrb[0].mxu0
    %v1366 = vadd.f32 %v509, %v1365
    %v1367 = vpop.f32.mrb[0].mxu0
    %v1368 = vadd.f32 %v513, %v1367
    %v1369 = vpop.f32.mrb[0].mxu0
    %v1370 = vadd.f32 %v509, %v1369
    %v1371 = vpop.f32.mrb[0].mxu0
    %v1372 = vadd.f32 %v513, %v1371
    %1373 = vmatprep.mubr.bf16.mxu0 %v363
    %1374 = vmatmul.mubr.bf16.gmra.mrb[0].mxu0 %v362
    %v1375 = vpop.f32.mrb[0].mxu0
    %v1376 = vadd.f32 %v509, %v1375
    %v1377 = vpop.f32.mrb[0].mxu0
    %v1378 = vadd.f32 %v513, %v1377
    %v1379 = vpop.f32.mrb[0].mxu0
    %v1380 = vadd.f32 %v509, %v1379
    %v1381 = vpop.f32.mrb[0].mxu0
    %v1382 = vadd.f32 %v513, %v1381
    %1383 = vmatprep.mubr.bf16.mxu0 %v365
    %1384 = vmatmul.mubr.bf16.gmra.mrb[0].mxu0 %v364
    %v1385 = vpop.f32.mrb[0].mxu0
    %v1386 = vadd.f32 %v509, %v1385
    %v1387 = vpop.f32.mrb[0].mxu0
    %v1388 = vadd.f32 %v513, %v1387
    %v1389 = vpop.f32.mrb[0].mxu0
    %v1390 = vadd.f32 %v509, %v1389
    %v1391 = vpop.f32.mrb[0].mxu0
    %v1392 = vadd.f32 %v513, %v1391
    %1393 = vmatprep.mubr.bf16.mxu0 %v367
    %1394 = vmatmul.mubr.bf16.gmra.mrb[0].mxu0 %v366
    %v1395 = vpop.f32.mrb[0].mxu0
    %v1396 = vadd.f32 %v509, %v1395
    %v1397 = vpop.f32.mrb[0].mxu0
    %v1398 = vadd.f32 %v513, %v1397
    %v1399 = vpop.f32.mrb[0].mxu0
    %v1400 = vadd.f32 %v509, %v1399
    %v1401 = vpop.f32.mrb[0].mxu0
    %v1402 = vadd.f32 %v513, %v1401
    %1403 = vdwg.mxu0
    %1404 = vmatprep.subr.bf16.mxu0 %v927
    %1405 = vmatpush1.bf16.msra.mxu0 %v926
    %1406 = vmatprep.subr.bf16.mxu0 %v935
    %1407 = vmatpush1.bf16.msra.mxu0 %v934
    %1408 = vmatprep.subr.bf16.mxu0 %v943
    %1409 = vmatpush1.bf16.msra.mxu0 %v942
    %1410 = vmatprep.subr.bf16.mxu0 %v951
    %1411 = vmatpush1.bf16.msra.mxu0 %v950
    %1412 = vmatprep.subr.bf16.mxu0 %v959
    %1413 = vmatpush1.bf16.msra.mxu0 %v958
    %1414 = vmatprep.subr.bf16.mxu0 %v967
    %1415 = vmatpush1.bf16.msra.mxu0 %v966
    %1416 = vmatprep.subr.bf16.mxu0 %v975
    %1417 = vmatpush1.bf16.msra.mxu0 %v974
    %1418 = vmatprep.subr.bf16.mxu0 %v983
    %1419 = vmatpush1.bf16.msra.mxu0 %v982
    %1420 = vmatprep.subr.bf16.mxu0 %v991
    %1421 = vmatpush1.bf16.msra.mxu0 %v990
    %1422 = vmatprep.subr.bf16.mxu0 %v999
    %1423 = vmatpush1.bf16.msra.mxu0 %v998
    %1424 = vmatprep.subr.bf16.mxu0 %v1007
    %1425 = vmatpush1.bf16.msra.mxu0 %v1006
    %1426 = vmatprep.subr.bf16.mxu0 %v1015
    %1427 = vmatpush1.bf16.msra.mxu0 %v1014
    %1428 = vmatprep.subr.bf16.mxu0 %v1023
    %1429 = vmatpush1.bf16.msra.mxu0 %v1022
    %1430 = vmatprep.subr.bf16.mxu0 %v1031
    %1431 = vmatpush1.bf16.msra.mxu0 %v1030
    %1432 = vmatprep.subr.bf16.mxu0 %v1039
    %1433 = vmatpush1.bf16.msra.mxu0 %v1038
    %1434 = vmatprep.subr.bf16.mxu0 %v1047
    %1435 = vmatpush1.bf16.msra.mxu0 %v1046
    %1436 = vmatprep.mubr.bf16.mxu0 %v353
    %1437 = vmatmul.mubr.bf16.gmra.mrb[0].mxu0 %v352
    %v1438 = vpop.f32.mrb[0].mxu0
    %v1439 = vadd.f32 %v517, %v1438
    %v1440 = vpop.f32.mrb[0].mxu0
    %v1441 = vadd.f32 %v521, %v1440
    %v1442 = vpop.f32.mrb[0].mxu0
    %v1443 = vadd.f32 %v517, %v1442
    %v1444 = vpop.f32.mrb[0].mxu0
    %v1445 = vadd.f32 %v521, %v1444
    %1446 = vmatprep.mubr.bf16.mxu0 %v355
    %1447 = vmatmul.mubr.bf16.gmra.mrb[0].mxu0 %v354
    %v1448 = vpop.f32.mrb[0].mxu0
    %v1449 = vadd.f32 %v517, %v1448
    %v1450 = vpop.f32.mrb[0].mxu0
    %v1451 = vadd.f32 %v521, %v1450
    %v1452 = vpop.f32.mrb[0].mxu0
    %v1453 = vadd.f32 %v517, %v1452
    %v1454 = vpop.f32.mrb[0].mxu0
    %v1455 = vadd.f32 %v521, %v1454
    %1456 = vmatprep.mubr.bf16.mxu0 %v357
    %1457 = vmatmul.mubr.bf16.gmra.mrb[0].mxu0 %v356
    %v1458 = vpop.f32.mrb[0].mxu0
    %v1459 = vadd.f32 %v517, %v1458
    %v1460 = vpop.f32.mrb[0].mxu0
    %v1461 = vadd.f32 %v521, %v1460
    %v1462 = vpop.f32.mrb[0].mxu0
    %v1463 = vadd.f32 %v517, %v1462
    %v1464 = vpop.f32.mrb[0].mxu0
    %v1465 = vadd.f32 %v521, %v1464
    %1466 = vmatprep.mubr.bf16.mxu0 %v359
    %1467 = vmatmul.mubr.bf16.gmra.mrb[0].mxu0 %v358
    %v1468 = vpop.f32.mrb[0].mxu0
    %v1469 = vadd.f32 %v517, %v1468
    %v1470 = vpop.f32.mrb[0].mxu0
    %v1471 = vadd.f32 %v521, %v1470
    %v1472 = vpop.f32.mrb[0].mxu0
    %v1473 = vadd.f32 %v517, %v1472
    %v1474 = vpop.f32.mrb[0].mxu0
    %v1475 = vadd.f32 %v521, %v1474
    %1476 = vmatprep.mubr.bf16.mxu0 %v361
    %1477 = vmatmul.mubr.bf16.gmra.mrb[0].mxu0 %v360
    %v1478 = vpop.f32.mrb[0].mxu0
    %v1479 = vadd.f32 %v517, %v1478
    %v1480 = vpop.f32.mrb[0].mxu0
    %v1481 = vadd.f32 %v521, %v1480
    %v1482 = vpop.f32.mrb[0].mxu0
    %v1483 = vadd.f32 %v517, %v1482
    %v1484 = vpop.f32.mrb[0].mxu0
    %v1485 = vadd.f32 %v521, %v1484
    %1486 = vmatprep.mubr.bf16.mxu0 %v363
    %1487 = vmatmul.mubr.bf16.gmra.mrb[0].mxu0 %v362
    %v1488 = vpop.f32.mrb[0].mxu0
    %v1489 = vadd.f32 %v517, %v1488
    %v1490 = vpop.f32.mrb[0].mxu0
    %v1491 = vadd.f32 %v521, %v1490
    %v1492 = vpop.f32.mrb[0].mxu0
    %v1493 = vadd.f32 %v517, %v1492
    %v1494 = vpop.f32.mrb[0].mxu0
    %v1495 = vadd.f32 %v521, %v1494
    %1496 = vmatprep.mubr.bf16.mxu0 %v365
    %1497 = vmatmul.mubr.bf16.gmra.mrb[0].mxu0 %v364
    %v1498 = vpop.f32.mrb[0].mxu0
    %v1499 = vadd.f32 %v517, %v1498
    %v1500 = vpop.f32.mrb[0].mxu0
    %v1501 = vadd.f32 %v521, %v1500
    %v1502 = vpop.f32.mrb[0].mxu0
    %v1503 = vadd.f32 %v517, %v1502
    %v1504 = vpop.f32.mrb[0].mxu0
    %v1505 = vadd.f32 %v521, %v1504
    %1506 = vmatprep.mubr.bf16.mxu0 %v367
    %1507 = vmatmul.mubr.bf16.gmra.mrb[0].mxu0 %v366
    %v1508 = vpop.f32.mrb[0].mxu0
    %v1509 = vadd.f32 %v517, %v1508
    %v1510 = vpop.f32.mrb[0].mxu0
    %v1511 = vadd.f32 %v521, %v1510
    %v1512 = vpop.f32.mrb[0].mxu0
    %v1513 = vadd.f32 %v517, %v1512
    %v1514 = vpop.f32.mrb[0].mxu0
    %v1515 = vadd.f32 %v521, %v1514
    %1516 = vdwg.mxu0
    %1517 = vmatprep.subr.bf16.mxu0 %v929
    %1518 = vmatpush1.bf16.msra.mxu0 %v928
    %1519 = vmatprep.subr.bf16.mxu0 %v937
    %1520 = vmatpush1.bf16.msra.mxu0 %v936
    %1521 = vmatprep.subr.bf16.mxu0 %v945
    %1522 = vmatpush1.bf16.msra.mxu0 %v944
    %1523 = vmatprep.subr.bf16.mxu0 %v953
    %1524 = vmatpush1.bf16.msra.mxu0 %v952
    %1525 = vmatprep.subr.bf16.mxu0 %v961
    %1526 = vmatpush1.bf16.msra.mxu0 %v960
    %1527 = vmatprep.subr.bf16.mxu0 %v969
    %1528 = vmatpush1.bf16.msra.mxu0 %v968
    %1529 = vmatprep.subr.bf16.mxu0 %v977
    %1530 = vmatpush1.bf16.msra.mxu0 %v976
    %1531 = vmatprep.subr.bf16.mxu0 %v985
    %1532 = vmatpush1.bf16.msra.mxu0 %v984
    %1533 = vmatprep.subr.bf16.mxu0 %v993
    %1534 = vmatpush1.bf16.msra.mxu0 %v992
    %1535 = vmatprep.subr.bf16.mxu0 %v1001
    %1536 = vmatpush1.bf16.msra.mxu0 %v1000
    %1537 = vmatprep.subr.bf16.mxu0 %v1009
    %1538 = vmatpush1.bf16.msra.mxu0 %v1008
    %1539 = vmatprep.subr.bf16.mxu0 %v1017
    %1540 = vmatpush1.bf16.msra.mxu0 %v1016
    %1541 = vmatprep.subr.bf16.mxu0 %v1025
    %1542 = vmatpush1.bf16.msra.mxu0 %v1024
    %1543 = vmatprep.subr.bf16.mxu0 %v1033
    %1544 = vmatpush1.bf16.msra.mxu0 %v1032
    %1545 = vmatprep.subr.bf16.mxu0 %v1041
    %1546 = vmatpush1.bf16.msra.mxu0 %v1040
    %1547 = vmatprep.subr.bf16.mxu0 %v1049
    %1548 = vmatpush1.bf16.msra.mxu0 %v1048
    %1549 = vmatprep.mubr.bf16.mxu0 %v353
    %1550 = vmatmul.mubr.bf16.gmra.mrb[0].mxu0 %v352
    %v1551 = vpop.f32.mrb[0].mxu0
    %v1552 = vadd.f32 %v525, %v1551
    %v1553 = vpop.f32.mrb[0].mxu0
    %v1554 = vadd.f32 %v529, %v1553
    %v1555 = vpop.f32.mrb[0].mxu0
    %v1556 = vadd.f32 %v525, %v1555
    %v1557 = vpop.f32.mrb[0].mxu0
    %v1558 = vadd.f32 %v529, %v1557
    %1559 = vmatprep.mubr.bf16.mxu0 %v355
    %1560 = vmatmul.mubr.bf16.gmra.mrb[0].mxu0 %v354
    %v1561 = vpop.f32.mrb[0].mxu0
    %v1562 = vadd.f32 %v525, %v1561
    %v1563 = vpop.f32.mrb[0].mxu0
    %v1564 = vadd.f32 %v529, %v1563
    %v1565 = vpop.f32.mrb[0].mxu0
    %v1566 = vadd.f32 %v525, %v1565
    %v1567 = vpop.f32.mrb[0].mxu0
    %v1568 = vadd.f32 %v529, %v1567
    %1569 = vmatprep.mubr.bf16.mxu0 %v357
    %1570 = vmatmul.mubr.bf16.gmra.mrb[0].mxu0 %v356
    %v1571 = vpop.f32.mrb[0].mxu0
    %v1572 = vadd.f32 %v525, %v1571
    %v1573 = vpop.f32.mrb[0].mxu0
    %v1574 = vadd.f32 %v529, %v1573
    %v1575 = vpop.f32.mrb[0].mxu0
    %v1576 = vadd.f32 %v525, %v1575
    %v1577 = vpop.f32.mrb[0].mxu0
    %v1578 = vadd.f32 %v529, %v1577
    %1579 = vmatprep.mubr.bf16.mxu0 %v359
    %1580 = vmatmul.mubr.bf16.gmra.mrb[0].mxu0 %v358
    %v1581 = vpop.f32.mrb[0].mxu0
    %v1582 = vadd.f32 %v525, %v1581
    %v1583 = vpop.f32.mrb[0].mxu0
    %v1584 = vadd.f32 %v529, %v1583
    %v1585 = vpop.f32.mrb[0].mxu0
    %v1586 = vadd.f32 %v525, %v1585
    %v1587 = vpop.f32.mrb[0].mxu0
    %v1588 = vadd.f32 %v529, %v1587
    %1589 = vmatprep.mubr.bf16.mxu0 %v361
    %1590 = vmatmul.mubr.bf16.gmra.mrb[0].mxu0 %v360
    %v1591 = vpop.f32.mrb[0].mxu0
    %v1592 = vadd.f32 %v525, %v1591
    %v1593 = vpop.f32.mrb[0].mxu0
    %v1594 = vadd.f32 %v529, %v1593
    %v1595 = vpop.f32.mrb[0].mxu0
    %v1596 = vadd.f32 %v525, %v1595
    %v1597 = vpop.f32.mrb[0].mxu0
    %v1598 = vadd.f32 %v529, %v1597
    %1599 = vmatprep.mubr.bf16.mxu0 %v363
    %1600 = vmatmul.mubr.bf16.gmra.mrb[0].mxu0 %v362
    %v1601 = vpop.f32.mrb[0].mxu0
    %v1602 = vadd.f32 %v525, %v1601
    %v1603 = vpop.f32.mrb[0].mxu0
    %v1604 = vadd.f32 %v529, %v1603
    %v1605 = vpop.f32.mrb[0].mxu0
    %v1606 = vadd.f32 %v525, %v1605
    %v1607 = vpop.f32.mrb[0].mxu0
    %v1608 = vadd.f32 %v529, %v1607
    %1609 = vmatprep.mubr.bf16.mxu0 %v365
    %1610 = vmatmul.mubr.bf16.gmra.mrb[0].mxu0 %v364
    %v1611 = vpop.f32.mrb[0].mxu0
    %v1612 = vadd.f32 %v525, %v1611
    %v1613 = vpop.f32.mrb[0].mxu0
    %v1614 = vadd.f32 %v529, %v1613
    %v1615 = vpop.f32.mrb[0].mxu0
    %v1616 = vadd.f32 %v525, %v1615
    %v1617 = vpop.f32.mrb[0].mxu0
    %v1618 = vadd.f32 %v529, %v1617
    %1619 = vmatprep.mubr.bf16.mxu0 %v367
    %1620 = vmatmul.mubr.bf16.gmra.mrb[0].mxu0 %v366
    %v1621 = vpop.f32.mrb[0].mxu0
    %v1622 = vadd.f32 %v525, %v1621
    %v1623 = vpop.f32.mrb[0].mxu0
    %v1624 = vadd.f32 %v529, %v1623
    %v1625 = vpop.f32.mrb[0].mxu0
    %v1626 = vadd.f32 %v525, %v1625
    %v1627 = vpop.f32.mrb[0].mxu0
    %v1628 = vadd.f32 %v529, %v1627
    %1629 = vdwg.mxu0
    %v1630 = vmax.f32 %v1213, 0.0
    %v1631 = vmax.f32 %v1215, 0.0
    %v1632 = vmax.f32 %v1326, 0.0
    %v1633 = vmax.f32 %v1328, 0.0
    %v1634 = vmax.f32 %v1439, 0.0
    %v1635 = vmax.f32 %v1441, 0.0
    %v1636 = vmax.f32 %v1552, 0.0
    %v1637 = vmax.f32 %v1554, 0.0
    %v1638 = vmax.f32 %v1217, 0.0
    %v1639 = vmax.f32 %v1219, 0.0
    %v1640 = vmax.f32 %v1330, 0.0
    %v1641 = vmax.f32 %v1332, 0.0
    %v1642 = vmax.f32 %v1443, 0.0
    %v1643 = vmax.f32 %v1445, 0.0
    %v1644 = vmax.f32 %v1556, 0.0
    %v1645 = vmax.f32 %v1558, 0.0
    %v1646 = vmax.f32 %v1223, 0.0
    %v1647 = vmax.f32 %v1225, 0.0
    %v1648 = vmax.f32 %v1336, 0.0
    %v1649 = vmax.f32 %v1338, 0.0
    %v1650 = vmax.f32 %v1449, 0.0
    %v1651 = vmax.f32 %v1451, 0.0
    %v1652 = vmax.f32 %v1562, 0.0
    %v1653 = vmax.f32 %v1564, 0.0
    %v1654 = vmax.f32 %v1227, 0.0
    %v1655 = vmax.f32 %v1229, 0.0
    %v1656 = vmax.f32 %v1340, 0.0
    %v1657 = vmax.f32 %v1342, 0.0
    %v1658 = vmax.f32 %v1453, 0.0
    %v1659 = vmax.f32 %v1455, 0.0
    %v1660 = vmax.f32 %v1566, 0.0
    %v1661 = vmax.f32 %v1568, 0.0
    %v1662 = vmax.f32 %v1233, 0.0
    %v1663 = vmax.f32 %v1235, 0.0
    %v1664 = vmax.f32 %v1346, 0.0
    %v1665 = vmax.f32 %v1348, 0.0
    %v1666 = vmax.f32 %v1459, 0.0
    %v1667 = vmax.f32 %v1461, 0.0
    %v1668 = vmax.f32 %v1572, 0.0
    %v1669 = vmax.f32 %v1574, 0.0
    %v1670 = vmax.f32 %v1237, 0.0
    %v1671 = vmax.f32 %v1239, 0.0
    %v1672 = vmax.f32 %v1350, 0.0
    %v1673 = vmax.f32 %v1352, 0.0
    %v1674 = vmax.f32 %v1463, 0.0
    %v1675 = vmax.f32 %v1465, 0.0
    %v1676 = vmax.f32 %v1576, 0.0
    %v1677 = vmax.f32 %v1578, 0.0
    %v1678 = vmax.f32 %v1243, 0.0
    %v1679 = vmax.f32 %v1245, 0.0
    %v1680 = vmax.f32 %v1356, 0.0
    %v1681 = vmax.f32 %v1358, 0.0
    %v1682 = vmax.f32 %v1469, 0.0
    %v1683 = vmax.f32 %v1471, 0.0
    %v1684 = vmax.f32 %v1582, 0.0
    %v1685 = vmax.f32 %v1584, 0.0
    %v1686 = vmax.f32 %v1247, 0.0
    %v1687 = vmax.f32 %v1249, 0.0
    %v1688 = vmax.f32 %v1360, 0.0
    %v1689 = vmax.f32 %v1362, 0.0
    %v1690 = vmax.f32 %v1473, 0.0
    %v1691 = vmax.f32 %v1475, 0.0
    %v1692 = vmax.f32 %v1586, 0.0
    %v1693 = vmax.f32 %v1588, 0.0
    %v1694 = vmax.f32 %v1253, 0.0
    %v1695 = vmax.f32 %v1255, 0.0
    %v1696 = vmax.f32 %v1366, 0.0
    %v1697 = vmax.f32 %v1368, 0.0
    %v1698 = vmax.f32 %v1479, 0.0
    %v1699 = vmax.f32 %v1481, 0.0
    %v1700 = vmax.f32 %v1592, 0.0
    %v1701 = vmax.f32 %v1594, 0.0
    %v1702 = vmax.f32 %v1257, 0.0
    %v1703 = vmax.f32 %v1259, 0.0
    %v1704 = vmax.f32 %v1370, 0.0
    %v1705 = vmax.f32 %v1372, 0.0
    %v1706 = vmax.f32 %v1483, 0.0
    %v1707 = vmax.f32 %v1485, 0.0
    %v1708 = vmax.f32 %v1596, 0.0
    %v1709 = vmax.f32 %v1598, 0.0
    %v1710 = vmax.f32 %v1263, 0.0
    %v1711 = vmax.f32 %v1265, 0.0
    %v1712 = vmax.f32 %v1376, 0.0
    %v1713 = vmax.f32 %v1378, 0.0
    %v1714 = vmax.f32 %v1489, 0.0
    %v1715 = vmax.f32 %v1491, 0.0
    %v1716 = vmax.f32 %v1602, 0.0
    %v1717 = vmax.f32 %v1604, 0.0
    %v1718 = vmax.f32 %v1267, 0.0
    %v1719 = vmax.f32 %v1269, 0.0
    %v1720 = vmax.f32 %v1380, 0.0
    %v1721 = vmax.f32 %v1382, 0.0
    %v1722 = vmax.f32 %v1493, 0.0
    %v1723 = vmax.f32 %v1495, 0.0
    %v1724 = vmax.f32 %v1606, 0.0
    %v1725 = vmax.f32 %v1608, 0.0
    %v1726 = vmax.f32 %v1273, 0.0
    %v1727 = vmax.f32 %v1275, 0.0
    %v1728 = vmax.f32 %v1386, 0.0
    %v1729 = vmax.f32 %v1388, 0.0
    %v1730 = vmax.f32 %v1499, 0.0
    %v1731 = vmax.f32 %v1501, 0.0
    %v1732 = vmax.f32 %v1612, 0.0
    %v1733 = vmax.f32 %v1614, 0.0
    %v1734 = vmax.f32 %v1277, 0.0
    %v1735 = vmax.f32 %v1279, 0.0
    %v1736 = vmax.f32 %v1390, 0.0
    %v1737 = vmax.f32 %v1392, 0.0
    %v1738 = vmax.f32 %v1503, 0.0
    %v1739 = vmax.f32 %v1505, 0.0
    %v1740 = vmax.f32 %v1616, 0.0
    %v1741 = vmax.f32 %v1618, 0.0
    %v1742 = vmax.f32 %v1283, 0.0
    %v1743 = vmax.f32 %v1285, 0.0
    %v1744 = vmax.f32 %v1396, 0.0
    %v1745 = vmax.f32 %v1398, 0.0
    %v1746 = vmax.f32 %v1509, 0.0
    %v1747 = vmax.f32 %v1511, 0.0
    %v1748 = vmax.f32 %v1622, 0.0
    %v1749 = vmax.f32 %v1624, 0.0
    %v1750 = vmax.f32 %v1287, 0.0
    %v1751 = vmax.f32 %v1289, 0.0
    %v1752 = vmax.f32 %v1400, 0.0
    %v1753 = vmax.f32 %v1402, 0.0
    %v1754 = vmax.f32 %v1513, 0.0
    %v1755 = vmax.f32 %v1515, 0.0
    %v1756 = vmax.f32 %v1626, 0.0
    %v1757 = vmax.f32 %v1628, 0.0
    %v1758 = vpack.c.bf16 %v1638, %v1630
    %v1759 = vpack.c.bf16 %v1639, %v1631
    %v1760 = vpack.c.bf16 %v1640, %v1632
    %v1761 = vpack.c.bf16 %v1641, %v1633
    %v1762 = vpack.c.bf16 %v1642, %v1634
    %v1763 = vpack.c.bf16 %v1643, %v1635
    %v1764 = vpack.c.bf16 %v1644, %v1636
    %v1765 = vpack.c.bf16 %v1645, %v1637
    %v1766 = vpack.c.bf16 %v1654, %v1646
    %v1767 = vpack.c.bf16 %v1655, %v1647
    %v1768 = vpack.c.bf16 %v1656, %v1648
    %v1769 = vpack.c.bf16 %v1657, %v1649
    %v1770 = vpack.c.bf16 %v1658, %v1650
    %v1771 = vpack.c.bf16 %v1659, %v1651
    %v1772 = vpack.c.bf16 %v1660, %v1652
    %v1773 = vpack.c.bf16 %v1661, %v1653
    %v1774 = vpack.c.bf16 %v1670, %v1662
    %v1775 = vpack.c.bf16 %v1671, %v1663
    %v1776 = vpack.c.bf16 %v1672, %v1664
    %v1777 = vpack.c.bf16 %v1673, %v1665
    %v1778 = vpack.c.bf16 %v1674, %v1666
    %v1779 = vpack.c.bf16 %v1675, %v1667
    %v1780 = vpack.c.bf16 %v1676, %v1668
    %v1781 = vpack.c.bf16 %v1677, %v1669
    %v1782 = vpack.c.bf16 %v1686, %v1678
    %v1783 = vpack.c.bf16 %v1687, %v1679
    %v1784 = vpack.c.bf16 %v1688, %v1680
    %v1785 = vpack.c.bf16 %v1689, %v1681
    %v1786 = vpack.c.bf16 %v1690, %v1682
    %v1787 = vpack.c.bf16 %v1691, %v1683
    %v1788 = vpack.c.bf16 %v1692, %v1684
    %v1789 = vpack.c.bf16 %v1693, %v1685
    %v1790 = vpack.c.bf16 %v1702, %v1694
    %v1791 = vpack.c.bf16 %v1703, %v1695
    %v1792 = vpack.c.bf16 %v1704, %v1696
    %v1793 = vpack.c.bf16 %v1705, %v1697
    %v1794 = vpack.c.bf16 %v1706, %v1698
    %v1795 = vpack.c.bf16 %v1707, %v1699
    %v1796 = vpack.c.bf16 %v1708, %v1700
    %v1797 = vpack.c.bf16 %v1709, %v1701
    %v1798 = vpack.c.bf16 %v1718, %v1710
    %v1799 = vpack.c.bf16 %v1719, %v1711
    %v1800 = vpack.c.bf16 %v1720, %v1712
    %v1801 = vpack.c.bf16 %v1721, %v1713
    %v1802 = vpack.c.bf16 %v1722, %v1714
    %v1803 = vpack.c.bf16 %v1723, %v1715
    %v1804 = vpack.c.bf16 %v1724, %v1716
    %v1805 = vpack.c.bf16 %v1725, %v1717
    %v1806 = vpack.c.bf16 %v1734, %v1726
    %v1807 = vpack.c.bf16 %v1735, %v1727
    %v1808 = vpack.c.bf16 %v1736, %v1728
    %v1809 = vpack.c.bf16 %v1737, %v1729
    %v1810 = vpack.c.bf16 %v1738, %v1730
    %v1811 = vpack.c.bf16 %v1739, %v1731
    %v1812 = vpack.c.bf16 %v1740, %v1732
    %v1813 = vpack.c.bf16 %v1741, %v1733
    %v1814 = vpack.c.bf16 %v1750, %v1742
    %v1815 = vpack.c.bf16 %v1751, %v1743
    %v1816 = vpack.c.bf16 %v1752, %v1744
    %v1817 = vpack.c.bf16 %v1753, %v1745
    %v1818 = vpack.c.bf16 %v1754, %v1746
    %v1819 = vpack.c.bf16 %v1755, %v1747
    %v1820 = vpack.c.bf16 %v1756, %v1748
    %v1821 = vpack.c.bf16 %v1757, %v1749
    %v1822 = vld [vmem:[#allocation9] sm:$0xff]
    %v1823 = vld [vmem:[#allocation9 + $0x8] sm:$0xff]
    %v1824 = vld [vmem:[#allocation9 + $0x10] sm:$0xff]
    %v1825 = vld [vmem:[#allocation9 + $0x18] sm:$0xf]
    %v1826 = vld [vmem:[#allocation9 + $0x1c] sm:$0xff]
    %v1827 = vld [vmem:[#allocation9 + $0x24] sm:$0xff]
    %v1828 = vld [vmem:[#allocation9 + $0x2c] sm:$0xff]
    %v1829 = vld [vmem:[#allocation9 + $0x34] sm:$0xf]
    %v1830 = vld [vmem:[#allocation9 + $0x38] sm:$0xff]
    %v1831 = vld [vmem:[#allocation9 + $0x40] sm:$0xff]
    %v1832 = vld [vmem:[#allocation9 + $0x48] sm:$0xff]
    %v1833 = vld [vmem:[#allocation9 + $0x50] sm:$0xf]
    %v1834 = vld [vmem:[#allocation9 + $0x54] sm:$0xff]
    %v1835 = vld [vmem:[#allocation9 + $0x5c] sm:$0xff]
    %v1836 = vld [vmem:[#allocation9 + $0x64] sm:$0xff]
    %v1837 = vld [vmem:[#allocation9 + $0x6c] sm:$0xf]
    %v1838 = vld [vmem:[#allocation9 + $0x70] sm:$0xff]
    %v1839 = vld [vmem:[#allocation9 + $0x78] sm:$0xff]
    %v1840 = vld [vmem:[#allocation9 + $0x80] sm:$0xff]
    %v1841 = vld [vmem:[#allocation9 + $0x88] sm:$0xf]
    %v1842 = vld [vmem:[#allocation9 + $0x8c] sm:$0xff]
    %v1843 = vld [vmem:[#allocation9 + $0x94] sm:$0xff]
    %v1844 = vld [vmem:[#allocation9 + $0x9c] sm:$0xff]
    %v1845 = vld [vmem:[#allocation9 + $0xa4] sm:$0xf]
    %v1846 = vld [vmem:[#allocation9 + $0xa8] sm:$0xff]
    %v1847 = vld [vmem:[#allocation9 + $0xb0] sm:$0xff]
    %v1848 = vld [vmem:[#allocation9 + $0xb8] sm:$0xff]
    %v1849 = vld [vmem:[#allocation9 + $0xc0] sm:$0xf]
    %v1850 = vld [vmem:[#allocation9 + $0xc4] sm:$0xff]
    %v1851 = vld [vmem:[#allocation9 + $0xcc] sm:$0xff]
    %v1852 = vld [vmem:[#allocation9 + $0xd4] sm:$0xff]
    %v1853 = vld [vmem:[#allocation9 + $0xdc] sm:$0xf]
    %v1854 = vld [vmem:[#allocation9 + $0xe0] sm:$0xff]
    %v1855 = vld [vmem:[#allocation9 + $0xe8] sm:$0xff]
    %v1856 = vld [vmem:[#allocation9 + $0xf0] sm:$0xff]
    %v1857 = vld [vmem:[#allocation9 + $0xf8] sm:$0xf]
    %v1858 = vld [vmem:[#allocation9 + $0xfc] sm:$0xff]
    %v1859 = vld [vmem:[#allocation9 + $0x104] sm:$0xff]
    %v1860 = vld [vmem:[#allocation9 + $0x10c] sm:$0xff]
    %v1861 = vld [vmem:[#allocation9 + $0x114] sm:$0xf]
    %v1862 = vld [vmem:[#allocation9 + $0x118] sm:$0xff]
    %v1863 = vld [vmem:[#allocation9 + $0x120] sm:$0xff]
    %v1864 = vld [vmem:[#allocation9 + $0x128] sm:$0xff]
    %v1865 = vld [vmem:[#allocation9 + $0x130] sm:$0xf]
    %v1866 = vld [vmem:[#allocation9 + $0x134] sm:$0xff]
    %v1867 = vld [vmem:[#allocation9 + $0x13c] sm:$0xff]
    %v1868 = vld [vmem:[#allocation9 + $0x144] sm:$0xff]
    %v1869 = vld [vmem:[#allocation9 + $0x14c] sm:$0xf]
    %v1870 = vld [vmem:[#allocation9 + $0x150] sm:$0xff]
    %v1871 = vld [vmem:[#allocation9 + $0x158] sm:$0xff]
    %v1872 = vld [vmem:[#allocation9 + $0x160] sm:$0xff]
    %v1873 = vld [vmem:[#allocation9 + $0x168] sm:$0xf]
    %v1874 = vld [vmem:[#allocation9 + $0x16c] sm:$0xff]
    %v1875 = vld [vmem:[#allocation9 + $0x174] sm:$0xff]
    %v1876 = vld [vmem:[#allocation9 + $0x17c] sm:$0xff]
    %v1877 = vld [vmem:[#allocation9 + $0x184] sm:$0xf]
    %v1878 = vld [vmem:[#allocation9 + $0x188] sm:$0xff]
    %v1879 = vld [vmem:[#allocation9 + $0x190] sm:$0xff]
    %v1880 = vld [vmem:[#allocation9 + $0x198] sm:$0xff]
    %v1881 = vld [vmem:[#allocation9 + $0x1a0] sm:$0xf]
    %v1882 = vld [vmem:[#allocation9 + $0x1a4] sm:$0xff]
    %v1883 = vld [vmem:[#allocation9 + $0x1ac] sm:$0xff]
    %v1884 = vld [vmem:[#allocation9 + $0x1b4] sm:$0xff]
    %v1885 = vld [vmem:[#allocation9 + $0x1bc] sm:$0xf]
    %v1886 = vld [vmem:[#allocation9 + $0x1c0] sm:$0xff]
    %v1887 = vld [vmem:[#allocation9 + $0x1c8] sm:$0xff]
    %v1888 = vld [vmem:[#allocation9 + $0x1d0] sm:$0xff]
    %v1889 = vld [vmem:[#allocation9 + $0x1d8] sm:$0xf]
    %v1890 = vld [vmem:[#allocation9 + $0x1dc] sm:$0xff]
    %v1891 = vld [vmem:[#allocation9 + $0x1e4] sm:$0xff]
    %v1892 = vld [vmem:[#allocation9 + $0x1ec] sm:$0xff]
    %v1893 = vld [vmem:[#allocation9 + $0x1f4] sm:$0xf]
    %v1894 = vld [vmem:[#allocation9 + $0x1f8] sm:$0xff]
    %v1895 = vld [vmem:[#allocation9 + $0x200] sm:$0xff]
    %v1896 = vld [vmem:[#allocation9 + $0x208] sm:$0xff]
    %v1897 = vld [vmem:[#allocation9 + $0x210] sm:$0xf]
    %v1898 = vld [vmem:[#allocation9 + $0x214] sm:$0xff]
    %v1899 = vld [vmem:[#allocation9 + $0x21c] sm:$0xff]
    %v1900 = vld [vmem:[#allocation9 + $0x224] sm:$0xff]
    %v1901 = vld [vmem:[#allocation9 + $0x22c] sm:$0xf]
    %v1902 = vld [vmem:[#allocation9 + $0x230] sm:$0xff]
    %v1903 = vld [vmem:[#allocation9 + $0x238] sm:$0xff]
    %v1904 = vld [vmem:[#allocation9 + $0x240] sm:$0xff]
    %v1905 = vld [vmem:[#allocation9 + $0x248] sm:$0xf]
    %v1906 = vld [vmem:[#allocation9 + $0x24c] sm:$0xff]
    %v1907 = vld [vmem:[#allocation9 + $0x254] sm:$0xff]
    %v1908 = vld [vmem:[#allocation9 + $0x25c] sm:$0xff]
    %v1909 = vld [vmem:[#allocation9 + $0x264] sm:$0xf]
    %v1910 = vld [vmem:[#allocation9 + $0x268] sm:$0xff]
    %v1911 = vld [vmem:[#allocation9 + $0x270] sm:$0xff]
    %v1912 = vld [vmem:[#allocation9 + $0x278] sm:$0xff]
    %v1913 = vld [vmem:[#allocation9 + $0x280] sm:$0xf]
    %v1914 = vld [vmem:[#allocation9 + $0x284] sm:$0xff]
    %v1915 = vld [vmem:[#allocation9 + $0x28c] sm:$0xff]
    %v1916 = vld [vmem:[#allocation9 + $0x294] sm:$0xff]
    %v1917 = vld [vmem:[#allocation9 + $0x29c] sm:$0xf]
    %v1918 = vld [vmem:[#allocation9 + $0x2a0] sm:$0xff]
    %v1919 = vld [vmem:[#allocation9 + $0x2a8] sm:$0xff]
    %v1920 = vld [vmem:[#allocation9 + $0x2b0] sm:$0xff]
    %v1921 = vld [vmem:[#allocation9 + $0x2b8] sm:$0xf]
    %v1922 = vld [vmem:[#allocation9 + $0x2bc] sm:$0xff]
    %v1923 = vld [vmem:[#allocation9 + $0x2c4] sm:$0xff]
    %v1924 = vld [vmem:[#allocation9 + $0x2cc] sm:$0xff]
    %v1925 = vld [vmem:[#allocation9 + $0x2d4] sm:$0xf]
    %v1926 = vld [vmem:[#allocation9 + $0x2d8] sm:$0xff]
    %v1927 = vld [vmem:[#allocation9 + $0x2e0] sm:$0xff]
    %v1928 = vld [vmem:[#allocation9 + $0x2e8] sm:$0xff]
    %v1929 = vld [vmem:[#allocation9 + $0x2f0] sm:$0xf]
    %v1930 = vld [vmem:[#allocation9 + $0x2f4] sm:$0xff]
    %v1931 = vld [vmem:[#allocation9 + $0x2fc] sm:$0xff]
    %v1932 = vld [vmem:[#allocation9 + $0x304] sm:$0xff]
    %v1933 = vld [vmem:[#allocation9 + $0x30c] sm:$0xf]
    %v1934 = vld [vmem:[#allocation9 + $0x310] sm:$0xff]
    %v1935 = vld [vmem:[#allocation9 + $0x318] sm:$0xff]
    %v1936 = vld [vmem:[#allocation9 + $0x320] sm:$0xff]
    %v1937 = vld [vmem:[#allocation9 + $0x328] sm:$0xf]
    %v1938 = vld [vmem:[#allocation9 + $0x32c] sm:$0xff]
    %v1939 = vld [vmem:[#allocation9 + $0x334] sm:$0xff]
    %v1940 = vld [vmem:[#allocation9 + $0x33c] sm:$0xff]
    %v1941 = vld [vmem:[#allocation9 + $0x344] sm:$0xf]
    %v1942 = vld [vmem:[#allocation9 + $0x348] sm:$0xff]
    %v1943 = vld [vmem:[#allocation9 + $0x350] sm:$0xff]
    %v1944 = vld [vmem:[#allocation9 + $0x358] sm:$0xff]
    %v1945 = vld [vmem:[#allocation9 + $0x360] sm:$0xf]
    %v1946 = vld [vmem:[#allocation9 + $0x364] sm:$0xff]
    %v1947 = vld [vmem:[#allocation9 + $0x36c] sm:$0xff]
    %v1948 = vld [vmem:[#allocation9 + $0x374] sm:$0xff]
    %v1949 = vld [vmem:[#allocation9 + $0x37c] sm:$0xf]
    %v1950 = vld [vmem:[#allocation9 + $0x380] sm:$0xff]
    %v1951 = vld [vmem:[#allocation9 + $0x388] sm:$0xff]
    %v1952 = vld [vmem:[#allocation9 + $0x390] sm:$0xff]
    %v1953 = vld [vmem:[#allocation9 + $0x398] sm:$0xf]
    %v1954 = vld [vmem:[#allocation9 + $0x39c] sm:$0xff]
    %v1955 = vld [vmem:[#allocation9 + $0x3a4] sm:$0xff]
    %v1956 = vld [vmem:[#allocation9 + $0x3ac] sm:$0xff]
    %v1957 = vld [vmem:[#allocation9 + $0x3b4] sm:$0xf]
    %v1958 = vld [vmem:[#allocation9 + $0x3b8] sm:$0xff]
    %v1959 = vld [vmem:[#allocation9 + $0x3c0] sm:$0xff]
    %v1960 = vld [vmem:[#allocation9 + $0x3c8] sm:$0xff]
    %v1961 = vld [vmem:[#allocation9 + $0x3d0] sm:$0xf]
    %v1962 = vld [vmem:[#allocation9 + $0x3d4] sm:$0xff]
    %v1963 = vld [vmem:[#allocation9 + $0x3dc] sm:$0xff]
    %v1964 = vld [vmem:[#allocation9 + $0x3e4] sm:$0xff]
    %v1965 = vld [vmem:[#allocation9 + $0x3ec] sm:$0xf]
    %v1966 = vld [vmem:[#allocation9 + $0x3f0] sm:$0xff]
    %v1967 = vld [vmem:[#allocation9 + $0x3f8] sm:$0xff]
    %v1968 = vld [vmem:[#allocation9 + $0x400] sm:$0xff]
    %v1969 = vld [vmem:[#allocation9 + $0x408] sm:$0xf]
    %v1970 = vld [vmem:[#allocation9 + $0x40c] sm:$0xff]
    %v1971 = vld [vmem:[#allocation9 + $0x414] sm:$0xff]
    %v1972 = vld [vmem:[#allocation9 + $0x41c] sm:$0xff]
    %v1973 = vld [vmem:[#allocation9 + $0x424] sm:$0xf]
    %v1974 = vld [vmem:[#allocation9 + $0x428] sm:$0xff]
    %v1975 = vld [vmem:[#allocation9 + $0x430] sm:$0xff]
    %v1976 = vld [vmem:[#allocation9 + $0x438] sm:$0xff]
    %v1977 = vld [vmem:[#allocation9 + $0x440] sm:$0xf]
    %v1978 = vld [vmem:[#allocation9 + $0x444] sm:$0xff]
    %v1979 = vld [vmem:[#allocation9 + $0x44c] sm:$0xff]
    %v1980 = vld [vmem:[#allocation9 + $0x454] sm:$0xff]
    %v1981 = vld [vmem:[#allocation9 + $0x45c] sm:$0xf]
    %v1982 = vld [vmem:[#allocation9 + $0x460] sm:$0xff]
    %v1983 = vld [vmem:[#allocation9 + $0x468] sm:$0xff]
    %v1984 = vld [vmem:[#allocation9 + $0x470] sm:$0xff]
    %v1985 = vld [vmem:[#allocation9 + $0x478] sm:$0xf]
    %v1986 = vld [vmem:[#allocation9 + $0x47c] sm:$0xff]
    %v1987 = vld [vmem:[#allocation9 + $0x484] sm:$0xff]
    %v1988 = vld [vmem:[#allocation9 + $0x48c] sm:$0xff]
    %v1989 = vld [vmem:[#allocation9 + $0x494] sm:$0xf]
    %v1990 = vld [vmem:[#allocation9 + $0x498] sm:$0xff]
    %v1991 = vld [vmem:[#allocation9 + $0x4a0] sm:$0xff]
    %v1992 = vld [vmem:[#allocation9 + $0x4a8] sm:$0xff]
    %v1993 = vld [vmem:[#allocation9 + $0x4b0] sm:$0xf]
    %v1994 = vld [vmem:[#allocation9 + $0x4b4] sm:$0xff]
    %v1995 = vld [vmem:[#allocation9 + $0x4bc] sm:$0xff]
    %v1996 = vld [vmem:[#allocation9 + $0x4c4] sm:$0xff]
    %v1997 = vld [vmem:[#allocation9 + $0x4cc] sm:$0xf]
    %v1998 = vld [vmem:[#allocation9 + $0x4d0] sm:$0xff]
    %v1999 = vld [vmem:[#allocation9 + $0x4d8] sm:$0xff]
    %v2000 = vld [vmem:[#allocation9 + $0x4e0] sm:$0xff]
    %v2001 = vld [vmem:[#allocation9 + $0x4e8] sm:$0xf]
    %v2002 = vld [vmem:[#allocation9 + $0x4ec] sm:$0xff]
    %v2003 = vld [vmem:[#allocation9 + $0x4f4] sm:$0xff]
    %v2004 = vld [vmem:[#allocation9 + $0x4fc] sm:$0xff]
    %v2005 = vld [vmem:[#allocation9 + $0x504] sm:$0xf]
    %v2006 = vld [vmem:[#allocation9 + $0x508] sm:$0xff]
    %v2007 = vld [vmem:[#allocation9 + $0x510] sm:$0xff]
    %v2008 = vld [vmem:[#allocation9 + $0x518] sm:$0xff]
    %v2009 = vld [vmem:[#allocation9 + $0x520] sm:$0xf]
    %v2010 = vld [vmem:[#allocation9 + $0x524] sm:$0xff]
    %v2011 = vld [vmem:[#allocation9 + $0x52c] sm:$0xff]
    %v2012 = vld [vmem:[#allocation9 + $0x534] sm:$0xff]
    %v2013 = vld [vmem:[#allocation9 + $0x53c] sm:$0xf]
    %v2014 = vld [vmem:[#allocation9 + $0x540] sm:$0xff]
    %v2015 = vld [vmem:[#allocation9 + $0x548] sm:$0xff]
    %v2016 = vld [vmem:[#allocation9 + $0x550] sm:$0xff]
    %v2017 = vld [vmem:[#allocation9 + $0x558] sm:$0xf]
    %v2018 = vld [vmem:[#allocation9 + $0x55c] sm:$0xff]
    %v2019 = vld [vmem:[#allocation9 + $0x564] sm:$0xff]
    %v2020 = vld [vmem:[#allocation9 + $0x56c] sm:$0xff]
    %v2021 = vld [vmem:[#allocation9 + $0x574] sm:$0xf]
    %v2022 = vld [vmem:[#allocation9 + $0x578] sm:$0xff]
    %v2023 = vld [vmem:[#allocation9 + $0x580] sm:$0xff]
    %v2024 = vld [vmem:[#allocation9 + $0x588] sm:$0xff]
    %v2025 = vld [vmem:[#allocation9 + $0x590] sm:$0xf]
    %v2026 = vld [vmem:[#allocation9 + $0x594] sm:$0xff]
    %v2027 = vld [vmem:[#allocation9 + $0x59c] sm:$0xff]
    %v2028 = vld [vmem:[#allocation9 + $0x5a4] sm:$0xff]
    %v2029 = vld [vmem:[#allocation9 + $0x5ac] sm:$0xf]
    %v2030 = vld [vmem:[#allocation9 + $0x5b0] sm:$0xff]
    %v2031 = vld [vmem:[#allocation9 + $0x5b8] sm:$0xff]
    %v2032 = vld [vmem:[#allocation9 + $0x5c0] sm:$0xff]
    %v2033 = vld [vmem:[#allocation9 + $0x5c8] sm:$0xf]
    %v2034 = vld [vmem:[#allocation9 + $0x5cc] sm:$0xff]
    %v2035 = vld [vmem:[#allocation9 + $0x5d4] sm:$0xff]
    %v2036 = vld [vmem:[#allocation9 + $0x5dc] sm:$0xff]
    %v2037 = vld [vmem:[#allocation9 + $0x5e4] sm:$0xf]
    %v2038 = vld [vmem:[#allocation9 + $0x5e8] sm:$0xff]
    %v2039 = vld [vmem:[#allocation9 + $0x5f0] sm:$0xff]
    %v2040 = vld [vmem:[#allocation9 + $0x5f8] sm:$0xff]
    %v2041 = vld [vmem:[#allocation9 + $0x600] sm:$0xf]
    %v2042 = vld [vmem:[#allocation9 + $0x604] sm:$0xff]
    %v2043 = vld [vmem:[#allocation9 + $0x60c] sm:$0xff]
    %v2044 = vld [vmem:[#allocation9 + $0x614] sm:$0xff]
    %v2045 = vld [vmem:[#allocation9 + $0x61c] sm:$0xf]
    %v2046 = vld [vmem:[#allocation9 + $0x620] sm:$0xff]
    %v2047 = vld [vmem:[#allocation9 + $0x628] sm:$0xff]
    %v2048 = vld [vmem:[#allocation9 + $0x630] sm:$0xff]
    %v2049 = vld [vmem:[#allocation9 + $0x638] sm:$0xf]
    %v2050 = vld [vmem:[#allocation9 + $0x63c] sm:$0xff]
    %v2051 = vld [vmem:[#allocation9 + $0x644] sm:$0xff]
    %v2052 = vld [vmem:[#allocation9 + $0x64c] sm:$0xff]
    %v2053 = vld [vmem:[#allocation9 + $0x654] sm:$0xf]
    %v2054 = vld [vmem:[#allocation9 + $0x658] sm:$0xff]
    %v2055 = vld [vmem:[#allocation9 + $0x660] sm:$0xff]
    %v2056 = vld [vmem:[#allocation9 + $0x668] sm:$0xff]
    %v2057 = vld [vmem:[#allocation9 + $0x670] sm:$0xf]
    %v2058 = vld [vmem:[#allocation9 + $0x674] sm:$0xff]
    %v2059 = vld [vmem:[#allocation9 + $0x67c] sm:$0xff]
    %v2060 = vld [vmem:[#allocation9 + $0x684] sm:$0xff]
    %v2061 = vld [vmem:[#allocation9 + $0x68c] sm:$0xf]
    %v2062 = vld [vmem:[#allocation9 + $0x690] sm:$0xff]
    %v2063 = vld [vmem:[#allocation9 + $0x698] sm:$0xff]
    %v2064 = vld [vmem:[#allocation9 + $0x6a0] sm:$0xff]
    %v2065 = vld [vmem:[#allocation9 + $0x6a8] sm:$0xf]
    %v2066 = vld [vmem:[#allocation9 + $0x6ac] sm:$0xff]
    %v2067 = vld [vmem:[#allocation9 + $0x6b4] sm:$0xff]
    %v2068 = vld [vmem:[#allocation9 + $0x6bc] sm:$0xff]
    %v2069 = vld [vmem:[#allocation9 + $0x6c4] sm:$0xf]
    %v2070 = vld [vmem:[#allocation9 + $0x6c8] sm:$0xff]
    %v2071 = vld [vmem:[#allocation9 + $0x6d0] sm:$0xff]
    %v2072 = vld [vmem:[#allocation9 + $0x6d8] sm:$0xff]
    %v2073 = vld [vmem:[#allocation9 + $0x6e0] sm:$0xf]
    %v2074 = vld [vmem:[#allocation9 + $0x6e4] sm:$0xff]
    %v2075 = vld [vmem:[#allocation9 + $0x6ec] sm:$0xff]
    %v2076 = vld [vmem:[#allocation9 + $0x6f4] sm:$0xff]
    %v2077 = vld [vmem:[#allocation9 + $0x6fc] sm:$0xf]
    %v2078 = vld [vmem:[#allocation9 + $0x700] sm:$0xff]
    %v2079 = vld [vmem:[#allocation9 + $0x708] sm:$0xff]
    %v2080 = vld [vmem:[#allocation9 + $0x710] sm:$0xff]
    %v2081 = vld [vmem:[#allocation9 + $0x718] sm:$0xf]
    %v2082 = vld [vmem:[#allocation9 + $0x71c] sm:$0xff]
    %v2083 = vld [vmem:[#allocation9 + $0x724] sm:$0xff]
    %v2084 = vld [vmem:[#allocation9 + $0x72c] sm:$0xff]
    %v2085 = vld [vmem:[#allocation9 + $0x734] sm:$0xf]
    %v2086 = vld [vmem:[#allocation9 + $0x738] sm:$0xff]
    %v2087 = vld [vmem:[#allocation9 + $0x740] sm:$0xff]
    %v2088 = vld [vmem:[#allocation9 + $0x748] sm:$0xff]
    %v2089 = vld [vmem:[#allocation9 + $0x750] sm:$0xf]
    %v2090 = vld [vmem:[#allocation9 + $0x754] sm:$0xff]
    %v2091 = vld [vmem:[#allocation9 + $0x75c] sm:$0xff]
    %v2092 = vld [vmem:[#allocation9 + $0x764] sm:$0xff]
    %v2093 = vld [vmem:[#allocation9 + $0x76c] sm:$0xf]
    %v2094 = vld [vmem:[#allocation9 + $0x770] sm:$0xff]
    %v2095 = vld [vmem:[#allocation9 + $0x778] sm:$0xff]
    %v2096 = vld [vmem:[#allocation9 + $0x780] sm:$0xff]
    %v2097 = vld [vmem:[#allocation9 + $0x788] sm:$0xf]
    %v2098 = vld [vmem:[#allocation9 + $0x78c] sm:$0xff]
    %v2099 = vld [vmem:[#allocation9 + $0x794] sm:$0xff]
    %v2100 = vld [vmem:[#allocation9 + $0x79c] sm:$0xff]
    %v2101 = vld [vmem:[#allocation9 + $0x7a4] sm:$0xf]
    %v2102 = vld [vmem:[#allocation9 + $0x7a8] sm:$0xff]
    %v2103 = vld [vmem:[#allocation9 + $0x7b0] sm:$0xff]
    %v2104 = vld [vmem:[#allocation9 + $0x7b8] sm:$0xff]
    %v2105 = vld [vmem:[#allocation9 + $0x7c0] sm:$0xf]
    %v2106 = vld [vmem:[#allocation9 + $0x7c4] sm:$0xff]
    %v2107 = vld [vmem:[#allocation9 + $0x7cc] sm:$0xff]
    %v2108 = vld [vmem:[#allocation9 + $0x7d4] sm:$0xff]
    %v2109 = vld [vmem:[#allocation9 + $0x7dc] sm:$0xf]
    %v2110 = vld [vmem:[#allocation9 + $0x7e0] sm:$0xff]
    %v2111 = vld [vmem:[#allocation9 + $0x7e8] sm:$0xff]
    %v2112 = vld [vmem:[#allocation9 + $0x7f0] sm:$0xff]
    %v2113 = vld [vmem:[#allocation9 + $0x7f8] sm:$0xf]
    %v2114 = vld [vmem:[#allocation9 + $0x7fc] sm:$0xff]
    %v2115 = vld [vmem:[#allocation9 + $0x804] sm:$0xff]
    %v2116 = vld [vmem:[#allocation9 + $0x80c] sm:$0xff]
    %v2117 = vld [vmem:[#allocation9 + $0x814] sm:$0xf]
    %v2118 = vld [vmem:[#allocation9 + $0x818] sm:$0xff]
    %v2119 = vld [vmem:[#allocation9 + $0x820] sm:$0xff]
    %v2120 = vld [vmem:[#allocation9 + $0x828] sm:$0xff]
    %v2121 = vld [vmem:[#allocation9 + $0x830] sm:$0xf]
    %v2122 = vld [vmem:[#allocation9 + $0x834] sm:$0xff]
    %v2123 = vld [vmem:[#allocation9 + $0x83c] sm:$0xff]
    %v2124 = vld [vmem:[#allocation9 + $0x844] sm:$0xff]
    %v2125 = vld [vmem:[#allocation9 + $0x84c] sm:$0xf]
    %v2126 = vld [vmem:[#allocation9 + $0x850] sm:$0xff]
    %v2127 = vld [vmem:[#allocation9 + $0x858] sm:$0xff]
    %v2128 = vld [vmem:[#allocation9 + $0x860] sm:$0xff]
    %v2129 = vld [vmem:[#allocation9 + $0x868] sm:$0xf]
    %v2130 = vld [vmem:[#allocation9 + $0x86c] sm:$0xff]
    %v2131 = vld [vmem:[#allocation9 + $0x874] sm:$0xff]
    %v2132 = vld [vmem:[#allocation9 + $0x87c] sm:$0xff]
    %v2133 = vld [vmem:[#allocation9 + $0x884] sm:$0xf]
    %v2134 = vld [vmem:[#allocation9 + $0x888] sm:$0xff]
    %v2135 = vld [vmem:[#allocation9 + $0x890] sm:$0xff]
    %v2136 = vld [vmem:[#allocation9 + $0x898] sm:$0xff]
    %v2137 = vld [vmem:[#allocation9 + $0x8a0] sm:$0xf]
    %v2138 = vld [vmem:[#allocation9 + $0x8a4] sm:$0xff]
    %v2139 = vld [vmem:[#allocation9 + $0x8ac] sm:$0xff]
    %v2140 = vld [vmem:[#allocation9 + $0x8b4] sm:$0xff]
    %v2141 = vld [vmem:[#allocation9 + $0x8bc] sm:$0xf]
    %v2142 = vld [vmem:[#allocation9 + $0x8c0] sm:$0xff]
    %v2143 = vld [vmem:[#allocation9 + $0x8c8] sm:$0xff]
    %v2144 = vld [vmem:[#allocation9 + $0x8d0] sm:$0xff]
    %v2145 = vld [vmem:[#allocation9 + $0x8d8] sm:$0xf]
    %v2146 = vld [vmem:[#allocation9 + $0x8dc] sm:$0xff]
    %v2147 = vld [vmem:[#allocation9 + $0x8e4] sm:$0xff]
    %v2148 = vld [vmem:[#allocation9 + $0x8ec] sm:$0xff]
    %v2149 = vld [vmem:[#allocation9 + $0x8f4] sm:$0xf]
    %v2150 = vld [vmem:[#allocation9 + $0x8f8] sm:$0xff]
    %v2151 = vld [vmem:[#allocation9 + $0x900] sm:$0xff]
    %v2152 = vld [vmem:[#allocation9 + $0x908] sm:$0xff]
    %v2153 = vld [vmem:[#allocation9 + $0x910] sm:$0xf]
    %v2154 = vld [vmem:[#allocation9 + $0x914] sm:$0xff]
    %v2155 = vld [vmem:[#allocation9 + $0x91c] sm:$0xff]
    %v2156 = vld [vmem:[#allocation9 + $0x924] sm:$0xff]
    %v2157 = vld [vmem:[#allocation9 + $0x92c] sm:$0xf]
    %v2158 = vld [vmem:[#allocation9 + $0x930] sm:$0xff]
    %v2159 = vld [vmem:[#allocation9 + $0x938] sm:$0xff]
    %v2160 = vld [vmem:[#allocation9 + $0x940] sm:$0xff]
    %v2161 = vld [vmem:[#allocation9 + $0x948] sm:$0xf]
    %v2162 = vld [vmem:[#allocation9 + $0x94c] sm:$0xff]
    %v2163 = vld [vmem:[#allocation9 + $0x954] sm:$0xff]
    %v2164 = vld [vmem:[#allocation9 + $0x95c] sm:$0xff]
    %v2165 = vld [vmem:[#allocation9 + $0x964] sm:$0xf]
    %v2166 = vld [vmem:[#allocation9 + $0x968] sm:$0xff]
    %v2167 = vld [vmem:[#allocation9 + $0x970] sm:$0xff]
    %v2168 = vld [vmem:[#allocation9 + $0x978] sm:$0xff]
    %v2169 = vld [vmem:[#allocation9 + $0x980] sm:$0xf]
    %v2170 = vld [vmem:[#allocation9 + $0x984] sm:$0xff]
    %v2171 = vld [vmem:[#allocation9 + $0x98c] sm:$0xff]
    %v2172 = vld [vmem:[#allocation9 + $0x994] sm:$0xff]
    %v2173 = vld [vmem:[#allocation9 + $0x99c] sm:$0xf]
    %v2174 = vld [vmem:[#allocation9 + $0x9a0] sm:$0xff]
    %v2175 = vld [vmem:[#allocation9 + $0x9a8] sm:$0xff]
    %v2176 = vld [vmem:[#allocation9 + $0x9b0] sm:$0xff]
    %v2177 = vld [vmem:[#allocation9 + $0x9b8] sm:$0xf]
    %v2178 = vld [vmem:[#allocation9 + $0x9bc] sm:$0xff]
    %v2179 = vld [vmem:[#allocation9 + $0x9c4] sm:$0xff]
    %v2180 = vld [vmem:[#allocation9 + $0x9cc] sm:$0xff]
    %v2181 = vld [vmem:[#allocation9 + $0x9d4] sm:$0xf]
    %v2182 = vld [vmem:[#allocation9 + $0x9d8] sm:$0xff]
    %v2183 = vld [vmem:[#allocation9 + $0x9e0] sm:$0xff]
    %v2184 = vld [vmem:[#allocation9 + $0x9e8] sm:$0xff]
    %v2185 = vld [vmem:[#allocation9 + $0x9f0] sm:$0xf]
    %v2186 = vld [vmem:[#allocation9 + $0x9f4] sm:$0xff]
    %v2187 = vld [vmem:[#allocation9 + $0x9fc] sm:$0xff]
    %v2188 = vld [vmem:[#allocation9 + $0xa04] sm:$0xff]
    %v2189 = vld [vmem:[#allocation9 + $0xa0c] sm:$0xf]
    %v2190 = vld [vmem:[#allocation9 + $0xa10] sm:$0xff]
    %v2191 = vld [vmem:[#allocation9 + $0xa18] sm:$0xff]
    %v2192 = vld [vmem:[#allocation9 + $0xa20] sm:$0xff]
    %v2193 = vld [vmem:[#allocation9 + $0xa28] sm:$0xf]
    %v2194 = vld [vmem:[#allocation9 + $0xa2c] sm:$0xff]
    %v2195 = vld [vmem:[#allocation9 + $0xa34] sm:$0xff]
    %v2196 = vld [vmem:[#allocation9 + $0xa3c] sm:$0xff]
    %v2197 = vld [vmem:[#allocation9 + $0xa44] sm:$0xf]
    %v2198 = vld [vmem:[#allocation9 + $0xa48] sm:$0xff]
    %v2199 = vld [vmem:[#allocation9 + $0xa50] sm:$0xff]
    %v2200 = vld [vmem:[#allocation9 + $0xa58] sm:$0xff]
    %v2201 = vld [vmem:[#allocation9 + $0xa60] sm:$0xf]
    %v2202 = vld [vmem:[#allocation9 + $0xa64] sm:$0xff]
    %v2203 = vld [vmem:[#allocation9 + $0xa6c] sm:$0xff]
    %v2204 = vld [vmem:[#allocation9 + $0xa74] sm:$0xff]
    %v2205 = vld [vmem:[#allocation9 + $0xa7c] sm:$0xf]
    %v2206 = vld [vmem:[#allocation9 + $0xa80] sm:$0xff]
    %v2207 = vld [vmem:[#allocation9 + $0xa88] sm:$0xff]
    %v2208 = vld [vmem:[#allocation9 + $0xa90] sm:$0xff]
    %v2209 = vld [vmem:[#allocation9 + $0xa98] sm:$0xf]
    %v2210 = vld [vmem:[#allocation9 + $0xa9c] sm:$0xff]
    %v2211 = vld [vmem:[#allocation9 + $0xaa4] sm:$0xff]
    %v2212 = vld [vmem:[#allocation9 + $0xaac] sm:$0xff]
    %v2213 = vld [vmem:[#allocation9 + $0xab4] sm:$0xf]
    %v2214 = vld [vmem:[#allocation9 + $0xab8] sm:$0xff]
    %v2215 = vld [vmem:[#allocation9 + $0xac0] sm:$0xff]
    %v2216 = vld [vmem:[#allocation9 + $0xac8] sm:$0xff]
    %v2217 = vld [vmem:[#allocation9 + $0xad0] sm:$0xf]
    %v2218 = vld [vmem:[#allocation9 + $0xad4] sm:$0xff]
    %v2219 = vld [vmem:[#allocation9 + $0xadc] sm:$0xff]
    %v2220 = vld [vmem:[#allocation9 + $0xae4] sm:$0xff]
    %v2221 = vld [vmem:[#allocation9 + $0xaec] sm:$0xf]
    %v2222 = vld [vmem:[#allocation9 + $0xaf0] sm:$0xff]
    %v2223 = vld [vmem:[#allocation9 + $0xaf8] sm:$0xff]
    %v2224 = vld [vmem:[#allocation9 + $0xb00] sm:$0xff]
    %v2225 = vld [vmem:[#allocation9 + $0xb08] sm:$0xf]
    %v2226 = vld [vmem:[#allocation9 + $0xb0c] sm:$0xff]
    %v2227 = vld [vmem:[#allocation9 + $0xb14] sm:$0xff]
    %v2228 = vld [vmem:[#allocation9 + $0xb1c] sm:$0xff]
    %v2229 = vld [vmem:[#allocation9 + $0xb24] sm:$0xf]
    %v2230 = vld [vmem:[#allocation9 + $0xb28] sm:$0xff]
    %v2231 = vld [vmem:[#allocation9 + $0xb30] sm:$0xff]
    %v2232 = vld [vmem:[#allocation9 + $0xb38] sm:$0xff]
    %v2233 = vld [vmem:[#allocation9 + $0xb40] sm:$0xf]
    %v2234 = vld [vmem:[#allocation9 + $0xb44] sm:$0xff]
    %v2235 = vld [vmem:[#allocation9 + $0xb4c] sm:$0xff]
    %v2236 = vld [vmem:[#allocation9 + $0xb54] sm:$0xff]
    %v2237 = vld [vmem:[#allocation9 + $0xb5c] sm:$0xf]
    %v2238 = vld [vmem:[#allocation9 + $0xb60] sm:$0xff]
    %v2239 = vld [vmem:[#allocation9 + $0xb68] sm:$0xff]
    %v2240 = vld [vmem:[#allocation9 + $0xb70] sm:$0xff]
    %v2241 = vld [vmem:[#allocation9 + $0xb78] sm:$0xf]
    %v2242 = vld [vmem:[#allocation9 + $0xb7c] sm:$0xff]
    %v2243 = vld [vmem:[#allocation9 + $0xb84] sm:$0xff]
    %v2244 = vld [vmem:[#allocation9 + $0xb8c] sm:$0xff]
    %v2245 = vld [vmem:[#allocation9 + $0xb94] sm:$0xf]
    %v2246 = vld [vmem:[#allocation9 + $0xb98] sm:$0xff]
    %v2247 = vld [vmem:[#allocation9 + $0xba0] sm:$0xff]
    %v2248 = vld [vmem:[#allocation9 + $0xba8] sm:$0xff]
    %v2249 = vld [vmem:[#allocation9 + $0xbb0] sm:$0xf]
    %v2250 = vld [vmem:[#allocation9 + $0xbb4] sm:$0xff]
    %v2251 = vld [vmem:[#allocation9 + $0xbbc] sm:$0xff]
    %v2252 = vld [vmem:[#allocation9 + $0xbc4] sm:$0xff]
    %v2253 = vld [vmem:[#allocation9 + $0xbcc] sm:$0xf]
    %v2254 = vld [vmem:[#allocation9 + $0xbd0] sm:$0xff]
    %v2255 = vld [vmem:[#allocation9 + $0xbd8] sm:$0xff]
    %v2256 = vld [vmem:[#allocation9 + $0xbe0] sm:$0xff]
    %v2257 = vld [vmem:[#allocation9 + $0xbe8] sm:$0xf]
    %v2258 = vld [vmem:[#allocation9 + $0xbec] sm:$0xff]
    %v2259 = vld [vmem:[#allocation9 + $0xbf4] sm:$0xff]
    %v2260 = vld [vmem:[#allocation9 + $0xbfc] sm:$0xff]
    %v2261 = vld [vmem:[#allocation9 + $0xc04] sm:$0xf]
    %v2262 = vld [vmem:[#allocation9 + $0xc08] sm:$0xff]
    %v2263 = vld [vmem:[#allocation9 + $0xc10] sm:$0xff]
    %v2264 = vld [vmem:[#allocation9 + $0xc18] sm:$0xff]
    %v2265 = vld [vmem:[#allocation9 + $0xc20] sm:$0xf]
    %v2266 = vld [vmem:[#allocation9 + $0xc24] sm:$0xff]
    %v2267 = vld [vmem:[#allocation9 + $0xc2c] sm:$0xff]
    %v2268 = vld [vmem:[#allocation9 + $0xc34] sm:$0xff]
    %v2269 = vld [vmem:[#allocation9 + $0xc3c] sm:$0xf]
    %v2270 = vld [vmem:[#allocation9 + $0xc40] sm:$0xff]
    %v2271 = vld [vmem:[#allocation9 + $0xc48] sm:$0xff]
    %v2272 = vld [vmem:[#allocation9 + $0xc50] sm:$0xff]
    %v2273 = vld [vmem:[#allocation9 + $0xc58] sm:$0xf]
    %v2274 = vld [vmem:[#allocation9 + $0xc5c] sm:$0xff]
    %v2275 = vld [vmem:[#allocation9 + $0xc64] sm:$0xff]
    %v2276 = vld [vmem:[#allocation9 + $0xc6c] sm:$0xff]
    %v2277 = vld [vmem:[#allocation9 + $0xc74] sm:$0xf]
    %v2278 = vld [vmem:[#allocation9 + $0xc78] sm:$0xff]
    %v2279 = vld [vmem:[#allocation9 + $0xc80] sm:$0xff]
    %v2280 = vld [vmem:[#allocation9 + $0xc88] sm:$0xff]
    %v2281 = vld [vmem:[#allocation9 + $0xc90] sm:$0xf]
    %v2282 = vld [vmem:[#allocation9 + $0xc94] sm:$0xff]
    %v2283 = vld [vmem:[#allocation9 + $0xc9c] sm:$0xff]
    %v2284 = vld [vmem:[#allocation9 + $0xca4] sm:$0xff]
    %v2285 = vld [vmem:[#allocation9 + $0xcac] sm:$0xf]
    %v2286 = vld [vmem:[#allocation9 + $0xcb0] sm:$0xff]
    %v2287 = vld [vmem:[#allocation9 + $0xcb8] sm:$0xff]
    %v2288 = vld [vmem:[#allocation9 + $0xcc0] sm:$0xff]
    %v2289 = vld [vmem:[#allocation9 + $0xcc8] sm:$0xf]
    %v2290 = vld [vmem:[#allocation9 + $0xccc] sm:$0xff]
    %v2291 = vld [vmem:[#allocation9 + $0xcd4] sm:$0xff]
    %v2292 = vld [vmem:[#allocation9 + $0xcdc] sm:$0xff]
    %v2293 = vld [vmem:[#allocation9 + $0xce4] sm:$0xf]
    %v2294 = vld [vmem:[#allocation9 + $0xce8] sm:$0xff]
    %v2295 = vld [vmem:[#allocation9 + $0xcf0] sm:$0xff]
    %v2296 = vld [vmem:[#allocation9 + $0xcf8] sm:$0xff]
    %v2297 = vld [vmem:[#allocation9 + $0xd00] sm:$0xf]
    %v2298 = vld [vmem:[#allocation9 + $0xd04] sm:$0xff]
    %v2299 = vld [vmem:[#allocation9 + $0xd0c] sm:$0xff]
    %v2300 = vld [vmem:[#allocation9 + $0xd14] sm:$0xff]
    %v2301 = vld [vmem:[#allocation9 + $0xd1c] sm:$0xf]
    %v2302 = vld [vmem:[#allocation9 + $0xd20] sm:$0xff]
    %v2303 = vld [vmem:[#allocation9 + $0xd28] sm:$0xff]
    %v2304 = vld [vmem:[#allocation9 + $0xd30] sm:$0xff]
    %v2305 = vld [vmem:[#allocation9 + $0xd38] sm:$0xf]
    %v2306 = vld [vmem:[#allocation9 + $0xd3c] sm:$0xff]
    %v2307 = vld [vmem:[#allocation9 + $0xd44] sm:$0xff]
    %v2308 = vld [vmem:[#allocation9 + $0xd4c] sm:$0xff]
    %v2309 = vld [vmem:[#allocation9 + $0xd54] sm:$0xf]
    %v2310 = vld [vmem:[#allocation9 + $0xd58] sm:$0xff]
    %v2311 = vld [vmem:[#allocation9 + $0xd60] sm:$0xff]
    %v2312 = vld [vmem:[#allocation9 + $0xd68] sm:$0xff]
    %v2313 = vld [vmem:[#allocation9 + $0xd70] sm:$0xf]
    %v2314 = vld [vmem:[#allocation9 + $0xd74] sm:$0xff]
    %v2315 = vld [vmem:[#allocation9 + $0xd7c] sm:$0xff]
    %v2316 = vld [vmem:[#allocation9 + $0xd84] sm:$0xff]
    %v2317 = vld [vmem:[#allocation9 + $0xd8c] sm:$0xf]
    %v2318 = vld [vmem:[#allocation9 + $0xd90] sm:$0xff]
    %v2319 = vld [vmem:[#allocation9 + $0xd98] sm:$0xff]
    %v2320 = vld [vmem:[#allocation9 + $0xda0] sm:$0xff]
    %v2321 = vld [vmem:[#allocation9 + $0xda8] sm:$0xf]
    %v2322 = vld [vmem:[#allocation9 + $0xdac] sm:$0xff]
    %v2323 = vld [vmem:[#allocation9 + $0xdb4] sm:$0xff]
    %v2324 = vld [vmem:[#allocation9 + $0xdbc] sm:$0xff]
    %v2325 = vld [vmem:[#allocation9 + $0xdc4] sm:$0xf]
    %v2326 = vld [vmem:[#allocation9 + $0xdc8] sm:$0xff]
    %v2327 = vld [vmem:[#allocation9 + $0xdd0] sm:$0xff]
    %v2328 = vld [vmem:[#allocation9 + $0xdd8] sm:$0xff]
    %v2329 = vld [vmem:[#allocation9 + $0xde0] sm:$0xf]
    %v2330 = vld [vmem:[#allocation9 + $0xde4] sm:$0xff]
    %v2331 = vld [vmem:[#allocation9 + $0xdec] sm:$0xff]
    %v2332 = vld [vmem:[#allocation9 + $0xdf4] sm:$0xff]
    %v2333 = vld [vmem:[#allocation9 + $0xdfc] sm:$0xf]
    %v2334 = vld [vmem:[#allocation10] sm:$0xff]
    %v2336 = vlaneseq
    %v2337 = vshrl.u32 %v2336, 7
    %v2338 = vsub.s32 0, %v2337
    %v2339 = vrot.slane %v2334, %v2338
    %v2340 = vlaneseq
    %v2341 = vshrl.u32 %v2340, 7
    %v2342 = vsub.s32 1, %v2341
    %v2343 = vrot.slane %v2334, %v2342
    %v2344 = vlaneseq
    %v2345 = vshrl.u32 %v2344, 7
    %v2346 = vsub.s32 2, %v2345
    %v2347 = vrot.slane %v2334, %v2346
    %v2348 = vlaneseq
    %v2349 = vshrl.u32 %v2348, 7
    %v2350 = vsub.s32 3, %v2349
    %v2351 = vrot.slane %v2334, %v2350
    %v2352 = vlaneseq
    %v2353 = vshrl.u32 %v2352, 7
    %v2354 = vsub.s32 4, %v2353
    %v2355 = vrot.slane %v2334, %v2354
    %v2356 = vlaneseq
    %v2357 = vshrl.u32 %v2356, 7
    %v2358 = vsub.s32 5, %v2357
    %v2359 = vrot.slane %v2334, %v2358
    %v2360 = vlaneseq
    %v2361 = vshrl.u32 %v2360, 7
    %v2362 = vsub.s32 6, %v2361
    %v2363 = vrot.slane %v2334, %v2362
    %v2883 = vunpack.c.l.b16 %v1822
    %v2884 = vunpack.c.h.b16 %v1822
    %v2885 = vunpack.c.l.b16 %v1823
    %v2886 = vunpack.c.h.b16 %v1823
    %v2887 = vunpack.c.l.b16 %v1824
    %v2888 = vunpack.c.h.b16 %v1824
    %v2889 = vunpack.c.l.b16 %v1825
    %v2890 = vunpack.c.l.b16 %v1826
    %v2891 = vunpack.c.h.b16 %v1826
    %v2892 = vunpack.c.l.b16 %v1827
    %v2893 = vunpack.c.h.b16 %v1827
    %v2894 = vunpack.c.l.b16 %v1828
    %v2895 = vunpack.c.h.b16 %v1828
    %v2896 = vunpack.c.l.b16 %v1829
    %v2897 = vunpack.c.l.b16 %v1830
    %v2898 = vunpack.c.h.b16 %v1830
    %v2899 = vunpack.c.l.b16 %v1831
    %v2900 = vunpack.c.h.b16 %v1831
    %v2901 = vunpack.c.l.b16 %v1832
    %v2902 = vunpack.c.h.b16 %v1832
    %v2903 = vunpack.c.l.b16 %v1833
    %v2904 = vunpack.c.l.b16 %v1834
    %v2905 = vunpack.c.h.b16 %v1834
    %v2906 = vunpack.c.l.b16 %v1835
    %v2907 = vunpack.c.h.b16 %v1835
    %v2908 = vunpack.c.l.b16 %v1836
    %v2909 = vunpack.c.h.b16 %v1836
    %v2910 = vunpack.c.l.b16 %v1837
    %v2911 = vunpack.c.l.b16 %v1838
    %v2912 = vunpack.c.h.b16 %v1838
    %v2913 = vunpack.c.l.b16 %v1839
    %v2914 = vunpack.c.h.b16 %v1839
    %v2915 = vunpack.c.l.b16 %v1840
    %v2916 = vunpack.c.h.b16 %v1840
    %v2917 = vunpack.c.l.b16 %v1841
    %v2918 = vunpack.c.l.b16 %v1842
    %v2919 = vunpack.c.h.b16 %v1842
    %v2920 = vunpack.c.l.b16 %v1843
    %v2921 = vunpack.c.h.b16 %v1843
    %v2922 = vunpack.c.l.b16 %v1844
    %v2923 = vunpack.c.h.b16 %v1844
    %v2924 = vunpack.c.l.b16 %v1845
    %v2925 = vunpack.c.l.b16 %v1846
    %v2926 = vunpack.c.h.b16 %v1846
    %v2927 = vunpack.c.l.b16 %v1847
    %v2928 = vunpack.c.h.b16 %v1847
    %v2929 = vunpack.c.l.b16 %v1848
    %v2930 = vunpack.c.h.b16 %v1848
    %v2931 = vunpack.c.l.b16 %v1849
    %v2932 = vunpack.c.l.b16 %v1850
    %v2933 = vunpack.c.h.b16 %v1850
    %v2934 = vunpack.c.l.b16 %v1851
    %v2935 = vunpack.c.h.b16 %v1851
    %v2936 = vunpack.c.l.b16 %v1852
    %v2937 = vunpack.c.h.b16 %v1852
    %v2938 = vunpack.c.l.b16 %v1853
    %v2939 = vunpack.c.l.b16 %v1854
    %v2940 = vunpack.c.h.b16 %v1854
    %v2941 = vunpack.c.l.b16 %v1855
    %v2942 = vunpack.c.h.b16 %v1855
    %v2943 = vunpack.c.l.b16 %v1856
    %v2944 = vunpack.c.h.b16 %v1856
    %v2945 = vunpack.c.l.b16 %v1857
    %v2946 = vunpack.c.l.b16 %v1858
    %v2947 = vunpack.c.h.b16 %v1858
    %v2948 = vunpack.c.l.b16 %v1859
    %v2949 = vunpack.c.h.b16 %v1859
    %v2950 = vunpack.c.l.b16 %v1860
    %v2951 = vunpack.c.h.b16 %v1860
    %v2952 = vunpack.c.l.b16 %v1861
    %v2953 = vunpack.c.l.b16 %v1862
    %v2954 = vunpack.c.h.b16 %v1862
    %v2955 = vunpack.c.l.b16 %v1863
    %v2956 = vunpack.c.h.b16 %v1863
    %v2957 = vunpack.c.l.b16 %v1864
    %v2958 = vunpack.c.h.b16 %v1864
    %v2959 = vunpack.c.l.b16 %v1865
    %v2960 = vunpack.c.l.b16 %v1866
    %v2961 = vunpack.c.h.b16 %v1866
    %v2962 = vunpack.c.l.b16 %v1867
    %v2963 = vunpack.c.h.b16 %v1867
    %v2964 = vunpack.c.l.b16 %v1868
    %v2965 = vunpack.c.h.b16 %v1868
    %v2966 = vunpack.c.l.b16 %v1869
    %v2967 = vunpack.c.l.b16 %v1870
    %v2968 = vunpack.c.h.b16 %v1870
    %v2969 = vunpack.c.l.b16 %v1871
    %v2970 = vunpack.c.h.b16 %v1871
    %v2971 = vunpack.c.l.b16 %v1872
    %v2972 = vunpack.c.h.b16 %v1872
    %v2973 = vunpack.c.l.b16 %v1873
    %v2974 = vunpack.c.l.b16 %v1874
    %v2975 = vunpack.c.h.b16 %v1874
    %v2976 = vunpack.c.l.b16 %v1875
    %v2977 = vunpack.c.h.b16 %v1875
    %v2978 = vunpack.c.l.b16 %v1876
    %v2979 = vunpack.c.h.b16 %v1876
    %v2980 = vunpack.c.l.b16 %v1877
    %v2981 = vunpack.c.l.b16 %v1878
    %v2982 = vunpack.c.h.b16 %v1878
    %v2983 = vunpack.c.l.b16 %v1879
    %v2984 = vunpack.c.h.b16 %v1879
    %v2985 = vunpack.c.l.b16 %v1880
    %v2986 = vunpack.c.h.b16 %v1880
    %v2987 = vunpack.c.l.b16 %v1881
    %v2988 = vunpack.c.l.b16 %v1882
    %v2989 = vunpack.c.h.b16 %v1882
    %v2990 = vunpack.c.l.b16 %v1883
    %v2991 = vunpack.c.h.b16 %v1883
    %v2992 = vunpack.c.l.b16 %v1884
    %v2993 = vunpack.c.h.b16 %v1884
    %v2994 = vunpack.c.l.b16 %v1885
    %v2995 = vunpack.c.l.b16 %v1886
    %v2996 = vunpack.c.h.b16 %v1886
    %v2997 = vunpack.c.l.b16 %v1887
    %v2998 = vunpack.c.h.b16 %v1887
    %v2999 = vunpack.c.l.b16 %v1888
    %v3000 = vunpack.c.h.b16 %v1888
    %v3001 = vunpack.c.l.b16 %v1889
    %v3002 = vunpack.c.l.b16 %v1890
    %v3003 = vunpack.c.h.b16 %v1890
    %v3004 = vunpack.c.l.b16 %v1891
    %v3005 = vunpack.c.h.b16 %v1891
    %v3006 = vunpack.c.l.b16 %v1892
    %v3007 = vunpack.c.h.b16 %v1892
    %v3008 = vunpack.c.l.b16 %v1893
    %v3009 = vunpack.c.l.b16 %v1894
    %v3010 = vunpack.c.h.b16 %v1894
    %v3011 = vunpack.c.l.b16 %v1895
    %v3012 = vunpack.c.h.b16 %v1895
    %v3013 = vunpack.c.l.b16 %v1896
    %v3014 = vunpack.c.h.b16 %v1896
    %v3015 = vunpack.c.l.b16 %v1897
    %v3016 = vunpack.c.l.b16 %v1898
    %v3017 = vunpack.c.h.b16 %v1898
    %v3018 = vunpack.c.l.b16 %v1899
    %v3019 = vunpack.c.h.b16 %v1899
    %v3020 = vunpack.c.l.b16 %v1900
    %v3021 = vunpack.c.h.b16 %v1900
    %v3022 = vunpack.c.l.b16 %v1901
    %v3023 = vunpack.c.l.b16 %v1902
    %v3024 = vunpack.c.h.b16 %v1902
    %v3025 = vunpack.c.l.b16 %v1903
    %v3026 = vunpack.c.h.b16 %v1903
    %v3027 = vunpack.c.l.b16 %v1904
    %v3028 = vunpack.c.h.b16 %v1904
    %v3029 = vunpack.c.l.b16 %v1905
    %v3030 = vunpack.c.l.b16 %v1906
    %v3031 = vunpack.c.h.b16 %v1906
    %v3032 = vunpack.c.l.b16 %v1907
    %v3033 = vunpack.c.h.b16 %v1907
    %v3034 = vunpack.c.l.b16 %v1908
    %v3035 = vunpack.c.h.b16 %v1908
    %v3036 = vunpack.c.l.b16 %v1909
    %v3037 = vunpack.c.l.b16 %v1910
    %v3038 = vunpack.c.h.b16 %v1910
    %v3039 = vunpack.c.l.b16 %v1911
    %v3040 = vunpack.c.h.b16 %v1911
    %v3041 = vunpack.c.l.b16 %v1912
    %v3042 = vunpack.c.h.b16 %v1912
    %v3043 = vunpack.c.l.b16 %v1913
    %v3044 = vunpack.c.l.b16 %v1914
    %v3045 = vunpack.c.h.b16 %v1914
    %v3046 = vunpack.c.l.b16 %v1915
    %v3047 = vunpack.c.h.b16 %v1915
    %v3048 = vunpack.c.l.b16 %v1916
    %v3049 = vunpack.c.h.b16 %v1916
    %v3050 = vunpack.c.l.b16 %v1917
    %v3051 = vunpack.c.l.b16 %v1918
    %v3052 = vunpack.c.h.b16 %v1918
    %v3053 = vunpack.c.l.b16 %v1919
    %v3054 = vunpack.c.h.b16 %v1919
    %v3055 = vunpack.c.l.b16 %v1920
    %v3056 = vunpack.c.h.b16 %v1920
    %v3057 = vunpack.c.l.b16 %v1921
    %v3058 = vunpack.c.l.b16 %v1922
    %v3059 = vunpack.c.h.b16 %v1922
    %v3060 = vunpack.c.l.b16 %v1923
    %v3061 = vunpack.c.h.b16 %v1923
    %v3062 = vunpack.c.l.b16 %v1924
    %v3063 = vunpack.c.h.b16 %v1924
    %v3064 = vunpack.c.l.b16 %v1925
    %v3065 = vunpack.c.l.b16 %v1926
    %v3066 = vunpack.c.h.b16 %v1926
    %v3067 = vunpack.c.l.b16 %v1927
    %v3068 = vunpack.c.h.b16 %v1927
    %v3069 = vunpack.c.l.b16 %v1928
    %v3070 = vunpack.c.h.b16 %v1928
    %v3071 = vunpack.c.l.b16 %v1929
    %v3072 = vunpack.c.l.b16 %v1930
    %v3073 = vunpack.c.h.b16 %v1930
    %v3074 = vunpack.c.l.b16 %v1931
    %v3075 = vunpack.c.h.b16 %v1931
    %v3076 = vunpack.c.l.b16 %v1932
    %v3077 = vunpack.c.h.b16 %v1932
    %v3078 = vunpack.c.l.b16 %v1933
    %v3079 = vunpack.c.l.b16 %v1934
    %v3080 = vunpack.c.h.b16 %v1934
    %v3081 = vunpack.c.l.b16 %v1935
    %v3082 = vunpack.c.h.b16 %v1935
    %v3083 = vunpack.c.l.b16 %v1936
    %v3084 = vunpack.c.h.b16 %v1936
    %v3085 = vunpack.c.l.b16 %v1937
    %v3086 = vunpack.c.l.b16 %v1938
    %v3087 = vunpack.c.h.b16 %v1938
    %v3088 = vunpack.c.l.b16 %v1939
    %v3089 = vunpack.c.h.b16 %v1939
    %v3090 = vunpack.c.l.b16 %v1940
    %v3091 = vunpack.c.h.b16 %v1940
    %v3092 = vunpack.c.l.b16 %v1941
    %v3093 = vunpack.c.l.b16 %v1942
    %v3094 = vunpack.c.h.b16 %v1942
    %v3095 = vunpack.c.l.b16 %v1943
    %v3096 = vunpack.c.h.b16 %v1943
    %v3097 = vunpack.c.l.b16 %v1944
    %v3098 = vunpack.c.h.b16 %v1944
    %v3099 = vunpack.c.l.b16 %v1945
    %v3100 = vunpack.c.l.b16 %v1946
    %v3101 = vunpack.c.h.b16 %v1946
    %v3102 = vunpack.c.l.b16 %v1947
    %v3103 = vunpack.c.h.b16 %v1947
    %v3104 = vunpack.c.l.b16 %v1948
    %v3105 = vunpack.c.h.b16 %v1948
    %v3106 = vunpack.c.l.b16 %v1949
    %v3107 = vunpack.c.l.b16 %v1950
    %v3108 = vunpack.c.h.b16 %v1950
    %v3109 = vunpack.c.l.b16 %v1951
    %v3110 = vunpack.c.h.b16 %v1951
    %v3111 = vunpack.c.l.b16 %v1952
    %v3112 = vunpack.c.h.b16 %v1952
    %v3113 = vunpack.c.l.b16 %v1953
    %v3114 = vunpack.c.l.b16 %v1954
    %v3115 = vunpack.c.h.b16 %v1954
    %v3116 = vunpack.c.l.b16 %v1955
    %v3117 = vunpack.c.h.b16 %v1955
    %v3118 = vunpack.c.l.b16 %v1956
    %v3119 = vunpack.c.h.b16 %v1956
    %v3120 = vunpack.c.l.b16 %v1957
    %v3121 = vunpack.c.l.b16 %v1958
    %v3122 = vunpack.c.h.b16 %v1958
    %v3123 = vunpack.c.l.b16 %v1959
    %v3124 = vunpack.c.h.b16 %v1959
    %v3125 = vunpack.c.l.b16 %v1960
    %v3126 = vunpack.c.h.b16 %v1960
    %v3127 = vunpack.c.l.b16 %v1961
    %v3128 = vunpack.c.l.b16 %v1962
    %v3129 = vunpack.c.h.b16 %v1962
    %v3130 = vunpack.c.l.b16 %v1963
    %v3131 = vunpack.c.h.b16 %v1963
    %v3132 = vunpack.c.l.b16 %v1964
    %v3133 = vunpack.c.h.b16 %v1964
    %v3134 = vunpack.c.l.b16 %v1965
    %v3135 = vunpack.c.l.b16 %v1966
    %v3136 = vunpack.c.h.b16 %v1966
    %v3137 = vunpack.c.l.b16 %v1967
    %v3138 = vunpack.c.h.b16 %v1967
    %v3139 = vunpack.c.l.b16 %v1968
    %v3140 = vunpack.c.h.b16 %v1968
    %v3141 = vunpack.c.l.b16 %v1969
    %v3142 = vunpack.c.l.b16 %v1970
    %v3143 = vunpack.c.h.b16 %v1970
    %v3144 = vunpack.c.l.b16 %v1971
    %v3145 = vunpack.c.h.b16 %v1971
    %v3146 = vunpack.c.l.b16 %v1972
    %v3147 = vunpack.c.h.b16 %v1972
    %v3148 = vunpack.c.l.b16 %v1973
    %v3149 = vunpack.c.l.b16 %v1974
    %v3150 = vunpack.c.h.b16 %v1974
    %v3151 = vunpack.c.l.b16 %v1975
    %v3152 = vunpack.c.h.b16 %v1975
    %v3153 = vunpack.c.l.b16 %v1976
    %v3154 = vunpack.c.h.b16 %v1976
    %v3155 = vunpack.c.l.b16 %v1977
    %v3156 = vunpack.c.l.b16 %v1978
    %v3157 = vunpack.c.h.b16 %v1978
    %v3158 = vunpack.c.l.b16 %v1979
    %v3159 = vunpack.c.h.b16 %v1979
    %v3160 = vunpack.c.l.b16 %v1980
    %v3161 = vunpack.c.h.b16 %v1980
    %v3162 = vunpack.c.l.b16 %v1981
    %v3163 = vunpack.c.l.b16 %v1982
    %v3164 = vunpack.c.h.b16 %v1982
    %v3165 = vunpack.c.l.b16 %v1983
    %v3166 = vunpack.c.h.b16 %v1983
    %v3167 = vunpack.c.l.b16 %v1984
    %v3168 = vunpack.c.h.b16 %v1984
    %v3169 = vunpack.c.l.b16 %v1985
    %v3170 = vunpack.c.l.b16 %v1986
    %v3171 = vunpack.c.h.b16 %v1986
    %v3172 = vunpack.c.l.b16 %v1987
    %v3173 = vunpack.c.h.b16 %v1987
    %v3174 = vunpack.c.l.b16 %v1988
    %v3175 = vunpack.c.h.b16 %v1988
    %v3176 = vunpack.c.l.b16 %v1989
    %v3177 = vunpack.c.l.b16 %v1990
    %v3178 = vunpack.c.h.b16 %v1990
    %v3179 = vunpack.c.l.b16 %v1991
    %v3180 = vunpack.c.h.b16 %v1991
    %v3181 = vunpack.c.l.b16 %v1992
    %v3182 = vunpack.c.h.b16 %v1992
    %v3183 = vunpack.c.l.b16 %v1993
    %v3184 = vunpack.c.l.b16 %v1994
    %v3185 = vunpack.c.h.b16 %v1994
    %v3186 = vunpack.c.l.b16 %v1995
    %v3187 = vunpack.c.h.b16 %v1995
    %v3188 = vunpack.c.l.b16 %v1996
    %v3189 = vunpack.c.h.b16 %v1996
    %v3190 = vunpack.c.l.b16 %v1997
    %v3191 = vunpack.c.l.b16 %v1998
    %v3192 = vunpack.c.h.b16 %v1998
    %v3193 = vunpack.c.l.b16 %v1999
    %v3194 = vunpack.c.h.b16 %v1999
    %v3195 = vunpack.c.l.b16 %v2000
    %v3196 = vunpack.c.h.b16 %v2000
    %v3197 = vunpack.c.l.b16 %v2001
    %v3198 = vunpack.c.l.b16 %v2002
    %v3199 = vunpack.c.h.b16 %v2002
    %v3200 = vunpack.c.l.b16 %v2003
    %v3201 = vunpack.c.h.b16 %v2003
    %v3202 = vunpack.c.l.b16 %v2004
    %v3203 = vunpack.c.h.b16 %v2004
    %v3204 = vunpack.c.l.b16 %v2005
    %v3205 = vunpack.c.l.b16 %v2006
    %v3206 = vunpack.c.h.b16 %v2006
    %v3207 = vunpack.c.l.b16 %v2007
    %v3208 = vunpack.c.h.b16 %v2007
    %v3209 = vunpack.c.l.b16 %v2008
    %v3210 = vunpack.c.h.b16 %v2008
    %v3211 = vunpack.c.l.b16 %v2009
    %v3212 = vunpack.c.l.b16 %v2010
    %v3213 = vunpack.c.h.b16 %v2010
    %v3214 = vunpack.c.l.b16 %v2011
    %v3215 = vunpack.c.h.b16 %v2011
    %v3216 = vunpack.c.l.b16 %v2012
    %v3217 = vunpack.c.h.b16 %v2012
    %v3218 = vunpack.c.l.b16 %v2013
    %v3219 = vunpack.c.l.b16 %v2014
    %v3220 = vunpack.c.h.b16 %v2014
    %v3221 = vunpack.c.l.b16 %v2015
    %v3222 = vunpack.c.h.b16 %v2015
    %v3223 = vunpack.c.l.b16 %v2016
    %v3224 = vunpack.c.h.b16 %v2016
    %v3225 = vunpack.c.l.b16 %v2017
    %v3226 = vunpack.c.l.b16 %v2018
    %v3227 = vunpack.c.h.b16 %v2018
    %v3228 = vunpack.c.l.b16 %v2019
    %v3229 = vunpack.c.h.b16 %v2019
    %v3230 = vunpack.c.l.b16 %v2020
    %v3231 = vunpack.c.h.b16 %v2020
    %v3232 = vunpack.c.l.b16 %v2021
    %v3233 = vunpack.c.l.b16 %v2022
    %v3234 = vunpack.c.h.b16 %v2022
    %v3235 = vunpack.c.l.b16 %v2023
    %v3236 = vunpack.c.h.b16 %v2023
    %v3237 = vunpack.c.l.b16 %v2024
    %v3238 = vunpack.c.h.b16 %v2024
    %v3239 = vunpack.c.l.b16 %v2025
    %v3240 = vunpack.c.l.b16 %v2026
    %v3241 = vunpack.c.h.b16 %v2026
    %v3242 = vunpack.c.l.b16 %v2027
    %v3243 = vunpack.c.h.b16 %v2027
    %v3244 = vunpack.c.l.b16 %v2028
    %v3245 = vunpack.c.h.b16 %v2028
    %v3246 = vunpack.c.l.b16 %v2029
    %v3247 = vunpack.c.l.b16 %v2030
    %v3248 = vunpack.c.h.b16 %v2030
    %v3249 = vunpack.c.l.b16 %v2031
    %v3250 = vunpack.c.h.b16 %v2031
    %v3251 = vunpack.c.l.b16 %v2032
    %v3252 = vunpack.c.h.b16 %v2032
    %v3253 = vunpack.c.l.b16 %v2033
    %v3254 = vunpack.c.l.b16 %v2034
    %v3255 = vunpack.c.h.b16 %v2034
    %v3256 = vunpack.c.l.b16 %v2035
    %v3257 = vunpack.c.h.b16 %v2035
    %v3258 = vunpack.c.l.b16 %v2036
    %v3259 = vunpack.c.h.b16 %v2036
    %v3260 = vunpack.c.l.b16 %v2037
    %v3261 = vunpack.c.l.b16 %v2038
    %v3262 = vunpack.c.h.b16 %v2038
    %v3263 = vunpack.c.l.b16 %v2039
    %v3264 = vunpack.c.h.b16 %v2039
    %v3265 = vunpack.c.l.b16 %v2040
    %v3266 = vunpack.c.h.b16 %v2040
    %v3267 = vunpack.c.l.b16 %v2041
    %v3268 = vunpack.c.l.b16 %v2042
    %v3269 = vunpack.c.h.b16 %v2042
    %v3270 = vunpack.c.l.b16 %v2043
    %v3271 = vunpack.c.h.b16 %v2043
    %v3272 = vunpack.c.l.b16 %v2044
    %v3273 = vunpack.c.h.b16 %v2044
    %v3274 = vunpack.c.l.b16 %v2045
    %v3275 = vunpack.c.l.b16 %v2046
    %v3276 = vunpack.c.h.b16 %v2046
    %v3277 = vunpack.c.l.b16 %v2047
    %v3278 = vunpack.c.h.b16 %v2047
    %v3279 = vunpack.c.l.b16 %v2048
    %v3280 = vunpack.c.h.b16 %v2048
    %v3281 = vunpack.c.l.b16 %v2049
    %v3282 = vunpack.c.l.b16 %v2050
    %v3283 = vunpack.c.h.b16 %v2050
    %v3284 = vunpack.c.l.b16 %v2051
    %v3285 = vunpack.c.h.b16 %v2051
    %v3286 = vunpack.c.l.b16 %v2052
    %v3287 = vunpack.c.h.b16 %v2052
    %v3288 = vunpack.c.l.b16 %v2053
    %v3289 = vunpack.c.l.b16 %v2054
    %v3290 = vunpack.c.h.b16 %v2054
    %v3291 = vunpack.c.l.b16 %v2055
    %v3292 = vunpack.c.h.b16 %v2055
    %v3293 = vunpack.c.l.b16 %v2056
    %v3294 = vunpack.c.h.b16 %v2056
    %v3295 = vunpack.c.l.b16 %v2057
    %v3296 = vunpack.c.l.b16 %v2058
    %v3297 = vunpack.c.h.b16 %v2058
    %v3298 = vunpack.c.l.b16 %v2059
    %v3299 = vunpack.c.h.b16 %v2059
    %v3300 = vunpack.c.l.b16 %v2060
    %v3301 = vunpack.c.h.b16 %v2060
    %v3302 = vunpack.c.l.b16 %v2061
    %v3303 = vunpack.c.l.b16 %v2062
    %v3304 = vunpack.c.h.b16 %v2062
    %v3305 = vunpack.c.l.b16 %v2063
    %v3306 = vunpack.c.h.b16 %v2063
    %v3307 = vunpack.c.l.b16 %v2064
    %v3308 = vunpack.c.h.b16 %v2064
    %v3309 = vunpack.c.l.b16 %v2065
    %v3310 = vunpack.c.l.b16 %v2066
    %v3311 = vunpack.c.h.b16 %v2066
    %v3312 = vunpack.c.l.b16 %v2067
    %v3313 = vunpack.c.h.b16 %v2067
    %v3314 = vunpack.c.l.b16 %v2068
    %v3315 = vunpack.c.h.b16 %v2068
    %v3316 = vunpack.c.l.b16 %v2069
    %v3317 = vunpack.c.l.b16 %v2070
    %v3318 = vunpack.c.h.b16 %v2070
    %v3319 = vunpack.c.l.b16 %v2071
    %v3320 = vunpack.c.h.b16 %v2071
    %v3321 = vunpack.c.l.b16 %v2072
    %v3322 = vunpack.c.h.b16 %v2072
    %v3323 = vunpack.c.l.b16 %v2073
    %v3324 = vunpack.c.l.b16 %v2074
    %v3325 = vunpack.c.h.b16 %v2074
    %v3326 = vunpack.c.l.b16 %v2075
    %v3327 = vunpack.c.h.b16 %v2075
    %v3328 = vunpack.c.l.b16 %v2076
    %v3329 = vunpack.c.h.b16 %v2076
    %v3330 = vunpack.c.l.b16 %v2077
    %v3331 = vunpack.c.l.b16 %v2078
    %v3332 = vunpack.c.h.b16 %v2078
    %v3333 = vunpack.c.l.b16 %v2079
    %v3334 = vunpack.c.h.b16 %v2079
    %v3335 = vunpack.c.l.b16 %v2080
    %v3336 = vunpack.c.h.b16 %v2080
    %v3337 = vunpack.c.l.b16 %v2081
    %v3338 = vunpack.c.l.b16 %v2082
    %v3339 = vunpack.c.h.b16 %v2082
    %v3340 = vunpack.c.l.b16 %v2083
    %v3341 = vunpack.c.h.b16 %v2083
    %v3342 = vunpack.c.l.b16 %v2084
    %v3343 = vunpack.c.h.b16 %v2084
    %v3344 = vunpack.c.l.b16 %v2085
    %v3345 = vunpack.c.l.b16 %v2086
    %v3346 = vunpack.c.h.b16 %v2086
    %v3347 = vunpack.c.l.b16 %v2087
    %v3348 = vunpack.c.h.b16 %v2087
    %v3349 = vunpack.c.l.b16 %v2088
    %v3350 = vunpack.c.h.b16 %v2088
    %v3351 = vunpack.c.l.b16 %v2089
    %v3352 = vunpack.c.l.b16 %v2090
    %v3353 = vunpack.c.h.b16 %v2090
    %v3354 = vunpack.c.l.b16 %v2091
    %v3355 = vunpack.c.h.b16 %v2091
    %v3356 = vunpack.c.l.b16 %v2092
    %v3357 = vunpack.c.h.b16 %v2092
    %v3358 = vunpack.c.l.b16 %v2093
    %v3359 = vunpack.c.l.b16 %v2094
    %v3360 = vunpack.c.h.b16 %v2094
    %v3361 = vunpack.c.l.b16 %v2095
    %v3362 = vunpack.c.h.b16 %v2095
    %v3363 = vunpack.c.l.b16 %v2096
    %v3364 = vunpack.c.h.b16 %v2096
    %v3365 = vunpack.c.l.b16 %v2097
    %v3366 = vunpack.c.l.b16 %v2098
    %v3367 = vunpack.c.h.b16 %v2098
    %v3368 = vunpack.c.l.b16 %v2099
    %v3369 = vunpack.c.h.b16 %v2099
    %v3370 = vunpack.c.l.b16 %v2100
    %v3371 = vunpack.c.h.b16 %v2100
    %v3372 = vunpack.c.l.b16 %v2101
    %v3373 = vunpack.c.l.b16 %v2102
    %v3374 = vunpack.c.h.b16 %v2102
    %v3375 = vunpack.c.l.b16 %v2103
    %v3376 = vunpack.c.h.b16 %v2103
    %v3377 = vunpack.c.l.b16 %v2104
    %v3378 = vunpack.c.h.b16 %v2104
    %v3379 = vunpack.c.l.b16 %v2105
    %v3380 = vunpack.c.l.b16 %v2106
    %v3381 = vunpack.c.h.b16 %v2106
    %v3382 = vunpack.c.l.b16 %v2107
    %v3383 = vunpack.c.h.b16 %v2107
    %v3384 = vunpack.c.l.b16 %v2108
    %v3385 = vunpack.c.h.b16 %v2108
    %v3386 = vunpack.c.l.b16 %v2109
    %v3387 = vunpack.c.l.b16 %v2110
    %v3388 = vunpack.c.h.b16 %v2110
    %v3389 = vunpack.c.l.b16 %v2111
    %v3390 = vunpack.c.h.b16 %v2111
    %v3391 = vunpack.c.l.b16 %v2112
    %v3392 = vunpack.c.h.b16 %v2112
    %v3393 = vunpack.c.l.b16 %v2113
    %v3394 = vunpack.c.l.b16 %v2114
    %v3395 = vunpack.c.h.b16 %v2114
    %v3396 = vunpack.c.l.b16 %v2115
    %v3397 = vunpack.c.h.b16 %v2115
    %v3398 = vunpack.c.l.b16 %v2116
    %v3399 = vunpack.c.h.b16 %v2116
    %v3400 = vunpack.c.l.b16 %v2117
    %v3401 = vunpack.c.l.b16 %v2118
    %v3402 = vunpack.c.h.b16 %v2118
    %v3403 = vunpack.c.l.b16 %v2119
    %v3404 = vunpack.c.h.b16 %v2119
    %v3405 = vunpack.c.l.b16 %v2120
    %v3406 = vunpack.c.h.b16 %v2120
    %v3407 = vunpack.c.l.b16 %v2121
    %v3408 = vunpack.c.l.b16 %v2122
    %v3409 = vunpack.c.h.b16 %v2122
    %v3410 = vunpack.c.l.b16 %v2123
    %v3411 = vunpack.c.h.b16 %v2123
    %v3412 = vunpack.c.l.b16 %v2124
    %v3413 = vunpack.c.h.b16 %v2124
    %v3414 = vunpack.c.l.b16 %v2125
    %v3415 = vunpack.c.l.b16 %v2126
    %v3416 = vunpack.c.h.b16 %v2126
    %v3417 = vunpack.c.l.b16 %v2127
    %v3418 = vunpack.c.h.b16 %v2127
    %v3419 = vunpack.c.l.b16 %v2128
    %v3420 = vunpack.c.h.b16 %v2128
    %v3421 = vunpack.c.l.b16 %v2129
    %v3422 = vunpack.c.l.b16 %v2130
    %v3423 = vunpack.c.h.b16 %v2130
    %v3424 = vunpack.c.l.b16 %v2131
    %v3425 = vunpack.c.h.b16 %v2131
    %v3426 = vunpack.c.l.b16 %v2132
    %v3427 = vunpack.c.h.b16 %v2132
    %v3428 = vunpack.c.l.b16 %v2133
    %v3429 = vunpack.c.l.b16 %v2134
    %v3430 = vunpack.c.h.b16 %v2134
    %v3431 = vunpack.c.l.b16 %v2135
    %v3432 = vunpack.c.h.b16 %v2135
    %v3433 = vunpack.c.l.b16 %v2136
    %v3434 = vunpack.c.h.b16 %v2136
    %v3435 = vunpack.c.l.b16 %v2137
    %v3436 = vunpack.c.l.b16 %v2138
    %v3437 = vunpack.c.h.b16 %v2138
    %v3438 = vunpack.c.l.b16 %v2139
    %v3439 = vunpack.c.h.b16 %v2139
    %v3440 = vunpack.c.l.b16 %v2140
    %v3441 = vunpack.c.h.b16 %v2140
    %v3442 = vunpack.c.l.b16 %v2141
    %v3443 = vunpack.c.l.b16 %v2142
    %v3444 = vunpack.c.h.b16 %v2142
    %v3445 = vunpack.c.l.b16 %v2143
    %v3446 = vunpack.c.h.b16 %v2143
    %v3447 = vunpack.c.l.b16 %v2144
    %v3448 = vunpack.c.h.b16 %v2144
    %v3449 = vunpack.c.l.b16 %v2145
    %v3450 = vunpack.c.l.b16 %v2146
    %v3451 = vunpack.c.h.b16 %v2146
    %v3452 = vunpack.c.l.b16 %v2147
    %v3453 = vunpack.c.h.b16 %v2147
    %v3454 = vunpack.c.l.b16 %v2148
    %v3455 = vunpack.c.h.b16 %v2148
    %v3456 = vunpack.c.l.b16 %v2149
    %v3457 = vunpack.c.l.b16 %v2150
    %v3458 = vunpack.c.h.b16 %v2150
    %v3459 = vunpack.c.l.b16 %v2151
    %v3460 = vunpack.c.h.b16 %v2151
    %v3461 = vunpack.c.l.b16 %v2152
    %v3462 = vunpack.c.h.b16 %v2152
    %v3463 = vunpack.c.l.b16 %v2153
    %v3464 = vunpack.c.l.b16 %v2154
    %v3465 = vunpack.c.h.b16 %v2154
    %v3466 = vunpack.c.l.b16 %v2155
    %v3467 = vunpack.c.h.b16 %v2155
    %v3468 = vunpack.c.l.b16 %v2156
    %v3469 = vunpack.c.h.b16 %v2156
    %v3470 = vunpack.c.l.b16 %v2157
    %v3471 = vunpack.c.l.b16 %v2158
    %v3472 = vunpack.c.h.b16 %v2158
    %v3473 = vunpack.c.l.b16 %v2159
    %v3474 = vunpack.c.h.b16 %v2159
    %v3475 = vunpack.c.l.b16 %v2160
    %v3476 = vunpack.c.h.b16 %v2160
    %v3477 = vunpack.c.l.b16 %v2161
    %v3478 = vunpack.c.l.b16 %v2162
    %v3479 = vunpack.c.h.b16 %v2162
    %v3480 = vunpack.c.l.b16 %v2163
    %v3481 = vunpack.c.h.b16 %v2163
    %v3482 = vunpack.c.l.b16 %v2164
    %v3483 = vunpack.c.h.b16 %v2164
    %v3484 = vunpack.c.l.b16 %v2165
    %v3485 = vunpack.c.l.b16 %v2166
    %v3486 = vunpack.c.h.b16 %v2166
    %v3487 = vunpack.c.l.b16 %v2167
    %v3488 = vunpack.c.h.b16 %v2167
    %v3489 = vunpack.c.l.b16 %v2168
    %v3490 = vunpack.c.h.b16 %v2168
    %v3491 = vunpack.c.l.b16 %v2169
    %v3492 = vunpack.c.l.b16 %v2170
    %v3493 = vunpack.c.h.b16 %v2170
    %v3494 = vunpack.c.l.b16 %v2171
    %v3495 = vunpack.c.h.b16 %v2171
    %v3496 = vunpack.c.l.b16 %v2172
    %v3497 = vunpack.c.h.b16 %v2172
    %v3498 = vunpack.c.l.b16 %v2173
    %v3499 = vunpack.c.l.b16 %v2174
    %v3500 = vunpack.c.h.b16 %v2174
    %v3501 = vunpack.c.l.b16 %v2175
    %v3502 = vunpack.c.h.b16 %v2175
    %v3503 = vunpack.c.l.b16 %v2176
    %v3504 = vunpack.c.h.b16 %v2176
    %v3505 = vunpack.c.l.b16 %v2177
    %v3506 = vunpack.c.l.b16 %v2178
    %v3507 = vunpack.c.h.b16 %v2178
    %v3508 = vunpack.c.l.b16 %v2179
    %v3509 = vunpack.c.h.b16 %v2179
    %v3510 = vunpack.c.l.b16 %v2180
    %v3511 = vunpack.c.h.b16 %v2180
    %v3512 = vunpack.c.l.b16 %v2181
    %v3513 = vunpack.c.l.b16 %v2182
    %v3514 = vunpack.c.h.b16 %v2182
    %v3515 = vunpack.c.l.b16 %v2183
    %v3516 = vunpack.c.h.b16 %v2183
    %v3517 = vunpack.c.l.b16 %v2184
    %v3518 = vunpack.c.h.b16 %v2184
    %v3519 = vunpack.c.l.b16 %v2185
    %v3520 = vunpack.c.l.b16 %v2186
    %v3521 = vunpack.c.h.b16 %v2186
    %v3522 = vunpack.c.l.b16 %v2187
    %v3523 = vunpack.c.h.b16 %v2187
    %v3524 = vunpack.c.l.b16 %v2188
    %v3525 = vunpack.c.h.b16 %v2188
    %v3526 = vunpack.c.l.b16 %v2189
    %v3527 = vunpack.c.l.b16 %v2190
    %v3528 = vunpack.c.h.b16 %v2190
    %v3529 = vunpack.c.l.b16 %v2191
    %v3530 = vunpack.c.h.b16 %v2191
    %v3531 = vunpack.c.l.b16 %v2192
    %v3532 = vunpack.c.h.b16 %v2192
    %v3533 = vunpack.c.l.b16 %v2193
    %v3534 = vunpack.c.l.b16 %v2194
    %v3535 = vunpack.c.h.b16 %v2194
    %v3536 = vunpack.c.l.b16 %v2195
    %v3537 = vunpack.c.h.b16 %v2195
    %v3538 = vunpack.c.l.b16 %v2196
    %v3539 = vunpack.c.h.b16 %v2196
    %v3540 = vunpack.c.l.b16 %v2197
    %v3541 = vunpack.c.l.b16 %v2198
    %v3542 = vunpack.c.h.b16 %v2198
    %v3543 = vunpack.c.l.b16 %v2199
    %v3544 = vunpack.c.h.b16 %v2199
    %v3545 = vunpack.c.l.b16 %v2200
    %v3546 = vunpack.c.h.b16 %v2200
    %v3547 = vunpack.c.l.b16 %v2201
    %v3548 = vunpack.c.l.b16 %v2202
    %v3549 = vunpack.c.h.b16 %v2202
    %v3550 = vunpack.c.l.b16 %v2203
    %v3551 = vunpack.c.h.b16 %v2203
    %v3552 = vunpack.c.l.b16 %v2204
    %v3553 = vunpack.c.h.b16 %v2204
    %v3554 = vunpack.c.l.b16 %v2205
    %v3555 = vunpack.c.l.b16 %v2206
    %v3556 = vunpack.c.h.b16 %v2206
    %v3557 = vunpack.c.l.b16 %v2207
    %v3558 = vunpack.c.h.b16 %v2207
    %v3559 = vunpack.c.l.b16 %v2208
    %v3560 = vunpack.c.h.b16 %v2208
    %v3561 = vunpack.c.l.b16 %v2209
    %v3562 = vunpack.c.l.b16 %v2210
    %v3563 = vunpack.c.h.b16 %v2210
    %v3564 = vunpack.c.l.b16 %v2211
    %v3565 = vunpack.c.h.b16 %v2211
    %v3566 = vunpack.c.l.b16 %v2212
    %v3567 = vunpack.c.h.b16 %v2212
    %v3568 = vunpack.c.l.b16 %v2213
    %v3569 = vunpack.c.l.b16 %v2214
    %v3570 = vunpack.c.h.b16 %v2214
    %v3571 = vunpack.c.l.b16 %v2215
    %v3572 = vunpack.c.h.b16 %v2215
    %v3573 = vunpack.c.l.b16 %v2216
    %v3574 = vunpack.c.h.b16 %v2216
    %v3575 = vunpack.c.l.b16 %v2217
    %v3576 = vunpack.c.l.b16 %v2218
    %v3577 = vunpack.c.h.b16 %v2218
    %v3578 = vunpack.c.l.b16 %v2219
    %v3579 = vunpack.c.h.b16 %v2219
    %v3580 = vunpack.c.l.b16 %v2220
    %v3581 = vunpack.c.h.b16 %v2220
    %v3582 = vunpack.c.l.b16 %v2221
    %v3583 = vunpack.c.l.b16 %v2222
    %v3584 = vunpack.c.h.b16 %v2222
    %v3585 = vunpack.c.l.b16 %v2223
    %v3586 = vunpack.c.h.b16 %v2223
    %v3587 = vunpack.c.l.b16 %v2224
    %v3588 = vunpack.c.h.b16 %v2224
    %v3589 = vunpack.c.l.b16 %v2225
    %v3590 = vunpack.c.l.b16 %v2226
    %v3591 = vunpack.c.h.b16 %v2226
    %v3592 = vunpack.c.l.b16 %v2227
    %v3593 = vunpack.c.h.b16 %v2227
    %v3594 = vunpack.c.l.b16 %v2228
    %v3595 = vunpack.c.h.b16 %v2228
    %v3596 = vunpack.c.l.b16 %v2229
    %v3597 = vunpack.c.l.b16 %v2230
    %v3598 = vunpack.c.h.b16 %v2230
    %v3599 = vunpack.c.l.b16 %v2231
    %v3600 = vunpack.c.h.b16 %v2231
    %v3601 = vunpack.c.l.b16 %v2232
    %v3602 = vunpack.c.h.b16 %v2232
    %v3603 = vunpack.c.l.b16 %v2233
    %v3604 = vunpack.c.l.b16 %v2234
    %v3605 = vunpack.c.h.b16 %v2234
    %v3606 = vunpack.c.l.b16 %v2235
    %v3607 = vunpack.c.h.b16 %v2235
    %v3608 = vunpack.c.l.b16 %v2236
    %v3609 = vunpack.c.h.b16 %v2236
    %v3610 = vunpack.c.l.b16 %v2237
    %v3611 = vunpack.c.l.b16 %v2238
    %v3612 = vunpack.c.h.b16 %v2238
    %v3613 = vunpack.c.l.b16 %v2239
    %v3614 = vunpack.c.h.b16 %v2239
    %v3615 = vunpack.c.l.b16 %v2240
    %v3616 = vunpack.c.h.b16 %v2240
    %v3617 = vunpack.c.l.b16 %v2241
    %v3618 = vunpack.c.l.b16 %v2242
    %v3619 = vunpack.c.h.b16 %v2242
    %v3620 = vunpack.c.l.b16 %v2243
    %v3621 = vunpack.c.h.b16 %v2243
    %v3622 = vunpack.c.l.b16 %v2244
    %v3623 = vunpack.c.h.b16 %v2244
    %v3624 = vunpack.c.l.b16 %v2245
    %v3625 = vunpack.c.l.b16 %v2246
    %v3626 = vunpack.c.h.b16 %v2246
    %v3627 = vunpack.c.l.b16 %v2247
    %v3628 = vunpack.c.h.b16 %v2247
    %v3629 = vunpack.c.l.b16 %v2248
    %v3630 = vunpack.c.h.b16 %v2248
    %v3631 = vunpack.c.l.b16 %v2249
    %v3632 = vunpack.c.l.b16 %v2250
    %v3633 = vunpack.c.h.b16 %v2250
    %v3634 = vunpack.c.l.b16 %v2251
    %v3635 = vunpack.c.h.b16 %v2251
    %v3636 = vunpack.c.l.b16 %v2252
    %v3637 = vunpack.c.h.b16 %v2252
    %v3638 = vunpack.c.l.b16 %v2253
    %v3639 = vunpack.c.l.b16 %v2254
    %v3640 = vunpack.c.h.b16 %v2254
    %v3641 = vunpack.c.l.b16 %v2255
    %v3642 = vunpack.c.h.b16 %v2255
    %v3643 = vunpack.c.l.b16 %v2256
    %v3644 = vunpack.c.h.b16 %v2256
    %v3645 = vunpack.c.l.b16 %v2257
    %v3646 = vunpack.c.l.b16 %v2258
    %v3647 = vunpack.c.h.b16 %v2258
    %v3648 = vunpack.c.l.b16 %v2259
    %v3649 = vunpack.c.h.b16 %v2259
    %v3650 = vunpack.c.l.b16 %v2260
    %v3651 = vunpack.c.h.b16 %v2260
    %v3652 = vunpack.c.l.b16 %v2261
    %v3653 = vunpack.c.l.b16 %v2262
    %v3654 = vunpack.c.h.b16 %v2262
    %v3655 = vunpack.c.l.b16 %v2263
    %v3656 = vunpack.c.h.b16 %v2263
    %v3657 = vunpack.c.l.b16 %v2264
    %v3658 = vunpack.c.h.b16 %v2264
    %v3659 = vunpack.c.l.b16 %v2265
    %v3660 = vunpack.c.l.b16 %v2266
    %v3661 = vunpack.c.h.b16 %v2266
    %v3662 = vunpack.c.l.b16 %v2267
    %v3663 = vunpack.c.h.b16 %v2267
    %v3664 = vunpack.c.l.b16 %v2268
    %v3665 = vunpack.c.h.b16 %v2268
    %v3666 = vunpack.c.l.b16 %v2269
    %v3667 = vunpack.c.l.b16 %v2270
    %v3668 = vunpack.c.h.b16 %v2270
    %v3669 = vunpack.c.l.b16 %v2271
    %v3670 = vunpack.c.h.b16 %v2271
    %v3671 = vunpack.c.l.b16 %v2272
    %v3672 = vunpack.c.h.b16 %v2272
    %v3673 = vunpack.c.l.b16 %v2273
    %v3674 = vunpack.c.l.b16 %v2274
    %v3675 = vunpack.c.h.b16 %v2274
    %v3676 = vunpack.c.l.b16 %v2275
    %v3677 = vunpack.c.h.b16 %v2275
    %v3678 = vunpack.c.l.b16 %v2276
    %v3679 = vunpack.c.h.b16 %v2276
    %v3680 = vunpack.c.l.b16 %v2277
    %v3681 = vunpack.c.l.b16 %v2278
    %v3682 = vunpack.c.h.b16 %v2278
    %v3683 = vunpack.c.l.b16 %v2279
    %v3684 = vunpack.c.h.b16 %v2279
    %v3685 = vunpack.c.l.b16 %v2280
    %v3686 = vunpack.c.h.b16 %v2280
    %v3687 = vunpack.c.l.b16 %v2281
    %v3688 = vunpack.c.l.b16 %v2282
    %v3689 = vunpack.c.h.b16 %v2282
    %v3690 = vunpack.c.l.b16 %v2283
    %v3691 = vunpack.c.h.b16 %v2283
    %v3692 = vunpack.c.l.b16 %v2284
    %v3693 = vunpack.c.h.b16 %v2284
    %v3694 = vunpack.c.l.b16 %v2285
    %v3695 = vunpack.c.l.b16 %v2286
    %v3696 = vunpack.c.h.b16 %v2286
    %v3697 = vunpack.c.l.b16 %v2287
    %v3698 = vunpack.c.h.b16 %v2287
    %v3699 = vunpack.c.l.b16 %v2288
    %v3700 = vunpack.c.h.b16 %v2288
    %v3701 = vunpack.c.l.b16 %v2289
    %v3702 = vunpack.c.l.b16 %v2290
    %v3703 = vunpack.c.h.b16 %v2290
    %v3704 = vunpack.c.l.b16 %v2291
    %v3705 = vunpack.c.h.b16 %v2291
    %v3706 = vunpack.c.l.b16 %v2292
    %v3707 = vunpack.c.h.b16 %v2292
    %v3708 = vunpack.c.l.b16 %v2293
    %v3709 = vunpack.c.l.b16 %v2294
    %v3710 = vunpack.c.h.b16 %v2294
    %v3711 = vunpack.c.l.b16 %v2295
    %v3712 = vunpack.c.h.b16 %v2295
    %v3713 = vunpack.c.l.b16 %v2296
    %v3714 = vunpack.c.h.b16 %v2296
    %v3715 = vunpack.c.l.b16 %v2297
    %v3716 = vunpack.c.l.b16 %v2298
    %v3717 = vunpack.c.h.b16 %v2298
    %v3718 = vunpack.c.l.b16 %v2299
    %v3719 = vunpack.c.h.b16 %v2299
    %v3720 = vunpack.c.l.b16 %v2300
    %v3721 = vunpack.c.h.b16 %v2300
    %v3722 = vunpack.c.l.b16 %v2301
    %v3723 = vunpack.c.l.b16 %v2302
    %v3724 = vunpack.c.h.b16 %v2302
    %v3725 = vunpack.c.l.b16 %v2303
    %v3726 = vunpack.c.h.b16 %v2303
    %v3727 = vunpack.c.l.b16 %v2304
    %v3728 = vunpack.c.h.b16 %v2304
    %v3729 = vunpack.c.l.b16 %v2305
    %v3730 = vunpack.c.l.b16 %v2306
    %v3731 = vunpack.c.h.b16 %v2306
    %v3732 = vunpack.c.l.b16 %v2307
    %v3733 = vunpack.c.h.b16 %v2307
    %v3734 = vunpack.c.l.b16 %v2308
    %v3735 = vunpack.c.h.b16 %v2308
    %v3736 = vunpack.c.l.b16 %v2309
    %v3737 = vunpack.c.l.b16 %v2310
    %v3738 = vunpack.c.h.b16 %v2310
    %v3739 = vunpack.c.l.b16 %v2311
    %v3740 = vunpack.c.h.b16 %v2311
    %v3741 = vunpack.c.l.b16 %v2312
    %v3742 = vunpack.c.h.b16 %v2312
    %v3743 = vunpack.c.l.b16 %v2313
    %v3744 = vunpack.c.l.b16 %v2314
    %v3745 = vunpack.c.h.b16 %v2314
    %v3746 = vunpack.c.l.b16 %v2315
    %v3747 = vunpack.c.h.b16 %v2315
    %v3748 = vunpack.c.l.b16 %v2316
    %v3749 = vunpack.c.h.b16 %v2316
    %v3750 = vunpack.c.l.b16 %v2317
    %v3751 = vunpack.c.l.b16 %v2318
    %v3752 = vunpack.c.h.b16 %v2318
    %v3753 = vunpack.c.l.b16 %v2319
    %v3754 = vunpack.c.h.b16 %v2319
    %v3755 = vunpack.c.l.b16 %v2320
    %v3756 = vunpack.c.h.b16 %v2320
    %v3757 = vunpack.c.l.b16 %v2321
    %v3758 = vunpack.c.l.b16 %v2322
    %v3759 = vunpack.c.h.b16 %v2322
    %v3760 = vunpack.c.l.b16 %v2323
    %v3761 = vunpack.c.h.b16 %v2323
    %v3762 = vunpack.c.l.b16 %v2324
    %v3763 = vunpack.c.h.b16 %v2324
    %v3764 = vunpack.c.l.b16 %v2325
    %v3765 = vunpack.c.l.b16 %v2326
    %v3766 = vunpack.c.h.b16 %v2326
    %v3767 = vunpack.c.l.b16 %v2327
    %v3768 = vunpack.c.h.b16 %v2327
    %v3769 = vunpack.c.l.b16 %v2328
    %v3770 = vunpack.c.h.b16 %v2328
    %v3771 = vunpack.c.l.b16 %v2329
    %v3772 = vunpack.c.l.b16 %v2330
    %v3773 = vunpack.c.h.b16 %v2330
    %v3774 = vunpack.c.l.b16 %v2331
    %v3775 = vunpack.c.h.b16 %v2331
    %v3776 = vunpack.c.l.b16 %v2332
    %v3777 = vunpack.c.h.b16 %v2332
    %v3778 = vunpack.c.l.b16 %v2333
    %v3779 = vpack.c.b16 %v2890, %v2883
    %v3780 = vpack.c.b16 %v2891, %v2884
    %v3781 = vpack.c.b16 %v2892, %v2885
    %v3782 = vpack.c.b16 %v2893, %v2886
    %v3783 = vpack.c.b16 %v2894, %v2887
    %v3784 = vpack.c.b16 %v2895, %v2888
    %v3785 = vpack.c.b16 %v2896, %v2889
    %v3786 = vpack.c.b16 %v2904, %v2897
    %v3787 = vpack.c.b16 %v2905, %v2898
    %v3788 = vpack.c.b16 %v2906, %v2899
    %v3789 = vpack.c.b16 %v2907, %v2900
    %v3790 = vpack.c.b16 %v2908, %v2901
    %v3791 = vpack.c.b16 %v2909, %v2902
    %v3792 = vpack.c.b16 %v2910, %v2903
    %v3793 = vpack.c.b16 %v2918, %v2911
    %v3794 = vpack.c.b16 %v2919, %v2912
    %v3795 = vpack.c.b16 %v2920, %v2913
    %v3796 = vpack.c.b16 %v2921, %v2914
    %v3797 = vpack.c.b16 %v2922, %v2915
    %v3798 = vpack.c.b16 %v2923, %v2916
    %v3799 = vpack.c.b16 %v2924, %v2917
    %v3800 = vpack.c.b16 %v2932, %v2925
    %v3801 = vpack.c.b16 %v2933, %v2926
    %v3802 = vpack.c.b16 %v2934, %v2927
    %v3803 = vpack.c.b16 %v2935, %v2928
    %v3804 = vpack.c.b16 %v2936, %v2929
    %v3805 = vpack.c.b16 %v2937, %v2930
    %v3806 = vpack.c.b16 %v2938, %v2931
    %v3807 = vpack.c.b16 %v2946, %v2939
    %v3808 = vpack.c.b16 %v2947, %v2940
    %v3809 = vpack.c.b16 %v2948, %v2941
    %v3810 = vpack.c.b16 %v2949, %v2942
    %v3811 = vpack.c.b16 %v2950, %v2943
    %v3812 = vpack.c.b16 %v2951, %v2944
    %v3813 = vpack.c.b16 %v2952, %v2945
    %v3814 = vpack.c.b16 %v2960, %v2953
    %v3815 = vpack.c.b16 %v2961, %v2954
    %v3816 = vpack.c.b16 %v2962, %v2955
    %v3817 = vpack.c.b16 %v2963, %v2956
    %v3818 = vpack.c.b16 %v2964, %v2957
    %v3819 = vpack.c.b16 %v2965, %v2958
    %v3820 = vpack.c.b16 %v2966, %v2959
    %v3821 = vpack.c.b16 %v2974, %v2967
    %v3822 = vpack.c.b16 %v2975, %v2968
    %v3823 = vpack.c.b16 %v2976, %v2969
    %v3824 = vpack.c.b16 %v2977, %v2970
    %v3825 = vpack.c.b16 %v2978, %v2971
    %v3826 = vpack.c.b16 %v2979, %v2972
    %v3827 = vpack.c.b16 %v2980, %v2973
    %v3828 = vpack.c.b16 %v2988, %v2981
    %v3829 = vpack.c.b16 %v2989, %v2982
    %v3830 = vpack.c.b16 %v2990, %v2983
    %v3831 = vpack.c.b16 %v2991, %v2984
    %v3832 = vpack.c.b16 %v2992, %v2985
    %v3833 = vpack.c.b16 %v2993, %v2986
    %v3834 = vpack.c.b16 %v2994, %v2987
    %v3835 = vpack.c.b16 %v3002, %v2995
    %v3836 = vpack.c.b16 %v3003, %v2996
    %v3837 = vpack.c.b16 %v3004, %v2997
    %v3838 = vpack.c.b16 %v3005, %v2998
    %v3839 = vpack.c.b16 %v3006, %v2999
    %v3840 = vpack.c.b16 %v3007, %v3000
    %v3841 = vpack.c.b16 %v3008, %v3001
    %v3842 = vpack.c.b16 %v3016, %v3009
    %v3843 = vpack.c.b16 %v3017, %v3010
    %v3844 = vpack.c.b16 %v3018, %v3011
    %v3845 = vpack.c.b16 %v3019, %v3012
    %v3846 = vpack.c.b16 %v3020, %v3013
    %v3847 = vpack.c.b16 %v3021, %v3014
    %v3848 = vpack.c.b16 %v3022, %v3015
    %v3849 = vpack.c.b16 %v3030, %v3023
    %v3850 = vpack.c.b16 %v3031, %v3024
    %v3851 = vpack.c.b16 %v3032, %v3025
    %v3852 = vpack.c.b16 %v3033, %v3026
    %v3853 = vpack.c.b16 %v3034, %v3027
    %v3854 = vpack.c.b16 %v3035, %v3028
    %v3855 = vpack.c.b16 %v3036, %v3029
    %v3856 = vpack.c.b16 %v3044, %v3037
    %v3857 = vpack.c.b16 %v3045, %v3038
    %v3858 = vpack.c.b16 %v3046, %v3039
    %v3859 = vpack.c.b16 %v3047, %v3040
    %v3860 = vpack.c.b16 %v3048, %v3041
    %v3861 = vpack.c.b16 %v3049, %v3042
    %v3862 = vpack.c.b16 %v3050, %v3043
    %v3863 = vpack.c.b16 %v3058, %v3051
    %v3864 = vpack.c.b16 %v3059, %v3052
    %v3865 = vpack.c.b16 %v3060, %v3053
    %v3866 = vpack.c.b16 %v3061, %v3054
    %v3867 = vpack.c.b16 %v3062, %v3055
    %v3868 = vpack.c.b16 %v3063, %v3056
    %v3869 = vpack.c.b16 %v3064, %v3057
    %v3870 = vpack.c.b16 %v3072, %v3065
    %v3871 = vpack.c.b16 %v3073, %v3066
    %v3872 = vpack.c.b16 %v3074, %v3067
    %v3873 = vpack.c.b16 %v3075, %v3068
    %v3874 = vpack.c.b16 %v3076, %v3069
    %v3875 = vpack.c.b16 %v3077, %v3070
    %v3876 = vpack.c.b16 %v3078, %v3071
    %v3877 = vpack.c.b16 %v3086, %v3079
    %v3878 = vpack.c.b16 %v3087, %v3080
    %v3879 = vpack.c.b16 %v3088, %v3081
    %v3880 = vpack.c.b16 %v3089, %v3082
    %v3881 = vpack.c.b16 %v3090, %v3083
    %v3882 = vpack.c.b16 %v3091, %v3084
    %v3883 = vpack.c.b16 %v3092, %v3085
    %v3884 = vpack.c.b16 %v3100, %v3093
    %v3885 = vpack.c.b16 %v3101, %v3094
    %v3886 = vpack.c.b16 %v3102, %v3095
    %v3887 = vpack.c.b16 %v3103, %v3096
    %v3888 = vpack.c.b16 %v3104, %v3097
    %v3889 = vpack.c.b16 %v3105, %v3098
    %v3890 = vpack.c.b16 %v3106, %v3099
    %v3891 = vpack.c.b16 %v3114, %v3107
    %v3892 = vpack.c.b16 %v3115, %v3108
    %v3893 = vpack.c.b16 %v3116, %v3109
    %v3894 = vpack.c.b16 %v3117, %v3110
    %v3895 = vpack.c.b16 %v3118, %v3111
    %v3896 = vpack.c.b16 %v3119, %v3112
    %v3897 = vpack.c.b16 %v3120, %v3113
    %v3898 = vpack.c.b16 %v3128, %v3121
    %v3899 = vpack.c.b16 %v3129, %v3122
    %v3900 = vpack.c.b16 %v3130, %v3123
    %v3901 = vpack.c.b16 %v3131, %v3124
    %v3902 = vpack.c.b16 %v3132, %v3125
    %v3903 = vpack.c.b16 %v3133, %v3126
    %v3904 = vpack.c.b16 %v3134, %v3127
    %v3905 = vpack.c.b16 %v3142, %v3135
    %v3906 = vpack.c.b16 %v3143, %v3136
    %v3907 = vpack.c.b16 %v3144, %v3137
    %v3908 = vpack.c.b16 %v3145, %v3138
    %v3909 = vpack.c.b16 %v3146, %v3139
    %v3910 = vpack.c.b16 %v3147, %v3140
    %v3911 = vpack.c.b16 %v3148, %v3141
    %v3912 = vpack.c.b16 %v3156, %v3149
    %v3913 = vpack.c.b16 %v3157, %v3150
    %v3914 = vpack.c.b16 %v3158, %v3151
    %v3915 = vpack.c.b16 %v3159, %v3152
    %v3916 = vpack.c.b16 %v3160, %v3153
    %v3917 = vpack.c.b16 %v3161, %v3154
    %v3918 = vpack.c.b16 %v3162, %v3155
    %v3919 = vpack.c.b16 %v3170, %v3163
    %v3920 = vpack.c.b16 %v3171, %v3164
    %v3921 = vpack.c.b16 %v3172, %v3165
    %v3922 = vpack.c.b16 %v3173, %v3166
    %v3923 = vpack.c.b16 %v3174, %v3167
    %v3924 = vpack.c.b16 %v3175, %v3168
    %v3925 = vpack.c.b16 %v3176, %v3169
    %v3926 = vpack.c.b16 %v3184, %v3177
    %v3927 = vpack.c.b16 %v3185, %v3178
    %v3928 = vpack.c.b16 %v3186, %v3179
    %v3929 = vpack.c.b16 %v3187, %v3180
    %v3930 = vpack.c.b16 %v3188, %v3181
    %v3931 = vpack.c.b16 %v3189, %v3182
    %v3932 = vpack.c.b16 %v3190, %v3183
    %v3933 = vpack.c.b16 %v3198, %v3191
    %v3934 = vpack.c.b16 %v3199, %v3192
    %v3935 = vpack.c.b16 %v3200, %v3193
    %v3936 = vpack.c.b16 %v3201, %v3194
    %v3937 = vpack.c.b16 %v3202, %v3195
    %v3938 = vpack.c.b16 %v3203, %v3196
    %v3939 = vpack.c.b16 %v3204, %v3197
    %v3940 = vpack.c.b16 %v3212, %v3205
    %v3941 = vpack.c.b16 %v3213, %v3206
    %v3942 = vpack.c.b16 %v3214, %v3207
    %v3943 = vpack.c.b16 %v3215, %v3208
    %v3944 = vpack.c.b16 %v3216, %v3209
    %v3945 = vpack.c.b16 %v3217, %v3210
    %v3946 = vpack.c.b16 %v3218, %v3211
    %v3947 = vpack.c.b16 %v3226, %v3219
    %v3948 = vpack.c.b16 %v3227, %v3220
    %v3949 = vpack.c.b16 %v3228, %v3221
    %v3950 = vpack.c.b16 %v3229, %v3222
    %v3951 = vpack.c.b16 %v3230, %v3223
    %v3952 = vpack.c.b16 %v3231, %v3224
    %v3953 = vpack.c.b16 %v3232, %v3225
    %v3954 = vpack.c.b16 %v3240, %v3233
    %v3955 = vpack.c.b16 %v3241, %v3234
    %v3956 = vpack.c.b16 %v3242, %v3235
    %v3957 = vpack.c.b16 %v3243, %v3236
    %v3958 = vpack.c.b16 %v3244, %v3237
    %v3959 = vpack.c.b16 %v3245, %v3238
    %v3960 = vpack.c.b16 %v3246, %v3239
    %v3961 = vpack.c.b16 %v3254, %v3247
    %v3962 = vpack.c.b16 %v3255, %v3248
    %v3963 = vpack.c.b16 %v3256, %v3249
    %v3964 = vpack.c.b16 %v3257, %v3250
    %v3965 = vpack.c.b16 %v3258, %v3251
    %v3966 = vpack.c.b16 %v3259, %v3252
    %v3967 = vpack.c.b16 %v3260, %v3253
    %v3968 = vpack.c.b16 %v3268, %v3261
    %v3969 = vpack.c.b16 %v3269, %v3262
    %v3970 = vpack.c.b16 %v3270, %v3263
    %v3971 = vpack.c.b16 %v3271, %v3264
    %v3972 = vpack.c.b16 %v3272, %v3265
    %v3973 = vpack.c.b16 %v3273, %v3266
    %v3974 = vpack.c.b16 %v3274, %v3267
    %v3975 = vpack.c.b16 %v3282, %v3275
    %v3976 = vpack.c.b16 %v3283, %v3276
    %v3977 = vpack.c.b16 %v3284, %v3277
    %v3978 = vpack.c.b16 %v3285, %v3278
    %v3979 = vpack.c.b16 %v3286, %v3279
    %v3980 = vpack.c.b16 %v3287, %v3280
    %v3981 = vpack.c.b16 %v3288, %v3281
    %v3982 = vpack.c.b16 %v3296, %v3289
    %v3983 = vpack.c.b16 %v3297, %v3290
    %v3984 = vpack.c.b16 %v3298, %v3291
    %v3985 = vpack.c.b16 %v3299, %v3292
    %v3986 = vpack.c.b16 %v3300, %v3293
    %v3987 = vpack.c.b16 %v3301, %v3294
    %v3988 = vpack.c.b16 %v3302, %v3295
    %v3989 = vpack.c.b16 %v3310, %v3303
    %v3990 = vpack.c.b16 %v3311, %v3304
    %v3991 = vpack.c.b16 %v3312, %v3305
    %v3992 = vpack.c.b16 %v3313, %v3306
    %v3993 = vpack.c.b16 %v3314, %v3307
    %v3994 = vpack.c.b16 %v3315, %v3308
    %v3995 = vpack.c.b16 %v3316, %v3309
    %v3996 = vpack.c.b16 %v3324, %v3317
    %v3997 = vpack.c.b16 %v3325, %v3318
    %v3998 = vpack.c.b16 %v3326, %v3319
    %v3999 = vpack.c.b16 %v3327, %v3320
    %v4000 = vpack.c.b16 %v3328, %v3321
    %v4001 = vpack.c.b16 %v3329, %v3322
    %v4002 = vpack.c.b16 %v3330, %v3323
    %v4003 = vpack.c.b16 %v3338, %v3331
    %v4004 = vpack.c.b16 %v3339, %v3332
    %v4005 = vpack.c.b16 %v3340, %v3333
    %v4006 = vpack.c.b16 %v3341, %v3334
    %v4007 = vpack.c.b16 %v3342, %v3335
    %v4008 = vpack.c.b16 %v3343, %v3336
    %v4009 = vpack.c.b16 %v3344, %v3337
    %v4010 = vpack.c.b16 %v3352, %v3345
    %v4011 = vpack.c.b16 %v3353, %v3346
    %v4012 = vpack.c.b16 %v3354, %v3347
    %v4013 = vpack.c.b16 %v3355, %v3348
    %v4014 = vpack.c.b16 %v3356, %v3349
    %v4015 = vpack.c.b16 %v3357, %v3350
    %v4016 = vpack.c.b16 %v3358, %v3351
    %v4017 = vpack.c.b16 %v3366, %v3359
    %v4018 = vpack.c.b16 %v3367, %v3360
    %v4019 = vpack.c.b16 %v3368, %v3361
    %v4020 = vpack.c.b16 %v3369, %v3362
    %v4021 = vpack.c.b16 %v3370, %v3363
    %v4022 = vpack.c.b16 %v3371, %v3364
    %v4023 = vpack.c.b16 %v3372, %v3365
    %v4024 = vpack.c.b16 %v3380, %v3373
    %v4025 = vpack.c.b16 %v3381, %v3374
    %v4026 = vpack.c.b16 %v3382, %v3375
    %v4027 = vpack.c.b16 %v3383, %v3376
    %v4028 = vpack.c.b16 %v3384, %v3377
    %v4029 = vpack.c.b16 %v3385, %v3378
    %v4030 = vpack.c.b16 %v3386, %v3379
    %v4031 = vpack.c.b16 %v3394, %v3387
    %v4032 = vpack.c.b16 %v3395, %v3388
    %v4033 = vpack.c.b16 %v3396, %v3389
    %v4034 = vpack.c.b16 %v3397, %v3390
    %v4035 = vpack.c.b16 %v3398, %v3391
    %v4036 = vpack.c.b16 %v3399, %v3392
    %v4037 = vpack.c.b16 %v3400, %v3393
    %v4038 = vpack.c.b16 %v3408, %v3401
    %v4039 = vpack.c.b16 %v3409, %v3402
    %v4040 = vpack.c.b16 %v3410, %v3403
    %v4041 = vpack.c.b16 %v3411, %v3404
    %v4042 = vpack.c.b16 %v3412, %v3405
    %v4043 = vpack.c.b16 %v3413, %v3406
    %v4044 = vpack.c.b16 %v3414, %v3407
    %v4045 = vpack.c.b16 %v3422, %v3415
    %v4046 = vpack.c.b16 %v3423, %v3416
    %v4047 = vpack.c.b16 %v3424, %v3417
    %v4048 = vpack.c.b16 %v3425, %v3418
    %v4049 = vpack.c.b16 %v3426, %v3419
    %v4050 = vpack.c.b16 %v3427, %v3420
    %v4051 = vpack.c.b16 %v3428, %v3421
    %v4052 = vpack.c.b16 %v3436, %v3429
    %v4053 = vpack.c.b16 %v3437, %v3430
    %v4054 = vpack.c.b16 %v3438, %v3431
    %v4055 = vpack.c.b16 %v3439, %v3432
    %v4056 = vpack.c.b16 %v3440, %v3433
    %v4057 = vpack.c.b16 %v3441, %v3434
    %v4058 = vpack.c.b16 %v3442, %v3435
    %v4059 = vpack.c.b16 %v3450, %v3443
    %v4060 = vpack.c.b16 %v3451, %v3444
    %v4061 = vpack.c.b16 %v3452, %v3445
    %v4062 = vpack.c.b16 %v3453, %v3446
    %v4063 = vpack.c.b16 %v3454, %v3447
    %v4064 = vpack.c.b16 %v3455, %v3448
    %v4065 = vpack.c.b16 %v3456, %v3449
    %v4066 = vpack.c.b16 %v3464, %v3457
    %v4067 = vpack.c.b16 %v3465, %v3458
    %v4068 = vpack.c.b16 %v3466, %v3459
    %v4069 = vpack.c.b16 %v3467, %v3460
    %v4070 = vpack.c.b16 %v3468, %v3461
    %v4071 = vpack.c.b16 %v3469, %v3462
    %v4072 = vpack.c.b16 %v3470, %v3463
    %v4073 = vpack.c.b16 %v3478, %v3471
    %v4074 = vpack.c.b16 %v3479, %v3472
    %v4075 = vpack.c.b16 %v3480, %v3473
    %v4076 = vpack.c.b16 %v3481, %v3474
    %v4077 = vpack.c.b16 %v3482, %v3475
    %v4078 = vpack.c.b16 %v3483, %v3476
    %v4079 = vpack.c.b16 %v3484, %v3477
    %v4080 = vpack.c.b16 %v3492, %v3485
    %v4081 = vpack.c.b16 %v3493, %v3486
    %v4082 = vpack.c.b16 %v3494, %v3487
    %v4083 = vpack.c.b16 %v3495, %v3488
    %v4084 = vpack.c.b16 %v3496, %v3489
    %v4085 = vpack.c.b16 %v3497, %v3490
    %v4086 = vpack.c.b16 %v3498, %v3491
    %v4087 = vpack.c.b16 %v3506, %v3499
    %v4088 = vpack.c.b16 %v3507, %v3500
    %v4089 = vpack.c.b16 %v3508, %v3501
    %v4090 = vpack.c.b16 %v3509, %v3502
    %v4091 = vpack.c.b16 %v3510, %v3503
    %v4092 = vpack.c.b16 %v3511, %v3504
    %v4093 = vpack.c.b16 %v3512, %v3505
    %v4094 = vpack.c.b16 %v3520, %v3513
    %v4095 = vpack.c.b16 %v3521, %v3514
    %v4096 = vpack.c.b16 %v3522, %v3515
    %v4097 = vpack.c.b16 %v3523, %v3516
    %v4098 = vpack.c.b16 %v3524, %v3517
    %v4099 = vpack.c.b16 %v3525, %v3518
    %v4100 = vpack.c.b16 %v3526, %v3519
    %v4101 = vpack.c.b16 %v3534, %v3527
    %v4102 = vpack.c.b16 %v3535, %v3528
    %v4103 = vpack.c.b16 %v3536, %v3529
    %v4104 = vpack.c.b16 %v3537, %v3530
    %v4105 = vpack.c.b16 %v3538, %v3531
    %v4106 = vpack.c.b16 %v3539, %v3532
    %v4107 = vpack.c.b16 %v3540, %v3533
    %v4108 = vpack.c.b16 %v3548, %v3541
    %v4109 = vpack.c.b16 %v3549, %v3542
    %v4110 = vpack.c.b16 %v3550, %v3543
    %v4111 = vpack.c.b16 %v3551, %v3544
    %v4112 = vpack.c.b16 %v3552, %v3545
    %v4113 = vpack.c.b16 %v3553, %v3546
    %v4114 = vpack.c.b16 %v3554, %v3547
    %v4115 = vpack.c.b16 %v3562, %v3555
    %v4116 = vpack.c.b16 %v3563, %v3556
    %v4117 = vpack.c.b16 %v3564, %v3557
    %v4118 = vpack.c.b16 %v3565, %v3558
    %v4119 = vpack.c.b16 %v3566, %v3559
    %v4120 = vpack.c.b16 %v3567, %v3560
    %v4121 = vpack.c.b16 %v3568, %v3561
    %v4122 = vpack.c.b16 %v3576, %v3569
    %v4123 = vpack.c.b16 %v3577, %v3570
    %v4124 = vpack.c.b16 %v3578, %v3571
    %v4125 = vpack.c.b16 %v3579, %v3572
    %v4126 = vpack.c.b16 %v3580, %v3573
    %v4127 = vpack.c.b16 %v3581, %v3574
    %v4128 = vpack.c.b16 %v3582, %v3575
    %v4129 = vpack.c.b16 %v3590, %v3583
    %v4130 = vpack.c.b16 %v3591, %v3584
    %v4131 = vpack.c.b16 %v3592, %v3585
    %v4132 = vpack.c.b16 %v3593, %v3586
    %v4133 = vpack.c.b16 %v3594, %v3587
    %v4134 = vpack.c.b16 %v3595, %v3588
    %v4135 = vpack.c.b16 %v3596, %v3589
    %v4136 = vpack.c.b16 %v3604, %v3597
    %v4137 = vpack.c.b16 %v3605, %v3598
    %v4138 = vpack.c.b16 %v3606, %v3599
    %v4139 = vpack.c.b16 %v3607, %v3600
    %v4140 = vpack.c.b16 %v3608, %v3601
    %v4141 = vpack.c.b16 %v3609, %v3602
    %v4142 = vpack.c.b16 %v3610, %v3603
    %v4143 = vpack.c.b16 %v3618, %v3611
    %v4144 = vpack.c.b16 %v3619, %v3612
    %v4145 = vpack.c.b16 %v3620, %v3613
    %v4146 = vpack.c.b16 %v3621, %v3614
    %v4147 = vpack.c.b16 %v3622, %v3615
    %v4148 = vpack.c.b16 %v3623, %v3616
    %v4149 = vpack.c.b16 %v3624, %v3617
    %v4150 = vpack.c.b16 %v3632, %v3625
    %v4151 = vpack.c.b16 %v3633, %v3626
    %v4152 = vpack.c.b16 %v3634, %v3627
    %v4153 = vpack.c.b16 %v3635, %v3628
    %v4154 = vpack.c.b16 %v3636, %v3629
    %v4155 = vpack.c.b16 %v3637, %v3630
    %v4156 = vpack.c.b16 %v3638, %v3631
    %v4157 = vpack.c.b16 %v3646, %v3639
    %v4158 = vpack.c.b16 %v3647, %v3640
    %v4159 = vpack.c.b16 %v3648, %v3641
    %v4160 = vpack.c.b16 %v3649, %v3642
    %v4161 = vpack.c.b16 %v3650, %v3643
    %v4162 = vpack.c.b16 %v3651, %v3644
    %v4163 = vpack.c.b16 %v3652, %v3645
    %v4164 = vpack.c.b16 %v3660, %v3653
    %v4165 = vpack.c.b16 %v3661, %v3654
    %v4166 = vpack.c.b16 %v3662, %v3655
    %v4167 = vpack.c.b16 %v3663, %v3656
    %v4168 = vpack.c.b16 %v3664, %v3657
    %v4169 = vpack.c.b16 %v3665, %v3658
    %v4170 = vpack.c.b16 %v3666, %v3659
    %v4171 = vpack.c.b16 %v3674, %v3667
    %v4172 = vpack.c.b16 %v3675, %v3668
    %v4173 = vpack.c.b16 %v3676, %v3669
    %v4174 = vpack.c.b16 %v3677, %v3670
    %v4175 = vpack.c.b16 %v3678, %v3671
    %v4176 = vpack.c.b16 %v3679, %v3672
    %v4177 = vpack.c.b16 %v3680, %v3673
    %v4178 = vpack.c.b16 %v3688, %v3681
    %v4179 = vpack.c.b16 %v3689, %v3682
    %v4180 = vpack.c.b16 %v3690, %v3683
    %v4181 = vpack.c.b16 %v3691, %v3684
    %v4182 = vpack.c.b16 %v3692, %v3685
    %v4183 = vpack.c.b16 %v3693, %v3686
    %v4184 = vpack.c.b16 %v3694, %v3687
    %v4185 = vpack.c.b16 %v3702, %v3695
    %v4186 = vpack.c.b16 %v3703, %v3696
    %v4187 = vpack.c.b16 %v3704, %v3697
    %v4188 = vpack.c.b16 %v3705, %v3698
    %v4189 = vpack.c.b16 %v3706, %v3699
    %v4190 = vpack.c.b16 %v3707, %v3700
    %v4191 = vpack.c.b16 %v3708, %v3701
    %v4192 = vpack.c.b16 %v3716, %v3709
    %v4193 = vpack.c.b16 %v3717, %v3710
    %v4194 = vpack.c.b16 %v3718, %v3711
    %v4195 = vpack.c.b16 %v3719, %v3712
    %v4196 = vpack.c.b16 %v3720, %v3713
    %v4197 = vpack.c.b16 %v3721, %v3714
    %v4198 = vpack.c.b16 %v3722, %v3715
    %v4199 = vpack.c.b16 %v3730, %v3723
    %v4200 = vpack.c.b16 %v3731, %v3724
    %v4201 = vpack.c.b16 %v3732, %v3725
    %v4202 = vpack.c.b16 %v3733, %v3726
    %v4203 = vpack.c.b16 %v3734, %v3727
    %v4204 = vpack.c.b16 %v3735, %v3728
    %v4205 = vpack.c.b16 %v3736, %v3729
    %v4206 = vpack.c.b16 %v3744, %v3737
    %v4207 = vpack.c.b16 %v3745, %v3738
    %v4208 = vpack.c.b16 %v3746, %v3739
    %v4209 = vpack.c.b16 %v3747, %v3740
    %v4210 = vpack.c.b16 %v3748, %v3741
    %v4211 = vpack.c.b16 %v3749, %v3742
    %v4212 = vpack.c.b16 %v3750, %v3743
    %v4213 = vpack.c.b16 %v3758, %v3751
    %v4214 = vpack.c.b16 %v3759, %v3752
    %v4215 = vpack.c.b16 %v3760, %v3753
    %v4216 = vpack.c.b16 %v3761, %v3754
    %v4217 = vpack.c.b16 %v3762, %v3755
    %v4218 = vpack.c.b16 %v3763, %v3756
    %v4219 = vpack.c.b16 %v3764, %v3757
    %v4220 = vpack.c.b16 %v3772, %v3765
    %v4221 = vpack.c.b16 %v3773, %v3766
    %v4222 = vpack.c.b16 %v3774, %v3767
    %v4223 = vpack.c.b16 %v3775, %v3768
    %v4224 = vpack.c.b16 %v3776, %v3769
    %v4225 = vpack.c.b16 %v3777, %v3770
    %v4226 = vpack.c.b16 %v3778, %v3771
    %4675 = vmatprep.subr.bf16.mxu0 %v3780
    %4676 = vmatpush1.bf16.msra.mxu0 %v3779
    %4677 = vmatprep.subr.bf16.mxu0 %v3787
    %4678 = vmatpush1.bf16.msra.mxu0 %v3786
    %4679 = vmatprep.subr.bf16.mxu0 %v3794
    %4680 = vmatpush1.bf16.msra.mxu0 %v3793
    %4681 = vmatprep.subr.bf16.mxu0 %v3801
    %4682 = vmatpush1.bf16.msra.mxu0 %v3800
    %4683 = vmatprep.subr.bf16.mxu0 %v3808
    %4684 = vmatpush1.bf16.msra.mxu0 %v3807
    %4685 = vmatprep.subr.bf16.mxu0 %v3815
    %4686 = vmatpush1.bf16.msra.mxu0 %v3814
    %4687 = vmatprep.subr.bf16.mxu0 %v3822
    %4688 = vmatpush1.bf16.msra.mxu0 %v3821
    %4689 = vmatprep.subr.bf16.mxu0 %v3829
    %4690 = vmatpush1.bf16.msra.mxu0 %v3828
    %4691 = vmatprep.subr.bf16.mxu0 %v3836
    %4692 = vmatpush1.bf16.msra.mxu0 %v3835
    %4693 = vmatprep.subr.bf16.mxu0 %v3843
    %4694 = vmatpush1.bf16.msra.mxu0 %v3842
    %4695 = vmatprep.subr.bf16.mxu0 %v3850
    %4696 = vmatpush1.bf16.msra.mxu0 %v3849
    %4697 = vmatprep.subr.bf16.mxu0 %v3857
    %4698 = vmatpush1.bf16.msra.mxu0 %v3856
    %4699 = vmatprep.subr.bf16.mxu0 %v3864
    %4700 = vmatpush1.bf16.msra.mxu0 %v3863
    %4701 = vmatprep.subr.bf16.mxu0 %v3871
    %4702 = vmatpush1.bf16.msra.mxu0 %v3870
    %4703 = vmatprep.subr.bf16.mxu0 %v3878
    %4704 = vmatpush1.bf16.msra.mxu0 %v3877
    %4705 = vmatprep.subr.bf16.mxu0 %v3885
    %4706 = vmatpush1.bf16.msra.mxu0 %v3884
    %4707 = vmatprep.mubr.bf16.mxu0 %v1759
    %4708 = vmatmul.mubr.bf16.gmra.mrb[0].mxu0 %v1758
    %v4709 = vpop.f32.mrb[0].mxu0
    %v4710 = vadd.f32 %v2339, %v4709
    %v4711 = vpop.f32.mrb[0].mxu0
    %v4712 = vadd.f32 %v2343, %v4711
    %v4713 = vpop.f32.mrb[0].mxu0
    %v4714 = vadd.f32 %v2339, %v4713
    %v4715 = vpop.f32.mrb[0].mxu0
    %v4716 = vadd.f32 %v2343, %v4715
    %4717 = vmatprep.mubr.bf16.mxu0 %v1767
    %4718 = vmatmul.mubr.bf16.gmra.mrb[0].mxu0 %v1766
    %v4719 = vpop.f32.mrb[0].mxu0
    %v4720 = vadd.f32 %v2339, %v4719
    %v4721 = vpop.f32.mrb[0].mxu0
    %v4722 = vadd.f32 %v2343, %v4721
    %v4723 = vpop.f32.mrb[0].mxu0
    %v4724 = vadd.f32 %v2339, %v4723
    %v4725 = vpop.f32.mrb[0].mxu0
    %v4726 = vadd.f32 %v2343, %v4725
    %4727 = vmatprep.mubr.bf16.mxu0 %v1775
    %4728 = vmatmul.mubr.bf16.gmra.mrb[0].mxu0 %v1774
    %v4729 = vpop.f32.mrb[0].mxu0
    %v4730 = vadd.f32 %v2339, %v4729
    %v4731 = vpop.f32.mrb[0].mxu0
    %v4732 = vadd.f32 %v2343, %v4731
    %v4733 = vpop.f32.mrb[0].mxu0
    %v4734 = vadd.f32 %v2339, %v4733
    %v4735 = vpop.f32.mrb[0].mxu0
    %v4736 = vadd.f32 %v2343, %v4735
    %4737 = vmatprep.mubr.bf16.mxu0 %v1783
    %4738 = vmatmul.mubr.bf16.gmra.mrb[0].mxu0 %v1782
    %v4739 = vpop.f32.mrb[0].mxu0
    %v4740 = vadd.f32 %v2339, %v4739
    %v4741 = vpop.f32.mrb[0].mxu0
    %v4742 = vadd.f32 %v2343, %v4741
    %v4743 = vpop.f32.mrb[0].mxu0
    %v4744 = vadd.f32 %v2339, %v4743
    %v4745 = vpop.f32.mrb[0].mxu0
    %v4746 = vadd.f32 %v2343, %v4745
    %4747 = vmatprep.mubr.bf16.mxu0 %v1791
    %4748 = vmatmul.mubr.bf16.gmra.mrb[0].mxu0 %v1790
    %v4749 = vpop.f32.mrb[0].mxu0
    %v4750 = vadd.f32 %v2339, %v4749
    %v4751 = vpop.f32.mrb[0].mxu0
    %v4752 = vadd.f32 %v2343, %v4751
    %v4753 = vpop.f32.mrb[0].mxu0
    %v4754 = vadd.f32 %v2339, %v4753
    %v4755 = vpop.f32.mrb[0].mxu0
    %v4756 = vadd.f32 %v2343, %v4755
    %4757 = vmatprep.mubr.bf16.mxu0 %v1799
    %4758 = vmatmul.mubr.bf16.gmra.mrb[0].mxu0 %v1798
    %v4759 = vpop.f32.mrb[0].mxu0
    %v4760 = vadd.f32 %v2339, %v4759
    %v4761 = vpop.f32.mrb[0].mxu0
    %v4762 = vadd.f32 %v2343, %v4761
    %v4763 = vpop.f32.mrb[0].mxu0
    %v4764 = vadd.f32 %v2339, %v4763
    %v4765 = vpop.f32.mrb[0].mxu0
    %v4766 = vadd.f32 %v2343, %v4765
    %4767 = vmatprep.mubr.bf16.mxu0 %v1807
    %4768 = vmatmul.mubr.bf16.gmra.mrb[0].mxu0 %v1806
    %v4769 = vpop.f32.mrb[0].mxu0
    %v4770 = vadd.f32 %v2339, %v4769
    %v4771 = vpop.f32.mrb[0].mxu0
    %v4772 = vadd.f32 %v2343, %v4771
    %v4773 = vpop.f32.mrb[0].mxu0
    %v4774 = vadd.f32 %v2339, %v4773
    %v4775 = vpop.f32.mrb[0].mxu0
    %v4776 = vadd.f32 %v2343, %v4775
    %4777 = vmatprep.mubr.bf16.mxu0 %v1815
    %4778 = vmatmul.mubr.bf16.gmra.mrb[0].mxu0 %v1814
    %v4779 = vpop.f32.mrb[0].mxu0
    %v4780 = vadd.f32 %v2339, %v4779
    %v4781 = vpop.f32.mrb[0].mxu0
    %v4782 = vadd.f32 %v2343, %v4781
    %v4783 = vpop.f32.mrb[0].mxu0
    %v4784 = vadd.f32 %v2339, %v4783
    %v4785 = vpop.f32.mrb[0].mxu0
    %v4786 = vadd.f32 %v2343, %v4785
    %4787 = vdwg.mxu0
    %4788 = vmatprep.subr.bf16.mxu0 %v3892
    %4789 = vmatpush1.bf16.msra.mxu0 %v3891
    %4790 = vmatprep.subr.bf16.mxu0 %v3899
    %4791 = vmatpush1.bf16.msra.mxu0 %v3898
    %4792 = vmatprep.subr.bf16.mxu0 %v3906
    %4793 = vmatpush1.bf16.msra.mxu0 %v3905
    %4794 = vmatprep.subr.bf16.mxu0 %v3913
    %4795 = vmatpush1.bf16.msra.mxu0 %v3912
    %4796 = vmatprep.subr.bf16.mxu0 %v3920
    %4797 = vmatpush1.bf16.msra.mxu0 %v3919
    %4798 = vmatprep.subr.bf16.mxu0 %v3927
    %4799 = vmatpush1.bf16.msra.mxu0 %v3926
    %4800 = vmatprep.subr.bf16.mxu0 %v3934
    %4801 = vmatpush1.bf16.msra.mxu0 %v3933
    %4802 = vmatprep.subr.bf16.mxu0 %v3941
    %4803 = vmatpush1.bf16.msra.mxu0 %v3940
    %4804 = vmatprep.subr.bf16.mxu0 %v3948
    %4805 = vmatpush1.bf16.msra.mxu0 %v3947
    %4806 = vmatprep.subr.bf16.mxu0 %v3955
    %4807 = vmatpush1.bf16.msra.mxu0 %v3954
    %4808 = vmatprep.subr.bf16.mxu0 %v3962
    %4809 = vmatpush1.bf16.msra.mxu0 %v3961
    %4810 = vmatprep.subr.bf16.mxu0 %v3969
    %4811 = vmatpush1.bf16.msra.mxu0 %v3968
    %4812 = vmatprep.subr.bf16.mxu0 %v3976
    %4813 = vmatpush1.bf16.msra.mxu0 %v3975
    %4814 = vmatprep.subr.bf16.mxu0 %v3983
    %4815 = vmatpush1.bf16.msra.mxu0 %v3982
    %4816 = vmatprep.subr.bf16.mxu0 %v3990
    %4817 = vmatpush1.bf16.msra.mxu0 %v3989
    %4818 = vmatprep.subr.bf16.mxu0 %v3997
    %4819 = vmatpush1.bf16.msra.mxu0 %v3996
    %4820 = vmatprep.mubr.bf16.mxu0 %v1761
    %4821 = vmatmul.mubr.bf16.gmra.mrb[0].mxu0 %v1760
    %v4822 = vpop.f32.mrb[0].mxu0
    %v4823 = vadd.f32 %v4710, %v4822
    %v4824 = vpop.f32.mrb[0].mxu0
    %v4825 = vadd.f32 %v4712, %v4824
    %v4826 = vpop.f32.mrb[0].mxu0
    %v4827 = vadd.f32 %v4714, %v4826
    %v4828 = vpop.f32.mrb[0].mxu0
    %v4829 = vadd.f32 %v4716, %v4828
    %4830 = vmatprep.mubr.bf16.mxu0 %v1769
    %4831 = vmatmul.mubr.bf16.gmra.mrb[0].mxu0 %v1768
    %v4832 = vpop.f32.mrb[0].mxu0
    %v4833 = vadd.f32 %v4720, %v4832
    %v4834 = vpop.f32.mrb[0].mxu0
    %v4835 = vadd.f32 %v4722, %v4834
    %v4836 = vpop.f32.mrb[0].mxu0
    %v4837 = vadd.f32 %v4724, %v4836
    %v4838 = vpop.f32.mrb[0].mxu0
    %v4839 = vadd.f32 %v4726, %v4838
    %4840 = vmatprep.mubr.bf16.mxu0 %v1777
    %4841 = vmatmul.mubr.bf16.gmra.mrb[0].mxu0 %v1776
    %v4842 = vpop.f32.mrb[0].mxu0
    %v4843 = vadd.f32 %v4730, %v4842
    %v4844 = vpop.f32.mrb[0].mxu0
    %v4845 = vadd.f32 %v4732, %v4844
    %v4846 = vpop.f32.mrb[0].mxu0
    %v4847 = vadd.f32 %v4734, %v4846
    %v4848 = vpop.f32.mrb[0].mxu0
    %v4849 = vadd.f32 %v4736, %v4848
    %4850 = vmatprep.mubr.bf16.mxu0 %v1785
    %4851 = vmatmul.mubr.bf16.gmra.mrb[0].mxu0 %v1784
    %v4852 = vpop.f32.mrb[0].mxu0
    %v4853 = vadd.f32 %v4740, %v4852
    %v4854 = vpop.f32.mrb[0].mxu0
    %v4855 = vadd.f32 %v4742, %v4854
    %v4856 = vpop.f32.mrb[0].mxu0
    %v4857 = vadd.f32 %v4744, %v4856
    %v4858 = vpop.f32.mrb[0].mxu0
    %v4859 = vadd.f32 %v4746, %v4858
    %4860 = vmatprep.mubr.bf16.mxu0 %v1793
    %4861 = vmatmul.mubr.bf16.gmra.mrb[0].mxu0 %v1792
    %v4862 = vpop.f32.mrb[0].mxu0
    %v4863 = vadd.f32 %v4750, %v4862
    %v4864 = vpop.f32.mrb[0].mxu0
    %v4865 = vadd.f32 %v4752, %v4864
    %v4866 = vpop.f32.mrb[0].mxu0
    %v4867 = vadd.f32 %v4754, %v4866
    %v4868 = vpop.f32.mrb[0].mxu0
    %v4869 = vadd.f32 %v4756, %v4868
    %4870 = vmatprep.mubr.bf16.mxu0 %v1801
    %4871 = vmatmul.mubr.bf16.gmra.mrb[0].mxu0 %v1800
    %v4872 = vpop.f32.mrb[0].mxu0
    %v4873 = vadd.f32 %v4760, %v4872
    %v4874 = vpop.f32.mrb[0].mxu0
    %v4875 = vadd.f32 %v4762, %v4874
    %v4876 = vpop.f32.mrb[0].mxu0
    %v4877 = vadd.f32 %v4764, %v4876
    %v4878 = vpop.f32.mrb[0].mxu0
    %v4879 = vadd.f32 %v4766, %v4878
    %4880 = vmatprep.mubr.bf16.mxu0 %v1809
    %4881 = vmatmul.mubr.bf16.gmra.mrb[0].mxu0 %v1808
    %v4882 = vpop.f32.mrb[0].mxu0
    %v4883 = vadd.f32 %v4770, %v4882
    %v4884 = vpop.f32.mrb[0].mxu0
    %v4885 = vadd.f32 %v4772, %v4884
    %v4886 = vpop.f32.mrb[0].mxu0
    %v4887 = vadd.f32 %v4774, %v4886
    %v4888 = vpop.f32.mrb[0].mxu0
    %v4889 = vadd.f32 %v4776, %v4888
    %4890 = vmatprep.mubr.bf16.mxu0 %v1817
    %4891 = vmatmul.mubr.bf16.gmra.mrb[0].mxu0 %v1816
    %v4892 = vpop.f32.mrb[0].mxu0
    %v4893 = vadd.f32 %v4780, %v4892
    %v4894 = vpop.f32.mrb[0].mxu0
    %v4895 = vadd.f32 %v4782, %v4894
    %v4896 = vpop.f32.mrb[0].mxu0
    %v4897 = vadd.f32 %v4784, %v4896
    %v4898 = vpop.f32.mrb[0].mxu0
    %v4899 = vadd.f32 %v4786, %v4898
    %4900 = vdwg.mxu0
    %4901 = vmatprep.subr.bf16.mxu0 %v4004
    %4902 = vmatpush1.bf16.msra.mxu0 %v4003
    %4903 = vmatprep.subr.bf16.mxu0 %v4011
    %4904 = vmatpush1.bf16.msra.mxu0 %v4010
    %4905 = vmatprep.subr.bf16.mxu0 %v4018
    %4906 = vmatpush1.bf16.msra.mxu0 %v4017
    %4907 = vmatprep.subr.bf16.mxu0 %v4025
    %4908 = vmatpush1.bf16.msra.mxu0 %v4024
    %4909 = vmatprep.subr.bf16.mxu0 %v4032
    %4910 = vmatpush1.bf16.msra.mxu0 %v4031
    %4911 = vmatprep.subr.bf16.mxu0 %v4039
    %4912 = vmatpush1.bf16.msra.mxu0 %v4038
    %4913 = vmatprep.subr.bf16.mxu0 %v4046
    %4914 = vmatpush1.bf16.msra.mxu0 %v4045
    %4915 = vmatprep.subr.bf16.mxu0 %v4053
    %4916 = vmatpush1.bf16.msra.mxu0 %v4052
    %4917 = vmatprep.subr.bf16.mxu0 %v4060
    %4918 = vmatpush1.bf16.msra.mxu0 %v4059
    %4919 = vmatprep.subr.bf16.mxu0 %v4067
    %4920 = vmatpush1.bf16.msra.mxu0 %v4066
    %4921 = vmatprep.subr.bf16.mxu0 %v4074
    %4922 = vmatpush1.bf16.msra.mxu0 %v4073
    %4923 = vmatprep.subr.bf16.mxu0 %v4081
    %4924 = vmatpush1.bf16.msra.mxu0 %v4080
    %4925 = vmatprep.subr.bf16.mxu0 %v4088
    %4926 = vmatpush1.bf16.msra.mxu0 %v4087
    %4927 = vmatprep.subr.bf16.mxu0 %v4095
    %4928 = vmatpush1.bf16.msra.mxu0 %v4094
    %4929 = vmatprep.subr.bf16.mxu0 %v4102
    %4930 = vmatpush1.bf16.msra.mxu0 %v4101
    %4931 = vmatprep.subr.bf16.mxu0 %v4109
    %4932 = vmatpush1.bf16.msra.mxu0 %v4108
    %4933 = vmatprep.mubr.bf16.mxu0 %v1763
    %4934 = vmatmul.mubr.bf16.gmra.mrb[0].mxu0 %v1762
    %v4935 = vpop.f32.mrb[0].mxu0
    %v4936 = vadd.f32 %v4823, %v4935
    %v4937 = vpop.f32.mrb[0].mxu0
    %v4938 = vadd.f32 %v4825, %v4937
    %v4939 = vpop.f32.mrb[0].mxu0
    %v4940 = vadd.f32 %v4827, %v4939
    %v4941 = vpop.f32.mrb[0].mxu0
    %v4942 = vadd.f32 %v4829, %v4941
    %4943 = vmatprep.mubr.bf16.mxu0 %v1771
    %4944 = vmatmul.mubr.bf16.gmra.mrb[0].mxu0 %v1770
    %v4945 = vpop.f32.mrb[0].mxu0
    %v4946 = vadd.f32 %v4833, %v4945
    %v4947 = vpop.f32.mrb[0].mxu0
    %v4948 = vadd.f32 %v4835, %v4947
    %v4949 = vpop.f32.mrb[0].mxu0
    %v4950 = vadd.f32 %v4837, %v4949
    %v4951 = vpop.f32.mrb[0].mxu0
    %v4952 = vadd.f32 %v4839, %v4951
    %4953 = vmatprep.mubr.bf16.mxu0 %v1779
    %4954 = vmatmul.mubr.bf16.gmra.mrb[0].mxu0 %v1778
    %v4955 = vpop.f32.mrb[0].mxu0
    %v4956 = vadd.f32 %v4843, %v4955
    %v4957 = vpop.f32.mrb[0].mxu0
    %v4958 = vadd.f32 %v4845, %v4957
    %v4959 = vpop.f32.mrb[0].mxu0
    %v4960 = vadd.f32 %v4847, %v4959
    %v4961 = vpop.f32.mrb[0].mxu0
    %v4962 = vadd.f32 %v4849, %v4961
    %4963 = vmatprep.mubr.bf16.mxu0 %v1787
    %4964 = vmatmul.mubr.bf16.gmra.mrb[0].mxu0 %v1786
    %v4965 = vpop.f32.mrb[0].mxu0
    %v4966 = vadd.f32 %v4853, %v4965
    %v4967 = vpop.f32.mrb[0].mxu0
    %v4968 = vadd.f32 %v4855, %v4967
    %v4969 = vpop.f32.mrb[0].mxu0
    %v4970 = vadd.f32 %v4857, %v4969
    %v4971 = vpop.f32.mrb[0].mxu0
    %v4972 = vadd.f32 %v4859, %v4971
    %4973 = vmatprep.mubr.bf16.mxu0 %v1795
    %4974 = vmatmul.mubr.bf16.gmra.mrb[0].mxu0 %v1794
    %v4975 = vpop.f32.mrb[0].mxu0
    %v4976 = vadd.f32 %v4863, %v4975
    %v4977 = vpop.f32.mrb[0].mxu0
    %v4978 = vadd.f32 %v4865, %v4977
    %v4979 = vpop.f32.mrb[0].mxu0
    %v4980 = vadd.f32 %v4867, %v4979
    %v4981 = vpop.f32.mrb[0].mxu0
    %v4982 = vadd.f32 %v4869, %v4981
    %4983 = vmatprep.mubr.bf16.mxu0 %v1803
    %4984 = vmatmul.mubr.bf16.gmra.mrb[0].mxu0 %v1802
    %v4985 = vpop.f32.mrb[0].mxu0
    %v4986 = vadd.f32 %v4873, %v4985
    %v4987 = vpop.f32.mrb[0].mxu0
    %v4988 = vadd.f32 %v4875, %v4987
    %v4989 = vpop.f32.mrb[0].mxu0
    %v4990 = vadd.f32 %v4877, %v4989
    %v4991 = vpop.f32.mrb[0].mxu0
    %v4992 = vadd.f32 %v4879, %v4991
    %4993 = vmatprep.mubr.bf16.mxu0 %v1811
    %4994 = vmatmul.mubr.bf16.gmra.mrb[0].mxu0 %v1810
    %v4995 = vpop.f32.mrb[0].mxu0
    %v4996 = vadd.f32 %v4883, %v4995
    %v4997 = vpop.f32.mrb[0].mxu0
    %v4998 = vadd.f32 %v4885, %v4997
    %v4999 = vpop.f32.mrb[0].mxu0
    %v5000 = vadd.f32 %v4887, %v4999
    %v5001 = vpop.f32.mrb[0].mxu0
    %v5002 = vadd.f32 %v4889, %v5001
    %5003 = vmatprep.mubr.bf16.mxu0 %v1819
    %5004 = vmatmul.mubr.bf16.gmra.mrb[0].mxu0 %v1818
    %v5005 = vpop.f32.mrb[0].mxu0
    %v5006 = vadd.f32 %v4893, %v5005
    %v5007 = vpop.f32.mrb[0].mxu0
    %v5008 = vadd.f32 %v4895, %v5007
    %v5009 = vpop.f32.mrb[0].mxu0
    %v5010 = vadd.f32 %v4897, %v5009
    %v5011 = vpop.f32.mrb[0].mxu0
    %v5012 = vadd.f32 %v4899, %v5011
    %5013 = vdwg.mxu0
    %5014 = vmatprep.subr.bf16.mxu0 %v4116
    %5015 = vmatpush1.bf16.msra.mxu0 %v4115
    %5016 = vmatprep.subr.bf16.mxu0 %v4123
    %5017 = vmatpush1.bf16.msra.mxu0 %v4122
    %5018 = vmatprep.subr.bf16.mxu0 %v4130
    %5019 = vmatpush1.bf16.msra.mxu0 %v4129
    %5020 = vmatprep.subr.bf16.mxu0 %v4137
    %5021 = vmatpush1.bf16.msra.mxu0 %v4136
    %5022 = vmatprep.subr.bf16.mxu0 %v4144
    %5023 = vmatpush1.bf16.msra.mxu0 %v4143
    %5024 = vmatprep.subr.bf16.mxu0 %v4151
    %5025 = vmatpush1.bf16.msra.mxu0 %v4150
    %5026 = vmatprep.subr.bf16.mxu0 %v4158
    %5027 = vmatpush1.bf16.msra.mxu0 %v4157
    %5028 = vmatprep.subr.bf16.mxu0 %v4165
    %5029 = vmatpush1.bf16.msra.mxu0 %v4164
    %5030 = vmatprep.subr.bf16.mxu0 %v4172
    %5031 = vmatpush1.bf16.msra.mxu0 %v4171
    %5032 = vmatprep.subr.bf16.mxu0 %v4179
    %5033 = vmatpush1.bf16.msra.mxu0 %v4178
    %5034 = vmatprep.subr.bf16.mxu0 %v4186
    %5035 = vmatpush1.bf16.msra.mxu0 %v4185
    %5036 = vmatprep.subr.bf16.mxu0 %v4193
    %5037 = vmatpush1.bf16.msra.mxu0 %v4192
    %5038 = vmatprep.subr.bf16.mxu0 %v4200
    %5039 = vmatpush1.bf16.msra.mxu0 %v4199
    %5040 = vmatprep.subr.bf16.mxu0 %v4207
    %5041 = vmatpush1.bf16.msra.mxu0 %v4206
    %5042 = vmatprep.subr.bf16.mxu0 %v4214
    %5043 = vmatpush1.bf16.msra.mxu0 %v4213
    %5044 = vmatprep.subr.bf16.mxu0 %v4221
    %5045 = vmatpush1.bf16.msra.mxu0 %v4220
    %5046 = vmatprep.mubr.bf16.mxu0 %v1765
    %5047 = vmatmul.mubr.bf16.gmra.mrb[0].mxu0 %v1764
    %v5048 = vpop.f32.mrb[0].mxu0
    %v5049 = vadd.f32 %v4936, %v5048
    %v5050 = vpop.f32.mrb[0].mxu0
    %v5051 = vadd.f32 %v4938, %v5050
    %v5052 = vpop.f32.mrb[0].mxu0
    %v5053 = vadd.f32 %v4940, %v5052
    %v5054 = vpop.f32.mrb[0].mxu0
    %v5055 = vadd.f32 %v4942, %v5054
    %5056 = vmatprep.mubr.bf16.mxu0 %v1773
    %5057 = vmatmul.mubr.bf16.gmra.mrb[0].mxu0 %v1772
    %v5058 = vpop.f32.mrb[0].mxu0
    %v5059 = vadd.f32 %v4946, %v5058
    %v5060 = vpop.f32.mrb[0].mxu0
    %v5061 = vadd.f32 %v4948, %v5060
    %v5062 = vpop.f32.mrb[0].mxu0
    %v5063 = vadd.f32 %v4950, %v5062
    %v5064 = vpop.f32.mrb[0].mxu0
    %v5065 = vadd.f32 %v4952, %v5064
    %5066 = vmatprep.mubr.bf16.mxu0 %v1781
    %5067 = vmatmul.mubr.bf16.gmra.mrb[0].mxu0 %v1780
    %v5068 = vpop.f32.mrb[0].mxu0
    %v5069 = vadd.f32 %v4956, %v5068
    %v5070 = vpop.f32.mrb[0].mxu0
    %v5071 = vadd.f32 %v4958, %v5070
    %v5072 = vpop.f32.mrb[0].mxu0
    %v5073 = vadd.f32 %v4960, %v5072
    %v5074 = vpop.f32.mrb[0].mxu0
    %v5075 = vadd.f32 %v4962, %v5074
    %5076 = vmatprep.mubr.bf16.mxu0 %v1789
    %5077 = vmatmul.mubr.bf16.gmra.mrb[0].mxu0 %v1788
    %v5078 = vpop.f32.mrb[0].mxu0
    %v5079 = vadd.f32 %v4966, %v5078
    %v5080 = vpop.f32.mrb[0].mxu0
    %v5081 = vadd.f32 %v4968, %v5080
    %v5082 = vpop.f32.mrb[0].mxu0
    %v5083 = vadd.f32 %v4970, %v5082
    %v5084 = vpop.f32.mrb[0].mxu0
    %v5085 = vadd.f32 %v4972, %v5084
    %5086 = vmatprep.mubr.bf16.mxu0 %v1797
    %5087 = vmatmul.mubr.bf16.gmra.mrb[0].mxu0 %v1796
    %v5088 = vpop.f32.mrb[0].mxu0
    %v5089 = vadd.f32 %v4976, %v5088
    %v5090 = vpop.f32.mrb[0].mxu0
    %v5091 = vadd.f32 %v4978, %v5090
    %v5092 = vpop.f32.mrb[0].mxu0
    %v5093 = vadd.f32 %v4980, %v5092
    %v5094 = vpop.f32.mrb[0].mxu0
    %v5095 = vadd.f32 %v4982, %v5094
    %5096 = vmatprep.mubr.bf16.mxu0 %v1805
    %5097 = vmatmul.mubr.bf16.gmra.mrb[0].mxu0 %v1804
    %v5098 = vpop.f32.mrb[0].mxu0
    %v5099 = vadd.f32 %v4986, %v5098
    %v5100 = vpop.f32.mrb[0].mxu0
    %v5101 = vadd.f32 %v4988, %v5100
    %v5102 = vpop.f32.mrb[0].mxu0
    %v5103 = vadd.f32 %v4990, %v5102
    %v5104 = vpop.f32.mrb[0].mxu0
    %v5105 = vadd.f32 %v4992, %v5104
    %5106 = vmatprep.mubr.bf16.mxu0 %v1813
    %5107 = vmatmul.mubr.bf16.gmra.mrb[0].mxu0 %v1812
    %v5108 = vpop.f32.mrb[0].mxu0
    %v5109 = vadd.f32 %v4996, %v5108
    %v5110 = vpop.f32.mrb[0].mxu0
    %v5111 = vadd.f32 %v4998, %v5110
    %v5112 = vpop.f32.mrb[0].mxu0
    %v5113 = vadd.f32 %v5000, %v5112
    %v5114 = vpop.f32.mrb[0].mxu0
    %v5115 = vadd.f32 %v5002, %v5114
    %5116 = vmatprep.mubr.bf16.mxu0 %v1821
    %5117 = vmatmul.mubr.bf16.gmra.mrb[0].mxu0 %v1820
    %v5118 = vpop.f32.mrb[0].mxu0
    %v5119 = vadd.f32 %v5006, %v5118
    %v5120 = vpop.f32.mrb[0].mxu0
    %v5121 = vadd.f32 %v5008, %v5120
    %v5122 = vpop.f32.mrb[0].mxu0
    %v5123 = vadd.f32 %v5010, %v5122
    %v5124 = vpop.f32.mrb[0].mxu0
    %v5125 = vadd.f32 %v5012, %v5124
    %5126 = vdwg.mxu0
    %5127 = vmatprep.subr.bf16.mxu0 %v3782
    %5128 = vmatpush1.bf16.msra.mxu0 %v3781
    %5129 = vmatprep.subr.bf16.mxu0 %v3789
    %5130 = vmatpush1.bf16.msra.mxu0 %v3788
    %5131 = vmatprep.subr.bf16.mxu0 %v3796
    %5132 = vmatpush1.bf16.msra.mxu0 %v3795
    %5133 = vmatprep.subr.bf16.mxu0 %v3803
    %5134 = vmatpush1.bf16.msra.mxu0 %v3802
    %5135 = vmatprep.subr.bf16.mxu0 %v3810
    %5136 = vmatpush1.bf16.msra.mxu0 %v3809
    %5137 = vmatprep.subr.bf16.mxu0 %v3817
    %5138 = vmatpush1.bf16.msra.mxu0 %v3816
    %5139 = vmatprep.subr.bf16.mxu0 %v3824
    %5140 = vmatpush1.bf16.msra.mxu0 %v3823
    %5141 = vmatprep.subr.bf16.mxu0 %v3831
    %5142 = vmatpush1.bf16.msra.mxu0 %v3830
    %5143 = vmatprep.subr.bf16.mxu0 %v3838
    %5144 = vmatpush1.bf16.msra.mxu0 %v3837
    %5145 = vmatprep.subr.bf16.mxu0 %v3845
    %5146 = vmatpush1.bf16.msra.mxu0 %v3844
    %5147 = vmatprep.subr.bf16.mxu0 %v3852
    %5148 = vmatpush1.bf16.msra.mxu0 %v3851
    %5149 = vmatprep.subr.bf16.mxu0 %v3859
    %5150 = vmatpush1.bf16.msra.mxu0 %v3858
    %5151 = vmatprep.subr.bf16.mxu0 %v3866
    %5152 = vmatpush1.bf16.msra.mxu0 %v3865
    %5153 = vmatprep.subr.bf16.mxu0 %v3873
    %5154 = vmatpush1.bf16.msra.mxu0 %v3872
    %5155 = vmatprep.subr.bf16.mxu0 %v3880
    %5156 = vmatpush1.bf16.msra.mxu0 %v3879
    %5157 = vmatprep.subr.bf16.mxu0 %v3887
    %5158 = vmatpush1.bf16.msra.mxu0 %v3886
    %5159 = vmatprep.mubr.bf16.mxu0 %v1759
    %5160 = vmatmul.mubr.bf16.gmra.mrb[0].mxu0 %v1758
    %v5161 = vpop.f32.mrb[0].mxu0
    %v5162 = vadd.f32 %v2347, %v5161
    %v5163 = vpop.f32.mrb[0].mxu0
    %v5164 = vadd.f32 %v2351, %v5163
    %v5165 = vpop.f32.mrb[0].mxu0
    %v5166 = vadd.f32 %v2347, %v5165
    %v5167 = vpop.f32.mrb[0].mxu0
    %v5168 = vadd.f32 %v2351, %v5167
    %5169 = vmatprep.mubr.bf16.mxu0 %v1767
    %5170 = vmatmul.mubr.bf16.gmra.mrb[0].mxu0 %v1766
    %v5171 = vpop.f32.mrb[0].mxu0
    %v5172 = vadd.f32 %v2347, %v5171
    %v5173 = vpop.f32.mrb[0].mxu0
    %v5174 = vadd.f32 %v2351, %v5173
    %v5175 = vpop.f32.mrb[0].mxu0
    %v5176 = vadd.f32 %v2347, %v5175
    %v5177 = vpop.f32.mrb[0].mxu0
    %v5178 = vadd.f32 %v2351, %v5177
    %5179 = vmatprep.mubr.bf16.mxu0 %v1775
    %5180 = vmatmul.mubr.bf16.gmra.mrb[0].mxu0 %v1774
    %v5181 = vpop.f32.mrb[0].mxu0
    %v5182 = vadd.f32 %v2347, %v5181
    %v5183 = vpop.f32.mrb[0].mxu0
    %v5184 = vadd.f32 %v2351, %v5183
    %v5185 = vpop.f32.mrb[0].mxu0
    %v5186 = vadd.f32 %v2347, %v5185
    %v5187 = vpop.f32.mrb[0].mxu0
    %v5188 = vadd.f32 %v2351, %v5187
    %5189 = vmatprep.mubr.bf16.mxu0 %v1783
    %5190 = vmatmul.mubr.bf16.gmra.mrb[0].mxu0 %v1782
    %v5191 = vpop.f32.mrb[0].mxu0
    %v5192 = vadd.f32 %v2347, %v5191
    %v5193 = vpop.f32.mrb[0].mxu0
    %v5194 = vadd.f32 %v2351, %v5193
    %v5195 = vpop.f32.mrb[0].mxu0
    %v5196 = vadd.f32 %v2347, %v5195
    %v5197 = vpop.f32.mrb[0].mxu0
    %v5198 = vadd.f32 %v2351, %v5197
    %5199 = vmatprep.mubr.bf16.mxu0 %v1791
    %5200 = vmatmul.mubr.bf16.gmra.mrb[0].mxu0 %v1790
    %v5201 = vpop.f32.mrb[0].mxu0
    %v5202 = vadd.f32 %v2347, %v5201
    %v5203 = vpop.f32.mrb[0].mxu0
    %v5204 = vadd.f32 %v2351, %v5203
    %v5205 = vpop.f32.mrb[0].mxu0
    %v5206 = vadd.f32 %v2347, %v5205
    %v5207 = vpop.f32.mrb[0].mxu0
    %v5208 = vadd.f32 %v2351, %v5207
    %5209 = vmatprep.mubr.bf16.mxu0 %v1799
    %5210 = vmatmul.mubr.bf16.gmra.mrb[0].mxu0 %v1798
    %v5211 = vpop.f32.mrb[0].mxu0
    %v5212 = vadd.f32 %v2347, %v5211
    %v5213 = vpop.f32.mrb[0].mxu0
    %v5214 = vadd.f32 %v2351, %v5213
    %v5215 = vpop.f32.mrb[0].mxu0
    %v5216 = vadd.f32 %v2347, %v5215
    %v5217 = vpop.f32.mrb[0].mxu0
    %v5218 = vadd.f32 %v2351, %v5217
    %5219 = vmatprep.mubr.bf16.mxu0 %v1807
    %5220 = vmatmul.mubr.bf16.gmra.mrb[0].mxu0 %v1806
    %v5221 = vpop.f32.mrb[0].mxu0
    %v5222 = vadd.f32 %v2347, %v5221
    %v5223 = vpop.f32.mrb[0].mxu0
    %v5224 = vadd.f32 %v2351, %v5223
    %v5225 = vpop.f32.mrb[0].mxu0
    %v5226 = vadd.f32 %v2347, %v5225
    %v5227 = vpop.f32.mrb[0].mxu0
    %v5228 = vadd.f32 %v2351, %v5227
    %5229 = vmatprep.mubr.bf16.mxu0 %v1815
    %5230 = vmatmul.mubr.bf16.gmra.mrb[0].mxu0 %v1814
    %v5231 = vpop.f32.mrb[0].mxu0
    %v5232 = vadd.f32 %v2347, %v5231
    %v5233 = vpop.f32.mrb[0].mxu0
    %v5234 = vadd.f32 %v2351, %v5233
    %v5235 = vpop.f32.mrb[0].mxu0
    %v5236 = vadd.f32 %v2347, %v5235
    %v5237 = vpop.f32.mrb[0].mxu0
    %v5238 = vadd.f32 %v2351, %v5237
    %5239 = vdwg.mxu0
    %5240 = vmatprep.subr.bf16.mxu0 %v3894
    %5241 = vmatpush1.bf16.msra.mxu0 %v3893
    %5242 = vmatprep.subr.bf16.mxu0 %v3901
    %5243 = vmatpush1.bf16.msra.mxu0 %v3900
    %5244 = vmatprep.subr.bf16.mxu0 %v3908
    %5245 = vmatpush1.bf16.msra.mxu0 %v3907
    %5246 = vmatprep.subr.bf16.mxu0 %v3915
    %5247 = vmatpush1.bf16.msra.mxu0 %v3914
    %5248 = vmatprep.subr.bf16.mxu0 %v3922
    %5249 = vmatpush1.bf16.msra.mxu0 %v3921
    %5250 = vmatprep.subr.bf16.mxu0 %v3929
    %5251 = vmatpush1.bf16.msra.mxu0 %v3928
    %5252 = vmatprep.subr.bf16.mxu0 %v3936
    %5253 = vmatpush1.bf16.msra.mxu0 %v3935
    %5254 = vmatprep.subr.bf16.mxu0 %v3943
    %5255 = vmatpush1.bf16.msra.mxu0 %v3942
    %5256 = vmatprep.subr.bf16.mxu0 %v3950
    %5257 = vmatpush1.bf16.msra.mxu0 %v3949
    %5258 = vmatprep.subr.bf16.mxu0 %v3957
    %5259 = vmatpush1.bf16.msra.mxu0 %v3956
    %5260 = vmatprep.subr.bf16.mxu0 %v3964
    %5261 = vmatpush1.bf16.msra.mxu0 %v3963
    %5262 = vmatprep.subr.bf16.mxu0 %v3971
    %5263 = vmatpush1.bf16.msra.mxu0 %v3970
    %5264 = vmatprep.subr.bf16.mxu0 %v3978
    %5265 = vmatpush1.bf16.msra.mxu0 %v3977
    %5266 = vmatprep.subr.bf16.mxu0 %v3985
    %5267 = vmatpush1.bf16.msra.mxu0 %v3984
    %5268 = vmatprep.subr.bf16.mxu0 %v3992
    %5269 = vmatpush1.bf16.msra.mxu0 %v3991
    %5270 = vmatprep.subr.bf16.mxu0 %v3999
    %5271 = vmatpush1.bf16.msra.mxu0 %v3998
    %5272 = vmatprep.mubr.bf16.mxu0 %v1761
    %5273 = vmatmul.mubr.bf16.gmra.mrb[0].mxu0 %v1760
    %v5274 = vpop.f32.mrb[0].mxu0
    %v5275 = vadd.f32 %v5162, %v5274
    %v5276 = vpop.f32.mrb[0].mxu0
    %v5277 = vadd.f32 %v5164, %v5276
    %v5278 = vpop.f32.mrb[0].mxu0
    %v5279 = vadd.f32 %v5166, %v5278
    %v5280 = vpop.f32.mrb[0].mxu0
    %v5281 = vadd.f32 %v5168, %v5280
    %5282 = vmatprep.mubr.bf16.mxu0 %v1769
    %5283 = vmatmul.mubr.bf16.gmra.mrb[0].mxu0 %v1768
    %v5284 = vpop.f32.mrb[0].mxu0
    %v5285 = vadd.f32 %v5172, %v5284
    %v5286 = vpop.f32.mrb[0].mxu0
    %v5287 = vadd.f32 %v5174, %v5286
    %v5288 = vpop.f32.mrb[0].mxu0
    %v5289 = vadd.f32 %v5176, %v5288
    %v5290 = vpop.f32.mrb[0].mxu0
    %v5291 = vadd.f32 %v5178, %v5290
    %5292 = vmatprep.mubr.bf16.mxu0 %v1777
    %5293 = vmatmul.mubr.bf16.gmra.mrb[0].mxu0 %v1776
    %v5294 = vpop.f32.mrb[0].mxu0
    %v5295 = vadd.f32 %v5182, %v5294
    %v5296 = vpop.f32.mrb[0].mxu0
    %v5297 = vadd.f32 %v5184, %v5296
    %v5298 = vpop.f32.mrb[0].mxu0
    %v5299 = vadd.f32 %v5186, %v5298
    %v5300 = vpop.f32.mrb[0].mxu0
    %v5301 = vadd.f32 %v5188, %v5300
    %5302 = vmatprep.mubr.bf16.mxu0 %v1785
    %5303 = vmatmul.mubr.bf16.gmra.mrb[0].mxu0 %v1784
    %v5304 = vpop.f32.mrb[0].mxu0
    %v5305 = vadd.f32 %v5192, %v5304
    %v5306 = vpop.f32.mrb[0].mxu0
    %v5307 = vadd.f32 %v5194, %v5306
    %v5308 = vpop.f32.mrb[0].mxu0
    %v5309 = vadd.f32 %v5196, %v5308
    %v5310 = vpop.f32.mrb[0].mxu0
    %v5311 = vadd.f32 %v5198, %v5310
    %5312 = vmatprep.mubr.bf16.mxu0 %v1793
    %5313 = vmatmul.mubr.bf16.gmra.mrb[0].mxu0 %v1792
    %v5314 = vpop.f32.mrb[0].mxu0
    %v5315 = vadd.f32 %v5202, %v5314
    %v5316 = vpop.f32.mrb[0].mxu0
    %v5317 = vadd.f32 %v5204, %v5316
    %v5318 = vpop.f32.mrb[0].mxu0
    %v5319 = vadd.f32 %v5206, %v5318
    %v5320 = vpop.f32.mrb[0].mxu0
    %v5321 = vadd.f32 %v5208, %v5320
    %5322 = vmatprep.mubr.bf16.mxu0 %v1801
    %5323 = vmatmul.mubr.bf16.gmra.mrb[0].mxu0 %v1800
    %v5324 = vpop.f32.mrb[0].mxu0
    %v5325 = vadd.f32 %v5212, %v5324
    %v5326 = vpop.f32.mrb[0].mxu0
    %v5327 = vadd.f32 %v5214, %v5326
    %v5328 = vpop.f32.mrb[0].mxu0
    %v5329 = vadd.f32 %v5216, %v5328
    %v5330 = vpop.f32.mrb[0].mxu0
    %v5331 = vadd.f32 %v5218, %v5330
    %5332 = vmatprep.mubr.bf16.mxu0 %v1809
    %5333 = vmatmul.mubr.bf16.gmra.mrb[0].mxu0 %v1808
    %v5334 = vpop.f32.mrb[0].mxu0
    %v5335 = vadd.f32 %v5222, %v5334
    %v5336 = vpop.f32.mrb[0].mxu0
    %v5337 = vadd.f32 %v5224, %v5336
    %v5338 = vpop.f32.mrb[0].mxu0
    %v5339 = vadd.f32 %v5226, %v5338
    %v5340 = vpop.f32.mrb[0].mxu0
    %v5341 = vadd.f32 %v5228, %v5340
    %5342 = vmatprep.mubr.bf16.mxu0 %v1817
    %5343 = vmatmul.mubr.bf16.gmra.mrb[0].mxu0 %v1816
    %v5344 = vpop.f32.mrb[0].mxu0
    %v5345 = vadd.f32 %v5232, %v5344
    %v5346 = vpop.f32.mrb[0].mxu0
    %v5347 = vadd.f32 %v5234, %v5346
    %v5348 = vpop.f32.mrb[0].mxu0
    %v5349 = vadd.f32 %v5236, %v5348
    %v5350 = vpop.f32.mrb[0].mxu0
    %v5351 = vadd.f32 %v5238, %v5350
    %5352 = vdwg.mxu0
    %5353 = vmatprep.subr.bf16.mxu0 %v4006
    %5354 = vmatpush1.bf16.msra.mxu0 %v4005
    %5355 = vmatprep.subr.bf16.mxu0 %v4013
    %5356 = vmatpush1.bf16.msra.mxu0 %v4012
    %5357 = vmatprep.subr.bf16.mxu0 %v4020
    %5358 = vmatpush1.bf16.msra.mxu0 %v4019
    %5359 = vmatprep.subr.bf16.mxu0 %v4027
    %5360 = vmatpush1.bf16.msra.mxu0 %v4026
    %5361 = vmatprep.subr.bf16.mxu0 %v4034
    %5362 = vmatpush1.bf16.msra.mxu0 %v4033
    %5363 = vmatprep.subr.bf16.mxu0 %v4041
    %5364 = vmatpush1.bf16.msra.mxu0 %v4040
    %5365 = vmatprep.subr.bf16.mxu0 %v4048
    %5366 = vmatpush1.bf16.msra.mxu0 %v4047
    %5367 = vmatprep.subr.bf16.mxu0 %v4055
    %5368 = vmatpush1.bf16.msra.mxu0 %v4054
    %5369 = vmatprep.subr.bf16.mxu0 %v4062
    %5370 = vmatpush1.bf16.msra.mxu0 %v4061
    %5371 = vmatprep.subr.bf16.mxu0 %v4069
    %5372 = vmatpush1.bf16.msra.mxu0 %v4068
    %5373 = vmatprep.subr.bf16.mxu0 %v4076
    %5374 = vmatpush1.bf16.msra.mxu0 %v4075
    %5375 = vmatprep.subr.bf16.mxu0 %v4083
    %5376 = vmatpush1.bf16.msra.mxu0 %v4082
    %5377 = vmatprep.subr.bf16.mxu0 %v4090
    %5378 = vmatpush1.bf16.msra.mxu0 %v4089
    %5379 = vmatprep.subr.bf16.mxu0 %v4097
    %5380 = vmatpush1.bf16.msra.mxu0 %v4096
    %5381 = vmatprep.subr.bf16.mxu0 %v4104
    %5382 = vmatpush1.bf16.msra.mxu0 %v4103
    %5383 = vmatprep.subr.bf16.mxu0 %v4111
    %5384 = vmatpush1.bf16.msra.mxu0 %v4110
    %5385 = vmatprep.mubr.bf16.mxu0 %v1763
    %5386 = vmatmul.mubr.bf16.gmra.mrb[0].mxu0 %v1762
    %v5387 = vpop.f32.mrb[0].mxu0
    %v5388 = vadd.f32 %v5275, %v5387
    %v5389 = vpop.f32.mrb[0].mxu0
    %v5390 = vadd.f32 %v5277, %v5389
    %v5391 = vpop.f32.mrb[0].mxu0
    %v5392 = vadd.f32 %v5279, %v5391
    %v5393 = vpop.f32.mrb[0].mxu0
    %v5394 = vadd.f32 %v5281, %v5393
    %5395 = vmatprep.mubr.bf16.mxu0 %v1771
    %5396 = vmatmul.mubr.bf16.gmra.mrb[0].mxu0 %v1770
    %v5397 = vpop.f32.mrb[0].mxu0
    %v5398 = vadd.f32 %v5285, %v5397
    %v5399 = vpop.f32.mrb[0].mxu0
    %v5400 = vadd.f32 %v5287, %v5399
    %v5401 = vpop.f32.mrb[0].mxu0
    %v5402 = vadd.f32 %v5289, %v5401
    %v5403 = vpop.f32.mrb[0].mxu0
    %v5404 = vadd.f32 %v5291, %v5403
    %5405 = vmatprep.mubr.bf16.mxu0 %v1779
    %5406 = vmatmul.mubr.bf16.gmra.mrb[0].mxu0 %v1778
    %v5407 = vpop.f32.mrb[0].mxu0
    %v5408 = vadd.f32 %v5295, %v5407
    %v5409 = vpop.f32.mrb[0].mxu0
    %v5410 = vadd.f32 %v5297, %v5409
    %v5411 = vpop.f32.mrb[0].mxu0
    %v5412 = vadd.f32 %v5299, %v5411
    %v5413 = vpop.f32.mrb[0].mxu0
    %v5414 = vadd.f32 %v5301, %v5413
    %5415 = vmatprep.mubr.bf16.mxu0 %v1787
    %5416 = vmatmul.mubr.bf16.gmra.mrb[0].mxu0 %v1786
    %v5417 = vpop.f32.mrb[0].mxu0
    %v5418 = vadd.f32 %v5305, %v5417
    %v5419 = vpop.f32.mrb[0].mxu0
    %v5420 = vadd.f32 %v5307, %v5419
    %v5421 = vpop.f32.mrb[0].mxu0
    %v5422 = vadd.f32 %v5309, %v5421
    %v5423 = vpop.f32.mrb[0].mxu0
    %v5424 = vadd.f32 %v5311, %v5423
    %5425 = vmatprep.mubr.bf16.mxu0 %v1795
    %5426 = vmatmul.mubr.bf16.gmra.mrb[0].mxu0 %v1794
    %v5427 = vpop.f32.mrb[0].mxu0
    %v5428 = vadd.f32 %v5315, %v5427
    %v5429 = vpop.f32.mrb[0].mxu0
    %v5430 = vadd.f32 %v5317, %v5429
    %v5431 = vpop.f32.mrb[0].mxu0
    %v5432 = vadd.f32 %v5319, %v5431
    %v5433 = vpop.f32.mrb[0].mxu0
    %v5434 = vadd.f32 %v5321, %v5433
    %5435 = vmatprep.mubr.bf16.mxu0 %v1803
    %5436 = vmatmul.mubr.bf16.gmra.mrb[0].mxu0 %v1802
    %v5437 = vpop.f32.mrb[0].mxu0
    %v5438 = vadd.f32 %v5325, %v5437
    %v5439 = vpop.f32.mrb[0].mxu0
    %v5440 = vadd.f32 %v5327, %v5439
    %v5441 = vpop.f32.mrb[0].mxu0
    %v5442 = vadd.f32 %v5329, %v5441
    %v5443 = vpop.f32.mrb[0].mxu0
    %v5444 = vadd.f32 %v5331, %v5443
    %5445 = vmatprep.mubr.bf16.mxu0 %v1811
    %5446 = vmatmul.mubr.bf16.gmra.mrb[0].mxu0 %v1810
    %v5447 = vpop.f32.mrb[0].mxu0
    %v5448 = vadd.f32 %v5335, %v5447
    %v5449 = vpop.f32.mrb[0].mxu0
    %v5450 = vadd.f32 %v5337, %v5449
    %v5451 = vpop.f32.mrb[0].mxu0
    %v5452 = vadd.f32 %v5339, %v5451
    %v5453 = vpop.f32.mrb[0].mxu0
    %v5454 = vadd.f32 %v5341, %v5453
    %5455 = vmatprep.mubr.bf16.mxu0 %v1819
    %5456 = vmatmul.mubr.bf16.gmra.mrb[0].mxu0 %v1818
    %v5457 = vpop.f32.mrb[0].mxu0
    %v5458 = vadd.f32 %v5345, %v5457
    %v5459 = vpop.f32.mrb[0].mxu0
    %v5460 = vadd.f32 %v5347, %v5459
    %v5461 = vpop.f32.mrb[0].mxu0
    %v5462 = vadd.f32 %v5349, %v5461
    %v5463 = vpop.f32.mrb[0].mxu0
    %v5464 = vadd.f32 %v5351, %v5463
    %5465 = vdwg.mxu0
    %5466 = vmatprep.subr.bf16.mxu0 %v4118
    %5467 = vmatpush1.bf16.msra.mxu0 %v4117
    %5468 = vmatprep.subr.bf16.mxu0 %v4125
    %5469 = vmatpush1.bf16.msra.mxu0 %v4124
    %5470 = vmatprep.subr.bf16.mxu0 %v4132
    %5471 = vmatpush1.bf16.msra.mxu0 %v4131
    %5472 = vmatprep.subr.bf16.mxu0 %v4139
    %5473 = vmatpush1.bf16.msra.mxu0 %v4138
    %5474 = vmatprep.subr.bf16.mxu0 %v4146
    %5475 = vmatpush1.bf16.msra.mxu0 %v4145
    %5476 = vmatprep.subr.bf16.mxu0 %v4153
    %5477 = vmatpush1.bf16.msra.mxu0 %v4152
    %5478 = vmatprep.subr.bf16.mxu0 %v4160
    %5479 = vmatpush1.bf16.msra.mxu0 %v4159
    %5480 = vmatprep.subr.bf16.mxu0 %v4167
    %5481 = vmatpush1.bf16.msra.mxu0 %v4166
    %5482 = vmatprep.subr.bf16.mxu0 %v4174
    %5483 = vmatpush1.bf16.msra.mxu0 %v4173
    %5484 = vmatprep.subr.bf16.mxu0 %v4181
    %5485 = vmatpush1.bf16.msra.mxu0 %v4180
    %5486 = vmatprep.subr.bf16.mxu0 %v4188
    %5487 = vmatpush1.bf16.msra.mxu0 %v4187
    %5488 = vmatprep.subr.bf16.mxu0 %v4195
    %5489 = vmatpush1.bf16.msra.mxu0 %v4194
    %5490 = vmatprep.subr.bf16.mxu0 %v4202
    %5491 = vmatpush1.bf16.msra.mxu0 %v4201
    %5492 = vmatprep.subr.bf16.mxu0 %v4209
    %5493 = vmatpush1.bf16.msra.mxu0 %v4208
    %5494 = vmatprep.subr.bf16.mxu0 %v4216
    %5495 = vmatpush1.bf16.msra.mxu0 %v4215
    %5496 = vmatprep.subr.bf16.mxu0 %v4223
    %5497 = vmatpush1.bf16.msra.mxu0 %v4222
    %5498 = vmatprep.mubr.bf16.mxu0 %v1765
    %5499 = vmatmul.mubr.bf16.gmra.mrb[0].mxu0 %v1764
    %v5500 = vpop.f32.mrb[0].mxu0
    %v5501 = vadd.f32 %v5388, %v5500
    %v5502 = vpop.f32.mrb[0].mxu0
    %v5503 = vadd.f32 %v5390, %v5502
    %v5504 = vpop.f32.mrb[0].mxu0
    %v5505 = vadd.f32 %v5392, %v5504
    %v5506 = vpop.f32.mrb[0].mxu0
    %v5507 = vadd.f32 %v5394, %v5506
    %5508 = vmatprep.mubr.bf16.mxu0 %v1773
    %5509 = vmatmul.mubr.bf16.gmra.mrb[0].mxu0 %v1772
    %v5510 = vpop.f32.mrb[0].mxu0
    %v5511 = vadd.f32 %v5398, %v5510
    %v5512 = vpop.f32.mrb[0].mxu0
    %v5513 = vadd.f32 %v5400, %v5512
    %v5514 = vpop.f32.mrb[0].mxu0
    %v5515 = vadd.f32 %v5402, %v5514
    %v5516 = vpop.f32.mrb[0].mxu0
    %v5517 = vadd.f32 %v5404, %v5516
    %5518 = vmatprep.mubr.bf16.mxu0 %v1781
    %5519 = vmatmul.mubr.bf16.gmra.mrb[0].mxu0 %v1780
    %v5520 = vpop.f32.mrb[0].mxu0
    %v5521 = vadd.f32 %v5408, %v5520
    %v5522 = vpop.f32.mrb[0].mxu0
    %v5523 = vadd.f32 %v5410, %v5522
    %v5524 = vpop.f32.mrb[0].mxu0
    %v5525 = vadd.f32 %v5412, %v5524
    %v5526 = vpop.f32.mrb[0].mxu0
    %v5527 = vadd.f32 %v5414, %v5526
    %5528 = vmatprep.mubr.bf16.mxu0 %v1789
    %5529 = vmatmul.mubr.bf16.gmra.mrb[0].mxu0 %v1788
    %v5530 = vpop.f32.mrb[0].mxu0
    %v5531 = vadd.f32 %v5418, %v5530
    %v5532 = vpop.f32.mrb[0].mxu0
    %v5533 = vadd.f32 %v5420, %v5532
    %v5534 = vpop.f32.mrb[0].mxu0
    %v5535 = vadd.f32 %v5422, %v5534
    %v5536 = vpop.f32.mrb[0].mxu0
    %v5537 = vadd.f32 %v5424, %v5536
    %5538 = vmatprep.mubr.bf16.mxu0 %v1797
    %5539 = vmatmul.mubr.bf16.gmra.mrb[0].mxu0 %v1796
    %v5540 = vpop.f32.mrb[0].mxu0
    %v5541 = vadd.f32 %v5428, %v5540
    %v5542 = vpop.f32.mrb[0].mxu0
    %v5543 = vadd.f32 %v5430, %v5542
    %v5544 = vpop.f32.mrb[0].mxu0
    %v5545 = vadd.f32 %v5432, %v5544
    %v5546 = vpop.f32.mrb[0].mxu0
    %v5547 = vadd.f32 %v5434, %v5546
    %5548 = vmatprep.mubr.bf16.mxu0 %v1805
    %5549 = vmatmul.mubr.bf16.gmra.mrb[0].mxu0 %v1804
    %v5550 = vpop.f32.mrb[0].mxu0
    %v5551 = vadd.f32 %v5438, %v5550
    %v5552 = vpop.f32.mrb[0].mxu0
    %v5553 = vadd.f32 %v5440, %v5552
    %v5554 = vpop.f32.mrb[0].mxu0
    %v5555 = vadd.f32 %v5442, %v5554
    %v5556 = vpop.f32.mrb[0].mxu0
    %v5557 = vadd.f32 %v5444, %v5556
    %5558 = vmatprep.mubr.bf16.mxu0 %v1813
    %5559 = vmatmul.mubr.bf16.gmra.mrb[0].mxu0 %v1812
    %v5560 = vpop.f32.mrb[0].mxu0
    %v5561 = vadd.f32 %v5448, %v5560
    %v5562 = vpop.f32.mrb[0].mxu0
    %v5563 = vadd.f32 %v5450, %v5562
    %v5564 = vpop.f32.mrb[0].mxu0
    %v5565 = vadd.f32 %v5452, %v5564
    %v5566 = vpop.f32.mrb[0].mxu0
    %v5567 = vadd.f32 %v5454, %v5566
    %5568 = vmatprep.mubr.bf16.mxu0 %v1821
    %5569 = vmatmul.mubr.bf16.gmra.mrb[0].mxu0 %v1820
    %v5570 = vpop.f32.mrb[0].mxu0
    %v5571 = vadd.f32 %v5458, %v5570
    %v5572 = vpop.f32.mrb[0].mxu0
    %v5573 = vadd.f32 %v5460, %v5572
    %v5574 = vpop.f32.mrb[0].mxu0
    %v5575 = vadd.f32 %v5462, %v5574
    %v5576 = vpop.f32.mrb[0].mxu0
    %v5577 = vadd.f32 %v5464, %v5576
    %5578 = vdwg.mxu0
    %5579 = vmatprep.subr.bf16.mxu0 %v3784
    %5580 = vmatpush1.bf16.msra.mxu0 %v3783
    %5581 = vmatprep.subr.bf16.mxu0 %v3791
    %5582 = vmatpush1.bf16.msra.mxu0 %v3790
    %5583 = vmatprep.subr.bf16.mxu0 %v3798
    %5584 = vmatpush1.bf16.msra.mxu0 %v3797
    %5585 = vmatprep.subr.bf16.mxu0 %v3805
    %5586 = vmatpush1.bf16.msra.mxu0 %v3804
    %5587 = vmatprep.subr.bf16.mxu0 %v3812
    %5588 = vmatpush1.bf16.msra.mxu0 %v3811
    %5589 = vmatprep.subr.bf16.mxu0 %v3819
    %5590 = vmatpush1.bf16.msra.mxu0 %v3818
    %5591 = vmatprep.subr.bf16.mxu0 %v3826
    %5592 = vmatpush1.bf16.msra.mxu0 %v3825
    %5593 = vmatprep.subr.bf16.mxu0 %v3833
    %5594 = vmatpush1.bf16.msra.mxu0 %v3832
    %5595 = vmatprep.subr.bf16.mxu0 %v3840
    %5596 = vmatpush1.bf16.msra.mxu0 %v3839
    %5597 = vmatprep.subr.bf16.mxu0 %v3847
    %5598 = vmatpush1.bf16.msra.mxu0 %v3846
    %5599 = vmatprep.subr.bf16.mxu0 %v3854
    %5600 = vmatpush1.bf16.msra.mxu0 %v3853
    %5601 = vmatprep.subr.bf16.mxu0 %v3861
    %5602 = vmatpush1.bf16.msra.mxu0 %v3860
    %5603 = vmatprep.subr.bf16.mxu0 %v3868
    %5604 = vmatpush1.bf16.msra.mxu0 %v3867
    %5605 = vmatprep.subr.bf16.mxu0 %v3875
    %5606 = vmatpush1.bf16.msra.mxu0 %v3874
    %5607 = vmatprep.subr.bf16.mxu0 %v3882
    %5608 = vmatpush1.bf16.msra.mxu0 %v3881
    %5609 = vmatprep.subr.bf16.mxu0 %v3889
    %5610 = vmatpush1.bf16.msra.mxu0 %v3888
    %5611 = vmatprep.mubr.bf16.mxu0 %v1759
    %5612 = vmatmul.mubr.bf16.gmra.mrb[0].mxu0 %v1758
    %v5613 = vpop.f32.mrb[0].mxu0
    %v5614 = vadd.f32 %v2355, %v5613
    %v5615 = vpop.f32.mrb[0].mxu0
    %v5616 = vadd.f32 %v2359, %v5615
    %v5617 = vpop.f32.mrb[0].mxu0
    %v5618 = vadd.f32 %v2355, %v5617
    %v5619 = vpop.f32.mrb[0].mxu0
    %v5620 = vadd.f32 %v2359, %v5619
    %5621 = vmatprep.mubr.bf16.mxu0 %v1767
    %5622 = vmatmul.mubr.bf16.gmra.mrb[0].mxu0 %v1766
    %v5623 = vpop.f32.mrb[0].mxu0
    %v5624 = vadd.f32 %v2355, %v5623
    %v5625 = vpop.f32.mrb[0].mxu0
    %v5626 = vadd.f32 %v2359, %v5625
    %v5627 = vpop.f32.mrb[0].mxu0
    %v5628 = vadd.f32 %v2355, %v5627
    %v5629 = vpop.f32.mrb[0].mxu0
    %v5630 = vadd.f32 %v2359, %v5629
    %5631 = vmatprep.mubr.bf16.mxu0 %v1775
    %5632 = vmatmul.mubr.bf16.gmra.mrb[0].mxu0 %v1774
    %v5633 = vpop.f32.mrb[0].mxu0
    %v5634 = vadd.f32 %v2355, %v5633
    %v5635 = vpop.f32.mrb[0].mxu0
    %v5636 = vadd.f32 %v2359, %v5635
    %v5637 = vpop.f32.mrb[0].mxu0
    %v5638 = vadd.f32 %v2355, %v5637
    %v5639 = vpop.f32.mrb[0].mxu0
    %v5640 = vadd.f32 %v2359, %v5639
    %5641 = vmatprep.mubr.bf16.mxu0 %v1783
    %5642 = vmatmul.mubr.bf16.gmra.mrb[0].mxu0 %v1782
    %v5643 = vpop.f32.mrb[0].mxu0
    %v5644 = vadd.f32 %v2355, %v5643
    %v5645 = vpop.f32.mrb[0].mxu0
    %v5646 = vadd.f32 %v2359, %v5645
    %v5647 = vpop.f32.mrb[0].mxu0
    %v5648 = vadd.f32 %v2355, %v5647
    %v5649 = vpop.f32.mrb[0].mxu0
    %v5650 = vadd.f32 %v2359, %v5649
    %5651 = vmatprep.mubr.bf16.mxu0 %v1791
    %5652 = vmatmul.mubr.bf16.gmra.mrb[0].mxu0 %v1790
    %v5653 = vpop.f32.mrb[0].mxu0
    %v5654 = vadd.f32 %v2355, %v5653
    %v5655 = vpop.f32.mrb[0].mxu0
    %v5656 = vadd.f32 %v2359, %v5655
    %v5657 = vpop.f32.mrb[0].mxu0
    %v5658 = vadd.f32 %v2355, %v5657
    %v5659 = vpop.f32.mrb[0].mxu0
    %v5660 = vadd.f32 %v2359, %v5659
    %5661 = vmatprep.mubr.bf16.mxu0 %v1799
    %5662 = vmatmul.mubr.bf16.gmra.mrb[0].mxu0 %v1798
    %v5663 = vpop.f32.mrb[0].mxu0
    %v5664 = vadd.f32 %v2355, %v5663
    %v5665 = vpop.f32.mrb[0].mxu0
    %v5666 = vadd.f32 %v2359, %v5665
    %v5667 = vpop.f32.mrb[0].mxu0
    %v5668 = vadd.f32 %v2355, %v5667
    %v5669 = vpop.f32.mrb[0].mxu0
    %v5670 = vadd.f32 %v2359, %v5669
    %5671 = vmatprep.mubr.bf16.mxu0 %v1807
    %5672 = vmatmul.mubr.bf16.gmra.mrb[0].mxu0 %v1806
    %v5673 = vpop.f32.mrb[0].mxu0
    %v5674 = vadd.f32 %v2355, %v5673
    %v5675 = vpop.f32.mrb[0].mxu0
    %v5676 = vadd.f32 %v2359, %v5675
    %v5677 = vpop.f32.mrb[0].mxu0
    %v5678 = vadd.f32 %v2355, %v5677
    %v5679 = vpop.f32.mrb[0].mxu0
    %v5680 = vadd.f32 %v2359, %v5679
    %5681 = vmatprep.mubr.bf16.mxu0 %v1815
    %5682 = vmatmul.mubr.bf16.gmra.mrb[0].mxu0 %v1814
    %v5683 = vpop.f32.mrb[0].mxu0
    %v5684 = vadd.f32 %v2355, %v5683
    %v5685 = vpop.f32.mrb[0].mxu0
    %v5686 = vadd.f32 %v2359, %v5685
    %v5687 = vpop.f32.mrb[0].mxu0
    %v5688 = vadd.f32 %v2355, %v5687
    %v5689 = vpop.f32.mrb[0].mxu0
    %v5690 = vadd.f32 %v2359, %v5689
    %5691 = vdwg.mxu0
    %5692 = vmatprep.subr.bf16.mxu0 %v3896
    %5693 = vmatpush1.bf16.msra.mxu0 %v3895
    %5694 = vmatprep.subr.bf16.mxu0 %v3903
    %5695 = vmatpush1.bf16.msra.mxu0 %v3902
    %5696 = vmatprep.subr.bf16.mxu0 %v3910
    %5697 = vmatpush1.bf16.msra.mxu0 %v3909
    %5698 = vmatprep.subr.bf16.mxu0 %v3917
    %5699 = vmatpush1.bf16.msra.mxu0 %v3916
    %5700 = vmatprep.subr.bf16.mxu0 %v3924
    %5701 = vmatpush1.bf16.msra.mxu0 %v3923
    %5702 = vmatprep.subr.bf16.mxu0 %v3931
    %5703 = vmatpush1.bf16.msra.mxu0 %v3930
    %5704 = vmatprep.subr.bf16.mxu0 %v3938
    %5705 = vmatpush1.bf16.msra.mxu0 %v3937
    %5706 = vmatprep.subr.bf16.mxu0 %v3945
    %5707 = vmatpush1.bf16.msra.mxu0 %v3944
    %5708 = vmatprep.subr.bf16.mxu0 %v3952
    %5709 = vmatpush1.bf16.msra.mxu0 %v3951
    %5710 = vmatprep.subr.bf16.mxu0 %v3959
    %5711 = vmatpush1.bf16.msra.mxu0 %v3958
    %5712 = vmatprep.subr.bf16.mxu0 %v3966
    %5713 = vmatpush1.bf16.msra.mxu0 %v3965
    %5714 = vmatprep.subr.bf16.mxu0 %v3973
    %5715 = vmatpush1.bf16.msra.mxu0 %v3972
    %5716 = vmatprep.subr.bf16.mxu0 %v3980
    %5717 = vmatpush1.bf16.msra.mxu0 %v3979
    %5718 = vmatprep.subr.bf16.mxu0 %v3987
    %5719 = vmatpush1.bf16.msra.mxu0 %v3986
    %5720 = vmatprep.subr.bf16.mxu0 %v3994
    %5721 = vmatpush1.bf16.msra.mxu0 %v3993
    %5722 = vmatprep.subr.bf16.mxu0 %v4001
    %5723 = vmatpush1.bf16.msra.mxu0 %v4000
    %5724 = vmatprep.mubr.bf16.mxu0 %v1761
    %5725 = vmatmul.mubr.bf16.gmra.mrb[0].mxu0 %v1760
    %v5726 = vpop.f32.mrb[0].mxu0
    %v5727 = vadd.f32 %v5614, %v5726
    %v5728 = vpop.f32.mrb[0].mxu0
    %v5729 = vadd.f32 %v5616, %v5728
    %v5730 = vpop.f32.mrb[0].mxu0
    %v5731 = vadd.f32 %v5618, %v5730
    %v5732 = vpop.f32.mrb[0].mxu0
    %v5733 = vadd.f32 %v5620, %v5732
    %5734 = vmatprep.mubr.bf16.mxu0 %v1769
    %5735 = vmatmul.mubr.bf16.gmra.mrb[0].mxu0 %v1768
    %v5736 = vpop.f32.mrb[0].mxu0
    %v5737 = vadd.f32 %v5624, %v5736
    %v5738 = vpop.f32.mrb[0].mxu0
    %v5739 = vadd.f32 %v5626, %v5738
    %v5740 = vpop.f32.mrb[0].mxu0
    %v5741 = vadd.f32 %v5628, %v5740
    %v5742 = vpop.f32.mrb[0].mxu0
    %v5743 = vadd.f32 %v5630, %v5742
    %5744 = vmatprep.mubr.bf16.mxu0 %v1777
    %5745 = vmatmul.mubr.bf16.gmra.mrb[0].mxu0 %v1776
    %v5746 = vpop.f32.mrb[0].mxu0
    %v5747 = vadd.f32 %v5634, %v5746
    %v5748 = vpop.f32.mrb[0].mxu0
    %v5749 = vadd.f32 %v5636, %v5748
    %v5750 = vpop.f32.mrb[0].mxu0
    %v5751 = vadd.f32 %v5638, %v5750
    %v5752 = vpop.f32.mrb[0].mxu0
    %v5753 = vadd.f32 %v5640, %v5752
    %5754 = vmatprep.mubr.bf16.mxu0 %v1785
    %5755 = vmatmul.mubr.bf16.gmra.mrb[0].mxu0 %v1784
    %v5756 = vpop.f32.mrb[0].mxu0
    %v5757 = vadd.f32 %v5644, %v5756
    %v5758 = vpop.f32.mrb[0].mxu0
    %v5759 = vadd.f32 %v5646, %v5758
    %v5760 = vpop.f32.mrb[0].mxu0
    %v5761 = vadd.f32 %v5648, %v5760
    %v5762 = vpop.f32.mrb[0].mxu0
    %v5763 = vadd.f32 %v5650, %v5762
    %5764 = vmatprep.mubr.bf16.mxu0 %v1793
    %5765 = vmatmul.mubr.bf16.gmra.mrb[0].mxu0 %v1792
    %v5766 = vpop.f32.mrb[0].mxu0
    %v5767 = vadd.f32 %v5654, %v5766
    %v5768 = vpop.f32.mrb[0].mxu0
    %v5769 = vadd.f32 %v5656, %v5768
    %v5770 = vpop.f32.mrb[0].mxu0
    %v5771 = vadd.f32 %v5658, %v5770
    %v5772 = vpop.f32.mrb[0].mxu0
    %v5773 = vadd.f32 %v5660, %v5772
    %5774 = vmatprep.mubr.bf16.mxu0 %v1801
    %5775 = vmatmul.mubr.bf16.gmra.mrb[0].mxu0 %v1800
    %v5776 = vpop.f32.mrb[0].mxu0
    %v5777 = vadd.f32 %v5664, %v5776
    %v5778 = vpop.f32.mrb[0].mxu0
    %v5779 = vadd.f32 %v5666, %v5778
    %v5780 = vpop.f32.mrb[0].mxu0
    %v5781 = vadd.f32 %v5668, %v5780
    %v5782 = vpop.f32.mrb[0].mxu0
    %v5783 = vadd.f32 %v5670, %v5782
    %5784 = vmatprep.mubr.bf16.mxu0 %v1809
    %5785 = vmatmul.mubr.bf16.gmra.mrb[0].mxu0 %v1808
    %v5786 = vpop.f32.mrb[0].mxu0
    %v5787 = vadd.f32 %v5674, %v5786
    %v5788 = vpop.f32.mrb[0].mxu0
    %v5789 = vadd.f32 %v5676, %v5788
    %v5790 = vpop.f32.mrb[0].mxu0
    %v5791 = vadd.f32 %v5678, %v5790
    %v5792 = vpop.f32.mrb[0].mxu0
    %v5793 = vadd.f32 %v5680, %v5792
    %5794 = vmatprep.mubr.bf16.mxu0 %v1817
    %5795 = vmatmul.mubr.bf16.gmra.mrb[0].mxu0 %v1816
    %v5796 = vpop.f32.mrb[0].mxu0
    %v5797 = vadd.f32 %v5684, %v5796
    %v5798 = vpop.f32.mrb[0].mxu0
    %v5799 = vadd.f32 %v5686, %v5798
    %v5800 = vpop.f32.mrb[0].mxu0
    %v5801 = vadd.f32 %v5688, %v5800
    %v5802 = vpop.f32.mrb[0].mxu0
    %v5803 = vadd.f32 %v5690, %v5802
    %5804 = vdwg.mxu0
    %5805 = vmatprep.subr.bf16.mxu0 %v4008
    %5806 = vmatpush1.bf16.msra.mxu0 %v4007
    %5807 = vmatprep.subr.bf16.mxu0 %v4015
    %5808 = vmatpush1.bf16.msra.mxu0 %v4014
    %5809 = vmatprep.subr.bf16.mxu0 %v4022
    %5810 = vmatpush1.bf16.msra.mxu0 %v4021
    %5811 = vmatprep.subr.bf16.mxu0 %v4029
    %5812 = vmatpush1.bf16.msra.mxu0 %v4028
    %5813 = vmatprep.subr.bf16.mxu0 %v4036
    %5814 = vmatpush1.bf16.msra.mxu0 %v4035
    %5815 = vmatprep.subr.bf16.mxu0 %v4043
    %5816 = vmatpush1.bf16.msra.mxu0 %v4042
    %5817 = vmatprep.subr.bf16.mxu0 %v4050
    %5818 = vmatpush1.bf16.msra.mxu0 %v4049
    %5819 = vmatprep.subr.bf16.mxu0 %v4057
    %5820 = vmatpush1.bf16.msra.mxu0 %v4056
    %5821 = vmatprep.subr.bf16.mxu0 %v4064
    %5822 = vmatpush1.bf16.msra.mxu0 %v4063
    %5823 = vmatprep.subr.bf16.mxu0 %v4071
    %5824 = vmatpush1.bf16.msra.mxu0 %v4070
    %5825 = vmatprep.subr.bf16.mxu0 %v4078
    %5826 = vmatpush1.bf16.msra.mxu0 %v4077
    %5827 = vmatprep.subr.bf16.mxu0 %v4085
    %5828 = vmatpush1.bf16.msra.mxu0 %v4084
    %5829 = vmatprep.subr.bf16.mxu0 %v4092
    %5830 = vmatpush1.bf16.msra.mxu0 %v4091
    %5831 = vmatprep.subr.bf16.mxu0 %v4099
    %5832 = vmatpush1.bf16.msra.mxu0 %v4098
    %5833 = vmatprep.subr.bf16.mxu0 %v4106
    %5834 = vmatpush1.bf16.msra.mxu0 %v4105
    %5835 = vmatprep.subr.bf16.mxu0 %v4113
    %5836 = vmatpush1.bf16.msra.mxu0 %v4112
    %5837 = vmatprep.mubr.bf16.mxu0 %v1763
    %5838 = vmatmul.mubr.bf16.gmra.mrb[0].mxu0 %v1762
    %v5839 = vpop.f32.mrb[0].mxu0
    %v5840 = vadd.f32 %v5727, %v5839
    %v5841 = vpop.f32.mrb[0].mxu0
    %v5842 = vadd.f32 %v5729, %v5841
    %v5843 = vpop.f32.mrb[0].mxu0
    %v5844 = vadd.f32 %v5731, %v5843
    %v5845 = vpop.f32.mrb[0].mxu0
    %v5846 = vadd.f32 %v5733, %v5845
    %5847 = vmatprep.mubr.bf16.mxu0 %v1771
    %5848 = vmatmul.mubr.bf16.gmra.mrb[0].mxu0 %v1770
    %v5849 = vpop.f32.mrb[0].mxu0
    %v5850 = vadd.f32 %v5737, %v5849
    %v5851 = vpop.f32.mrb[0].mxu0
    %v5852 = vadd.f32 %v5739, %v5851
    %v5853 = vpop.f32.mrb[0].mxu0
    %v5854 = vadd.f32 %v5741, %v5853
    %v5855 = vpop.f32.mrb[0].mxu0
    %v5856 = vadd.f32 %v5743, %v5855
    %5857 = vmatprep.mubr.bf16.mxu0 %v1779
    %5858 = vmatmul.mubr.bf16.gmra.mrb[0].mxu0 %v1778
    %v5859 = vpop.f32.mrb[0].mxu0
    %v5860 = vadd.f32 %v5747, %v5859
    %v5861 = vpop.f32.mrb[0].mxu0
    %v5862 = vadd.f32 %v5749, %v5861
    %v5863 = vpop.f32.mrb[0].mxu0
    %v5864 = vadd.f32 %v5751, %v5863
    %v5865 = vpop.f32.mrb[0].mxu0
    %v5866 = vadd.f32 %v5753, %v5865
    %5867 = vmatprep.mubr.bf16.mxu0 %v1787
    %5868 = vmatmul.mubr.bf16.gmra.mrb[0].mxu0 %v1786
    %v5869 = vpop.f32.mrb[0].mxu0
    %v5870 = vadd.f32 %v5757, %v5869
    %v5871 = vpop.f32.mrb[0].mxu0
    %v5872 = vadd.f32 %v5759, %v5871
    %v5873 = vpop.f32.mrb[0].mxu0
    %v5874 = vadd.f32 %v5761, %v5873
    %v5875 = vpop.f32.mrb[0].mxu0
    %v5876 = vadd.f32 %v5763, %v5875
    %5877 = vmatprep.mubr.bf16.mxu0 %v1795
    %5878 = vmatmul.mubr.bf16.gmra.mrb[0].mxu0 %v1794
    %v5879 = vpop.f32.mrb[0].mxu0
    %v5880 = vadd.f32 %v5767, %v5879
    %v5881 = vpop.f32.mrb[0].mxu0
    %v5882 = vadd.f32 %v5769, %v5881
    %v5883 = vpop.f32.mrb[0].mxu0
    %v5884 = vadd.f32 %v5771, %v5883
    %v5885 = vpop.f32.mrb[0].mxu0
    %v5886 = vadd.f32 %v5773, %v5885
    %5887 = vmatprep.mubr.bf16.mxu0 %v1803
    %5888 = vmatmul.mubr.bf16.gmra.mrb[0].mxu0 %v1802
    %v5889 = vpop.f32.mrb[0].mxu0
    %v5890 = vadd.f32 %v5777, %v5889
    %v5891 = vpop.f32.mrb[0].mxu0
    %v5892 = vadd.f32 %v5779, %v5891
    %v5893 = vpop.f32.mrb[0].mxu0
    %v5894 = vadd.f32 %v5781, %v5893
    %v5895 = vpop.f32.mrb[0].mxu0
    %v5896 = vadd.f32 %v5783, %v5895
    %5897 = vmatprep.mubr.bf16.mxu0 %v1811
    %5898 = vmatmul.mubr.bf16.gmra.mrb[0].mxu0 %v1810
    %v5899 = vpop.f32.mrb[0].mxu0
    %v5900 = vadd.f32 %v5787, %v5899
    %v5901 = vpop.f32.mrb[0].mxu0
    %v5902 = vadd.f32 %v5789, %v5901
    %v5903 = vpop.f32.mrb[0].mxu0
    %v5904 = vadd.f32 %v5791, %v5903
    %v5905 = vpop.f32.mrb[0].mxu0
    %v5906 = vadd.f32 %v5793, %v5905
    %5907 = vmatprep.mubr.bf16.mxu0 %v1819
    %5908 = vmatmul.mubr.bf16.gmra.mrb[0].mxu0 %v1818
    %v5909 = vpop.f32.mrb[0].mxu0
    %v5910 = vadd.f32 %v5797, %v5909
    %v5911 = vpop.f32.mrb[0].mxu0
    %v5912 = vadd.f32 %v5799, %v5911
    %v5913 = vpop.f32.mrb[0].mxu0
    %v5914 = vadd.f32 %v5801, %v5913
    %v5915 = vpop.f32.mrb[0].mxu0
    %v5916 = vadd.f32 %v5803, %v5915
    %5917 = vdwg.mxu0
    %5918 = vmatprep.subr.bf16.mxu0 %v4120
    %5919 = vmatpush1.bf16.msra.mxu0 %v4119
    %5920 = vmatprep.subr.bf16.mxu0 %v4127
    %5921 = vmatpush1.bf16.msra.mxu0 %v4126
    %5922 = vmatprep.subr.bf16.mxu0 %v4134
    %5923 = vmatpush1.bf16.msra.mxu0 %v4133
    %5924 = vmatprep.subr.bf16.mxu0 %v4141
    %5925 = vmatpush1.bf16.msra.mxu0 %v4140
    %5926 = vmatprep.subr.bf16.mxu0 %v4148
    %5927 = vmatpush1.bf16.msra.mxu0 %v4147
    %5928 = vmatprep.subr.bf16.mxu0 %v4155
    %5929 = vmatpush1.bf16.msra.mxu0 %v4154
    %5930 = vmatprep.subr.bf16.mxu0 %v4162
    %5931 = vmatpush1.bf16.msra.mxu0 %v4161
    %5932 = vmatprep.subr.bf16.mxu0 %v4169
    %5933 = vmatpush1.bf16.msra.mxu0 %v4168
    %5934 = vmatprep.subr.bf16.mxu0 %v4176
    %5935 = vmatpush1.bf16.msra.mxu0 %v4175
    %5936 = vmatprep.subr.bf16.mxu0 %v4183
    %5937 = vmatpush1.bf16.msra.mxu0 %v4182
    %5938 = vmatprep.subr.bf16.mxu0 %v4190
    %5939 = vmatpush1.bf16.msra.mxu0 %v4189
    %5940 = vmatprep.subr.bf16.mxu0 %v4197
    %5941 = vmatpush1.bf16.msra.mxu0 %v4196
    %5942 = vmatprep.subr.bf16.mxu0 %v4204
    %5943 = vmatpush1.bf16.msra.mxu0 %v4203
    %5944 = vmatprep.subr.bf16.mxu0 %v4211
    %5945 = vmatpush1.bf16.msra.mxu0 %v4210
    %5946 = vmatprep.subr.bf16.mxu0 %v4218
    %5947 = vmatpush1.bf16.msra.mxu0 %v4217
    %5948 = vmatprep.subr.bf16.mxu0 %v4225
    %5949 = vmatpush1.bf16.msra.mxu0 %v4224
    %5950 = vmatprep.mubr.bf16.mxu0 %v1765
    %5951 = vmatmul.mubr.bf16.gmra.mrb[0].mxu0 %v1764
    %v5952 = vpop.f32.mrb[0].mxu0
    %v5953 = vadd.f32 %v5840, %v5952
    %v5954 = vpop.f32.mrb[0].mxu0
    %v5955 = vadd.f32 %v5842, %v5954
    %v5956 = vpop.f32.mrb[0].mxu0
    %v5957 = vadd.f32 %v5844, %v5956
    %v5958 = vpop.f32.mrb[0].mxu0
    %v5959 = vadd.f32 %v5846, %v5958
    %5960 = vmatprep.mubr.bf16.mxu0 %v1773
    %5961 = vmatmul.mubr.bf16.gmra.mrb[0].mxu0 %v1772
    %v5962 = vpop.f32.mrb[0].mxu0
    %v5963 = vadd.f32 %v5850, %v5962
    %v5964 = vpop.f32.mrb[0].mxu0
    %v5965 = vadd.f32 %v5852, %v5964
    %v5966 = vpop.f32.mrb[0].mxu0
    %v5967 = vadd.f32 %v5854, %v5966
    %v5968 = vpop.f32.mrb[0].mxu0
    %v5969 = vadd.f32 %v5856, %v5968
    %5970 = vmatprep.mubr.bf16.mxu0 %v1781
    %5971 = vmatmul.mubr.bf16.gmra.mrb[0].mxu0 %v1780
    %v5972 = vpop.f32.mrb[0].mxu0
    %v5973 = vadd.f32 %v5860, %v5972
    %v5974 = vpop.f32.mrb[0].mxu0
    %v5975 = vadd.f32 %v5862, %v5974
    %v5976 = vpop.f32.mrb[0].mxu0
    %v5977 = vadd.f32 %v5864, %v5976
    %v5978 = vpop.f32.mrb[0].mxu0
    %v5979 = vadd.f32 %v5866, %v5978
    %5980 = vmatprep.mubr.bf16.mxu0 %v1789
    %5981 = vmatmul.mubr.bf16.gmra.mrb[0].mxu0 %v1788
    %v5982 = vpop.f32.mrb[0].mxu0
    %v5983 = vadd.f32 %v5870, %v5982
    %v5984 = vpop.f32.mrb[0].mxu0
    %v5985 = vadd.f32 %v5872, %v5984
    %v5986 = vpop.f32.mrb[0].mxu0
    %v5987 = vadd.f32 %v5874, %v5986
    %v5988 = vpop.f32.mrb[0].mxu0
    %v5989 = vadd.f32 %v5876, %v5988
    %5990 = vmatprep.mubr.bf16.mxu0 %v1797
    %5991 = vmatmul.mubr.bf16.gmra.mrb[0].mxu0 %v1796
    %v5992 = vpop.f32.mrb[0].mxu0
    %v5993 = vadd.f32 %v5880, %v5992
    %v5994 = vpop.f32.mrb[0].mxu0
    %v5995 = vadd.f32 %v5882, %v5994
    %v5996 = vpop.f32.mrb[0].mxu0
    %v5997 = vadd.f32 %v5884, %v5996
    %v5998 = vpop.f32.mrb[0].mxu0
    %v5999 = vadd.f32 %v5886, %v5998
    %6000 = vmatprep.mubr.bf16.mxu0 %v1805
    %6001 = vmatmul.mubr.bf16.gmra.mrb[0].mxu0 %v1804
    %v6002 = vpop.f32.mrb[0].mxu0
    %v6003 = vadd.f32 %v5890, %v6002
    %v6004 = vpop.f32.mrb[0].mxu0
    %v6005 = vadd.f32 %v5892, %v6004
    %v6006 = vpop.f32.mrb[0].mxu0
    %v6007 = vadd.f32 %v5894, %v6006
    %v6008 = vpop.f32.mrb[0].mxu0
    %v6009 = vadd.f32 %v5896, %v6008
    %6010 = vmatprep.mubr.bf16.mxu0 %v1813
    %6011 = vmatmul.mubr.bf16.gmra.mrb[0].mxu0 %v1812
    %v6012 = vpop.f32.mrb[0].mxu0
    %v6013 = vadd.f32 %v5900, %v6012
    %v6014 = vpop.f32.mrb[0].mxu0
    %v6015 = vadd.f32 %v5902, %v6014
    %v6016 = vpop.f32.mrb[0].mxu0
    %v6017 = vadd.f32 %v5904, %v6016
    %v6018 = vpop.f32.mrb[0].mxu0
    %v6019 = vadd.f32 %v5906, %v6018
    %6020 = vmatprep.mubr.bf16.mxu0 %v1821
    %6021 = vmatmul.mubr.bf16.gmra.mrb[0].mxu0 %v1820
    %v6022 = vpop.f32.mrb[0].mxu0
    %v6023 = vadd.f32 %v5910, %v6022
    %v6024 = vpop.f32.mrb[0].mxu0
    %v6025 = vadd.f32 %v5912, %v6024
    %v6026 = vpop.f32.mrb[0].mxu0
    %v6027 = vadd.f32 %v5914, %v6026
    %v6028 = vpop.f32.mrb[0].mxu0
    %v6029 = vadd.f32 %v5916, %v6028
    %6030 = vdwg.mxu0
    %6031 = vmatprep.subr.bf16.mxu0 0
    %6032 = vmatpush1.bf16.msra.mxu0 %v3785
    %6033 = vmatprep.subr.bf16.mxu0 0
    %6034 = vmatpush1.bf16.msra.mxu0 %v3792
    %6035 = vmatprep.subr.bf16.mxu0 0
    %6036 = vmatpush1.bf16.msra.mxu0 %v3799
    %6037 = vmatprep.subr.bf16.mxu0 0
    %6038 = vmatpush1.bf16.msra.mxu0 %v3806
    %6039 = vmatprep.subr.bf16.mxu0 0
    %6040 = vmatpush1.bf16.msra.mxu0 %v3813
    %6041 = vmatprep.subr.bf16.mxu0 0
    %6042 = vmatpush1.bf16.msra.mxu0 %v3820
    %6043 = vmatprep.subr.bf16.mxu0 0
    %6044 = vmatpush1.bf16.msra.mxu0 %v3827
    %6045 = vmatprep.subr.bf16.mxu0 0
    %6046 = vmatpush1.bf16.msra.mxu0 %v3834
    %6047 = vmatprep.subr.bf16.mxu0 0
    %6048 = vmatpush1.bf16.msra.mxu0 %v3841
    %6049 = vmatprep.subr.bf16.mxu0 0
    %6050 = vmatpush1.bf16.msra.mxu0 %v3848
    %6051 = vmatprep.subr.bf16.mxu0 0
    %6052 = vmatpush1.bf16.msra.mxu0 %v3855
    %6053 = vmatprep.subr.bf16.mxu0 0
    %6054 = vmatpush1.bf16.msra.mxu0 %v3862
    %6055 = vmatprep.subr.bf16.mxu0 0
    %6056 = vmatpush1.bf16.msra.mxu0 %v3869
    %6057 = vmatprep.subr.bf16.mxu0 0
    %6058 = vmatpush1.bf16.msra.mxu0 %v3876
    %6059 = vmatprep.subr.bf16.mxu0 0
    %6060 = vmatpush1.bf16.msra.mxu0 %v3883
    %6061 = vmatprep.subr.bf16.mxu0 0
    %6062 = vmatpush1.bf16.msra.mxu0 %v3890
    %6063 = vmatprep.mubr.bf16.mxu0 %v1759
    %6064 = vmatmul.mubr.bf16.gmra.mrb[0].mxu0 %v1758
    %v6065 = vpop.f32.mrb[0].mxu0
    %v6066 = vadd.f32 %v2363, %v6065
    %v6067 = vpop.f32.mrb[0].mxu0
    %v6068 = vpop.f32.mrb[0].mxu0
    %v6069 = vadd.f32 %v2363, %v6068
    %v6070 = vpop.f32.mrb[0].mxu0
    %6071 = vmatprep.mubr.bf16.mxu0 %v1767
    %6072 = vmatmul.mubr.bf16.gmra.mrb[0].mxu0 %v1766
    %v6073 = vpop.f32.mrb[0].mxu0
    %v6074 = vadd.f32 %v2363, %v6073
    %v6075 = vpop.f32.mrb[0].mxu0
    %v6076 = vpop.f32.mrb[0].mxu0
    %v6077 = vadd.f32 %v2363, %v6076
    %v6078 = vpop.f32.mrb[0].mxu0
    %6079 = vmatprep.mubr.bf16.mxu0 %v1775
    %6080 = vmatmul.mubr.bf16.gmra.mrb[0].mxu0 %v1774
    %v6081 = vpop.f32.mrb[0].mxu0
    %v6082 = vadd.f32 %v2363, %v6081
    %v6083 = vpop.f32.mrb[0].mxu0
    %v6084 = vpop.f32.mrb[0].mxu0
    %v6085 = vadd.f32 %v2363, %v6084
    %v6086 = vpop.f32.mrb[0].mxu0
    %6087 = vmatprep.mubr.bf16.mxu0 %v1783
    %6088 = vmatmul.mubr.bf16.gmra.mrb[0].mxu0 %v1782
    %v6089 = vpop.f32.mrb[0].mxu0
    %v6090 = vadd.f32 %v2363, %v6089
    %v6091 = vpop.f32.mrb[0].mxu0
    %v6092 = vpop.f32.mrb[0].mxu0
    %v6093 = vadd.f32 %v2363, %v6092
    %v6094 = vpop.f32.mrb[0].mxu0
    %6095 = vmatprep.mubr.bf16.mxu0 %v1791
    %6096 = vmatmul.mubr.bf16.gmra.mrb[0].mxu0 %v1790
    %v6097 = vpop.f32.mrb[0].mxu0
    %v6098 = vadd.f32 %v2363, %v6097
    %v6099 = vpop.f32.mrb[0].mxu0
    %v6100 = vpop.f32.mrb[0].mxu0
    %v6101 = vadd.f32 %v2363, %v6100
    %v6102 = vpop.f32.mrb[0].mxu0
    %6103 = vmatprep.mubr.bf16.mxu0 %v1799
    %6104 = vmatmul.mubr.bf16.gmra.mrb[0].mxu0 %v1798
    %v6105 = vpop.f32.mrb[0].mxu0
    %v6106 = vadd.f32 %v2363, %v6105
    %v6107 = vpop.f32.mrb[0].mxu0
    %v6108 = vpop.f32.mrb[0].mxu0
    %v6109 = vadd.f32 %v2363, %v6108
    %v6110 = vpop.f32.mrb[0].mxu0
    %6111 = vmatprep.mubr.bf16.mxu0 %v1807
    %6112 = vmatmul.mubr.bf16.gmra.mrb[0].mxu0 %v1806
    %v6113 = vpop.f32.mrb[0].mxu0
    %v6114 = vadd.f32 %v2363, %v6113
    %v6115 = vpop.f32.mrb[0].mxu0
    %v6116 = vpop.f32.mrb[0].mxu0
    %v6117 = vadd.f32 %v2363, %v6116
    %v6118 = vpop.f32.mrb[0].mxu0
    %6119 = vmatprep.mubr.bf16.mxu0 %v1815
    %6120 = vmatmul.mubr.bf16.gmra.mrb[0].mxu0 %v1814
    %v6121 = vpop.f32.mrb[0].mxu0
    %v6122 = vadd.f32 %v2363, %v6121
    %v6123 = vpop.f32.mrb[0].mxu0
    %v6124 = vpop.f32.mrb[0].mxu0
    %v6125 = vadd.f32 %v2363, %v6124
    %v6126 = vpop.f32.mrb[0].mxu0
    %6127 = vdwg.mxu0
    %6128 = vmatprep.subr.bf16.mxu0 0
    %6129 = vmatpush1.bf16.msra.mxu0 %v3897
    %6130 = vmatprep.subr.bf16.mxu0 0
    %6131 = vmatpush1.bf16.msra.mxu0 %v3904
    %6132 = vmatprep.subr.bf16.mxu0 0
    %6133 = vmatpush1.bf16.msra.mxu0 %v3911
    %6134 = vmatprep.subr.bf16.mxu0 0
    %6135 = vmatpush1.bf16.msra.mxu0 %v3918
    %6136 = vmatprep.subr.bf16.mxu0 0
    %6137 = vmatpush1.bf16.msra.mxu0 %v3925
    %6138 = vmatprep.subr.bf16.mxu0 0
    %6139 = vmatpush1.bf16.msra.mxu0 %v3932
    %6140 = vmatprep.subr.bf16.mxu0 0
    %6141 = vmatpush1.bf16.msra.mxu0 %v3939
    %6142 = vmatprep.subr.bf16.mxu0 0
    %6143 = vmatpush1.bf16.msra.mxu0 %v3946
    %6144 = vmatprep.subr.bf16.mxu0 0
    %6145 = vmatpush1.bf16.msra.mxu0 %v3953
    %6146 = vmatprep.subr.bf16.mxu0 0
    %6147 = vmatpush1.bf16.msra.mxu0 %v3960
    %6148 = vmatprep.subr.bf16.mxu0 0
    %6149 = vmatpush1.bf16.msra.mxu0 %v3967
    %6150 = vmatprep.subr.bf16.mxu0 0
    %6151 = vmatpush1.bf16.msra.mxu0 %v3974
    %6152 = vmatprep.subr.bf16.mxu0 0
    %6153 = vmatpush1.bf16.msra.mxu0 %v3981
    %6154 = vmatprep.subr.bf16.mxu0 0
    %6155 = vmatpush1.bf16.msra.mxu0 %v3988
    %6156 = vmatprep.subr.bf16.mxu0 0
    %6157 = vmatpush1.bf16.msra.mxu0 %v3995
    %6158 = vmatprep.subr.bf16.mxu0 0
    %6159 = vmatpush1.bf16.msra.mxu0 %v4002
    %6160 = vmatprep.mubr.bf16.mxu0 %v1761
    %6161 = vmatmul.mubr.bf16.gmra.mrb[0].mxu0 %v1760
    %v6162 = vpop.f32.mrb[0].mxu0
    %v6163 = vadd.f32 %v6066, %v6162
    %v6164 = vpop.f32.mrb[0].mxu0
    %v6165 = vpop.f32.mrb[0].mxu0
    %v6166 = vadd.f32 %v6069, %v6165
    %v6167 = vpop.f32.mrb[0].mxu0
    %6168 = vmatprep.mubr.bf16.mxu0 %v1769
    %6169 = vmatmul.mubr.bf16.gmra.mrb[0].mxu0 %v1768
    %v6170 = vpop.f32.mrb[0].mxu0
    %v6171 = vadd.f32 %v6074, %v6170
    %v6172 = vpop.f32.mrb[0].mxu0
    %v6173 = vpop.f32.mrb[0].mxu0
    %v6174 = vadd.f32 %v6077, %v6173
    %v6175 = vpop.f32.mrb[0].mxu0
    %6176 = vmatprep.mubr.bf16.mxu0 %v1777
    %6177 = vmatmul.mubr.bf16.gmra.mrb[0].mxu0 %v1776
    %v6178 = vpop.f32.mrb[0].mxu0
    %v6179 = vadd.f32 %v6082, %v6178
    %v6180 = vpop.f32.mrb[0].mxu0
    %v6181 = vpop.f32.mrb[0].mxu0
    %v6182 = vadd.f32 %v6085, %v6181
    %v6183 = vpop.f32.mrb[0].mxu0
    %6184 = vmatprep.mubr.bf16.mxu0 %v1785
    %6185 = vmatmul.mubr.bf16.gmra.mrb[0].mxu0 %v1784
    %v6186 = vpop.f32.mrb[0].mxu0
    %v6187 = vadd.f32 %v6090, %v6186
    %v6188 = vpop.f32.mrb[0].mxu0
    %v6189 = vpop.f32.mrb[0].mxu0
    %v6190 = vadd.f32 %v6093, %v6189
    %v6191 = vpop.f32.mrb[0].mxu0
    %6192 = vmatprep.mubr.bf16.mxu0 %v1793
    %6193 = vmatmul.mubr.bf16.gmra.mrb[0].mxu0 %v1792
    %v6194 = vpop.f32.mrb[0].mxu0
    %v6195 = vadd.f32 %v6098, %v6194
    %v6196 = vpop.f32.mrb[0].mxu0
    %v6197 = vpop.f32.mrb[0].mxu0
    %v6198 = vadd.f32 %v6101, %v6197
    %v6199 = vpop.f32.mrb[0].mxu0
    %6200 = vmatprep.mubr.bf16.mxu0 %v1801
    %6201 = vmatmul.mubr.bf16.gmra.mrb[0].mxu0 %v1800
    %v6202 = vpop.f32.mrb[0].mxu0
    %v6203 = vadd.f32 %v6106, %v6202
    %v6204 = vpop.f32.mrb[0].mxu0
    %v6205 = vpop.f32.mrb[0].mxu0
    %v6206 = vadd.f32 %v6109, %v6205
    %v6207 = vpop.f32.mrb[0].mxu0
    %6208 = vmatprep.mubr.bf16.mxu0 %v1809
    %6209 = vmatmul.mubr.bf16.gmra.mrb[0].mxu0 %v1808
    %v6210 = vpop.f32.mrb[0].mxu0
    %v6211 = vadd.f32 %v6114, %v6210
    %v6212 = vpop.f32.mrb[0].mxu0
    %v6213 = vpop.f32.mrb[0].mxu0
    %v6214 = vadd.f32 %v6117, %v6213
    %v6215 = vpop.f32.mrb[0].mxu0
    %6216 = vmatprep.mubr.bf16.mxu0 %v1817
    %6217 = vmatmul.mubr.bf16.gmra.mrb[0].mxu0 %v1816
    %v6218 = vpop.f32.mrb[0].mxu0
    %v6219 = vadd.f32 %v6122, %v6218
    %v6220 = vpop.f32.mrb[0].mxu0
    %v6221 = vpop.f32.mrb[0].mxu0
    %v6222 = vadd.f32 %v6125, %v6221
    %v6223 = vpop.f32.mrb[0].mxu0
    %6224 = vdwg.mxu0
    %6225 = vmatprep.subr.bf16.mxu0 0
    %6226 = vmatpush1.bf16.msra.mxu0 %v4009
    %6227 = vmatprep.subr.bf16.mxu0 0
    %6228 = vmatpush1.bf16.msra.mxu0 %v4016
    %6229 = vmatprep.subr.bf16.mxu0 0
    %6230 = vmatpush1.bf16.msra.mxu0 %v4023
    %6231 = vmatprep.subr.bf16.mxu0 0
    %6232 = vmatpush1.bf16.msra.mxu0 %v4030
    %6233 = vmatprep.subr.bf16.mxu0 0
    %6234 = vmatpush1.bf16.msra.mxu0 %v4037
    %6235 = vmatprep.subr.bf16.mxu0 0
    %6236 = vmatpush1.bf16.msra.mxu0 %v4044
    %6237 = vmatprep.subr.bf16.mxu0 0
    %6238 = vmatpush1.bf16.msra.mxu0 %v4051
    %6239 = vmatprep.subr.bf16.mxu0 0
    %6240 = vmatpush1.bf16.msra.mxu0 %v4058
    %6241 = vmatprep.subr.bf16.mxu0 0
    %6242 = vmatpush1.bf16.msra.mxu0 %v4065
    %6243 = vmatprep.subr.bf16.mxu0 0
    %6244 = vmatpush1.bf16.msra.mxu0 %v4072
    %6245 = vmatprep.subr.bf16.mxu0 0
    %6246 = vmatpush1.bf16.msra.mxu0 %v4079
    %6247 = vmatprep.subr.bf16.mxu0 0
    %6248 = vmatpush1.bf16.msra.mxu0 %v4086
    %6249 = vmatprep.subr.bf16.mxu0 0
    %6250 = vmatpush1.bf16.msra.mxu0 %v4093
    %6251 = vmatprep.subr.bf16.mxu0 0
    %6252 = vmatpush1.bf16.msra.mxu0 %v4100
    %6253 = vmatprep.subr.bf16.mxu0 0
    %6254 = vmatpush1.bf16.msra.mxu0 %v4107
    %6255 = vmatprep.subr.bf16.mxu0 0
    %6256 = vmatpush1.bf16.msra.mxu0 %v4114
    %6257 = vmatprep.mubr.bf16.mxu0 %v1763
    %6258 = vmatmul.mubr.bf16.gmra.mrb[0].mxu0 %v1762
    %v6259 = vpop.f32.mrb[0].mxu0
    %v6260 = vadd.f32 %v6163, %v6259
    %v6261 = vpop.f32.mrb[0].mxu0
    %v6262 = vpop.f32.mrb[0].mxu0
    %v6263 = vadd.f32 %v6166, %v6262
    %v6264 = vpop.f32.mrb[0].mxu0
    %6265 = vmatprep.mubr.bf16.mxu0 %v1771
    %6266 = vmatmul.mubr.bf16.gmra.mrb[0].mxu0 %v1770
    %v6267 = vpop.f32.mrb[0].mxu0
    %v6268 = vadd.f32 %v6171, %v6267
    %v6269 = vpop.f32.mrb[0].mxu0
    %v6270 = vpop.f32.mrb[0].mxu0
    %v6271 = vadd.f32 %v6174, %v6270
    %v6272 = vpop.f32.mrb[0].mxu0
    %6273 = vmatprep.mubr.bf16.mxu0 %v1779
    %6274 = vmatmul.mubr.bf16.gmra.mrb[0].mxu0 %v1778
    %v6275 = vpop.f32.mrb[0].mxu0
    %v6276 = vadd.f32 %v6179, %v6275
    %v6277 = vpop.f32.mrb[0].mxu0
    %v6278 = vpop.f32.mrb[0].mxu0
    %v6279 = vadd.f32 %v6182, %v6278
    %v6280 = vpop.f32.mrb[0].mxu0
    %6281 = vmatprep.mubr.bf16.mxu0 %v1787
    %6282 = vmatmul.mubr.bf16.gmra.mrb[0].mxu0 %v1786
    %v6283 = vpop.f32.mrb[0].mxu0
    %v6284 = vadd.f32 %v6187, %v6283
    %v6285 = vpop.f32.mrb[0].mxu0
    %v6286 = vpop.f32.mrb[0].mxu0
    %v6287 = vadd.f32 %v6190, %v6286
    %v6288 = vpop.f32.mrb[0].mxu0
    %6289 = vmatprep.mubr.bf16.mxu0 %v1795
    %6290 = vmatmul.mubr.bf16.gmra.mrb[0].mxu0 %v1794
    %v6291 = vpop.f32.mrb[0].mxu0
    %v6292 = vadd.f32 %v6195, %v6291
    %v6293 = vpop.f32.mrb[0].mxu0
    %v6294 = vpop.f32.mrb[0].mxu0
    %v6295 = vadd.f32 %v6198, %v6294
    %v6296 = vpop.f32.mrb[0].mxu0
    %6297 = vmatprep.mubr.bf16.mxu0 %v1803
    %6298 = vmatmul.mubr.bf16.gmra.mrb[0].mxu0 %v1802
    %v6299 = vpop.f32.mrb[0].mxu0
    %v6300 = vadd.f32 %v6203, %v6299
    %v6301 = vpop.f32.mrb[0].mxu0
    %v6302 = vpop.f32.mrb[0].mxu0
    %v6303 = vadd.f32 %v6206, %v6302
    %v6304 = vpop.f32.mrb[0].mxu0
    %6305 = vmatprep.mubr.bf16.mxu0 %v1811
    %6306 = vmatmul.mubr.bf16.gmra.mrb[0].mxu0 %v1810
    %v6307 = vpop.f32.mrb[0].mxu0
    %v6308 = vadd.f32 %v6211, %v6307
    %v6309 = vpop.f32.mrb[0].mxu0
    %v6310 = vpop.f32.mrb[0].mxu0
    %v6311 = vadd.f32 %v6214, %v6310
    %v6312 = vpop.f32.mrb[0].mxu0
    %6313 = vmatprep.mubr.bf16.mxu0 %v1819
    %6314 = vmatmul.mubr.bf16.gmra.mrb[0].mxu0 %v1818
    %v6315 = vpop.f32.mrb[0].mxu0
    %v6316 = vadd.f32 %v6219, %v6315
    %v6317 = vpop.f32.mrb[0].mxu0
    %v6318 = vpop.f32.mrb[0].mxu0
    %v6319 = vadd.f32 %v6222, %v6318
    %v6320 = vpop.f32.mrb[0].mxu0
    %6321 = vdwg.mxu0
    %6322 = vmatprep.subr.bf16.mxu0 0
    %6323 = vmatpush1.bf16.msra.mxu0 %v4121
    %6324 = vmatprep.subr.bf16.mxu0 0
    %6325 = vmatpush1.bf16.msra.mxu0 %v4128
    %6326 = vmatprep.subr.bf16.mxu0 0
    %6327 = vmatpush1.bf16.msra.mxu0 %v4135
    %6328 = vmatprep.subr.bf16.mxu0 0
    %6329 = vmatpush1.bf16.msra.mxu0 %v4142
    %6330 = vmatprep.subr.bf16.mxu0 0
    %6331 = vmatpush1.bf16.msra.mxu0 %v4149
    %6332 = vmatprep.subr.bf16.mxu0 0
    %6333 = vmatpush1.bf16.msra.mxu0 %v4156
    %6334 = vmatprep.subr.bf16.mxu0 0
    %6335 = vmatpush1.bf16.msra.mxu0 %v4163
    %6336 = vmatprep.subr.bf16.mxu0 0
    %6337 = vmatpush1.bf16.msra.mxu0 %v4170
    %6338 = vmatprep.subr.bf16.mxu0 0
    %6339 = vmatpush1.bf16.msra.mxu0 %v4177
    %6340 = vmatprep.subr.bf16.mxu0 0
    %6341 = vmatpush1.bf16.msra.mxu0 %v4184
    %6342 = vmatprep.subr.bf16.mxu0 0
    %6343 = vmatpush1.bf16.msra.mxu0 %v4191
    %6344 = vmatprep.subr.bf16.mxu0 0
    %6345 = vmatpush1.bf16.msra.mxu0 %v4198
    %6346 = vmatprep.subr.bf16.mxu0 0
    %6347 = vmatpush1.bf16.msra.mxu0 %v4205
    %6348 = vmatprep.subr.bf16.mxu0 0
    %6349 = vmatpush1.bf16.msra.mxu0 %v4212
    %6350 = vmatprep.subr.bf16.mxu0 0
    %6351 = vmatpush1.bf16.msra.mxu0 %v4219
    %6352 = vmatprep.subr.bf16.mxu0 0
    %6353 = vmatpush1.bf16.msra.mxu0 %v4226
    %6354 = vmatprep.mubr.bf16.mxu0 %v1765
    %6355 = vmatmul.mubr.bf16.gmra.mrb[0].mxu0 %v1764
    %v6356 = vpop.f32.mrb[0].mxu0
    %v6357 = vadd.f32 %v6260, %v6356
    %v6358 = vpop.f32.mrb[0].mxu0
    %v6359 = vpop.f32.mrb[0].mxu0
    %v6360 = vadd.f32 %v6263, %v6359
    %v6361 = vpop.f32.mrb[0].mxu0
    %6362 = vmatprep.mubr.bf16.mxu0 %v1773
    %6363 = vmatmul.mubr.bf16.gmra.mrb[0].mxu0 %v1772
    %v6364 = vpop.f32.mrb[0].mxu0
    %v6365 = vadd.f32 %v6268, %v6364
    %v6366 = vpop.f32.mrb[0].mxu0
    %v6367 = vpop.f32.mrb[0].mxu0
    %v6368 = vadd.f32 %v6271, %v6367
    %v6369 = vpop.f32.mrb[0].mxu0
    %6370 = vmatprep.mubr.bf16.mxu0 %v1781
    %6371 = vmatmul.mubr.bf16.gmra.mrb[0].mxu0 %v1780
    %v6372 = vpop.f32.mrb[0].mxu0
    %v6373 = vadd.f32 %v6276, %v6372
    %v6374 = vpop.f32.mrb[0].mxu0
    %v6375 = vpop.f32.mrb[0].mxu0
    %v6376 = vadd.f32 %v6279, %v6375
    %v6377 = vpop.f32.mrb[0].mxu0
    %6378 = vmatprep.mubr.bf16.mxu0 %v1789
    %6379 = vmatmul.mubr.bf16.gmra.mrb[0].mxu0 %v1788
    %v6380 = vpop.f32.mrb[0].mxu0
    %v6381 = vadd.f32 %v6284, %v6380
    %v6382 = vpop.f32.mrb[0].mxu0
    %v6383 = vpop.f32.mrb[0].mxu0
    %v6384 = vadd.f32 %v6287, %v6383
    %v6385 = vpop.f32.mrb[0].mxu0
    %6386 = vmatprep.mubr.bf16.mxu0 %v1797
    %6387 = vmatmul.mubr.bf16.gmra.mrb[0].mxu0 %v1796
    %v6388 = vpop.f32.mrb[0].mxu0
    %v6389 = vadd.f32 %v6292, %v6388
    %v6390 = vpop.f32.mrb[0].mxu0
    %v6391 = vpop.f32.mrb[0].mxu0
    %v6392 = vadd.f32 %v6295, %v6391
    %v6393 = vpop.f32.mrb[0].mxu0
    %6394 = vmatprep.mubr.bf16.mxu0 %v1805
    %6395 = vmatmul.mubr.bf16.gmra.mrb[0].mxu0 %v1804
    %v6396 = vpop.f32.mrb[0].mxu0
    %v6397 = vadd.f32 %v6300, %v6396
    %v6398 = vpop.f32.mrb[0].mxu0
    %v6399 = vpop.f32.mrb[0].mxu0
    %v6400 = vadd.f32 %v6303, %v6399
    %v6401 = vpop.f32.mrb[0].mxu0
    %6402 = vmatprep.mubr.bf16.mxu0 %v1813
    %6403 = vmatmul.mubr.bf16.gmra.mrb[0].mxu0 %v1812
    %v6404 = vpop.f32.mrb[0].mxu0
    %v6405 = vadd.f32 %v6308, %v6404
    %v6406 = vpop.f32.mrb[0].mxu0
    %v6407 = vpop.f32.mrb[0].mxu0
    %v6408 = vadd.f32 %v6311, %v6407
    %v6409 = vpop.f32.mrb[0].mxu0
    %6410 = vmatprep.mubr.bf16.mxu0 %v1821
    %6411 = vmatmul.mubr.bf16.gmra.mrb[0].mxu0 %v1820
    %v6412 = vpop.f32.mrb[0].mxu0
    %v6413 = vadd.f32 %v6316, %v6412
    %v6414 = vpop.f32.mrb[0].mxu0
    %v6415 = vpop.f32.mrb[0].mxu0
    %v6416 = vadd.f32 %v6319, %v6415
    %v6417 = vpop.f32.mrb[0].mxu0
    %6418 = vdwg.mxu0
    %v6419 = vsub.f32 0.0, %v5049
    %v6420 = vsub.f32 0.0, %v5051
    %v6421 = vsub.f32 0.0, %v5501
    %v6422 = vsub.f32 0.0, %v5503
    %v6423 = vsub.f32 0.0, %v5953
    %v6424 = vsub.f32 0.0, %v5955
    %v6425 = vsub.f32 0.0, %v6357
    %v6426 = vsub.f32 0.0, %v5053
    %v6427 = vsub.f32 0.0, %v5055
    %v6428 = vsub.f32 0.0, %v5505
    %v6429 = vsub.f32 0.0, %v5507
    %v6430 = vsub.f32 0.0, %v5957
    %v6431 = vsub.f32 0.0, %v5959
    %v6432 = vsub.f32 0.0, %v6360
    %v6433 = vsub.f32 0.0, %v5059
    %v6434 = vsub.f32 0.0, %v5061
    %v6435 = vsub.f32 0.0, %v5511
    %v6436 = vsub.f32 0.0, %v5513
    %v6437 = vsub.f32 0.0, %v5963
    %v6438 = vsub.f32 0.0, %v5965
    %v6439 = vsub.f32 0.0, %v6365
    %v6440 = vsub.f32 0.0, %v5063
    %v6441 = vsub.f32 0.0, %v5065
    %v6442 = vsub.f32 0.0, %v5515
    %v6443 = vsub.f32 0.0, %v5517
    %v6444 = vsub.f32 0.0, %v5967
    %v6445 = vsub.f32 0.0, %v5969
    %v6446 = vsub.f32 0.0, %v6368
    %v6447 = vsub.f32 0.0, %v5069
    %v6448 = vsub.f32 0.0, %v5071
    %v6449 = vsub.f32 0.0, %v5521
    %v6450 = vsub.f32 0.0, %v5523
    %v6451 = vsub.f32 0.0, %v5973
    %v6452 = vsub.f32 0.0, %v5975
    %v6453 = vsub.f32 0.0, %v6373
    %v6454 = vsub.f32 0.0, %v5073
    %v6455 = vsub.f32 0.0, %v5075
    %v6456 = vsub.f32 0.0, %v5525
    %v6457 = vsub.f32 0.0, %v5527
    %v6458 = vsub.f32 0.0, %v5977
    %v6459 = vsub.f32 0.0, %v5979
    %v6460 = vsub.f32 0.0, %v6376
    %v6461 = vsub.f32 0.0, %v5079
    %v6462 = vsub.f32 0.0, %v5081
    %v6463 = vsub.f32 0.0, %v5531
    %v6464 = vsub.f32 0.0, %v5533
    %v6465 = vsub.f32 0.0, %v5983
    %v6466 = vsub.f32 0.0, %v5985
    %v6467 = vsub.f32 0.0, %v6381
    %v6468 = vsub.f32 0.0, %v5083
    %v6469 = vsub.f32 0.0, %v5085
    %v6470 = vsub.f32 0.0, %v5535
    %v6471 = vsub.f32 0.0, %v5537
    %v6472 = vsub.f32 0.0, %v5987
    %v6473 = vsub.f32 0.0, %v5989
    %v6474 = vsub.f32 0.0, %v6384
    %v6475 = vsub.f32 0.0, %v5089
    %v6476 = vsub.f32 0.0, %v5091
    %v6477 = vsub.f32 0.0, %v5541
    %v6478 = vsub.f32 0.0, %v5543
    %v6479 = vsub.f32 0.0, %v5993
    %v6480 = vsub.f32 0.0, %v5995
    %v6481 = vsub.f32 0.0, %v6389
    %v6482 = vsub.f32 0.0, %v5093
    %v6483 = vsub.f32 0.0, %v5095
    %v6484 = vsub.f32 0.0, %v5545
    %v6485 = vsub.f32 0.0, %v5547
    %v6486 = vsub.f32 0.0, %v5997
    %v6487 = vsub.f32 0.0, %v5999
    %v6488 = vsub.f32 0.0, %v6392
    %v6489 = vsub.f32 0.0, %v5099
    %v6490 = vsub.f32 0.0, %v5101
    %v6491 = vsub.f32 0.0, %v5551
    %v6492 = vsub.f32 0.0, %v5553
    %v6493 = vsub.f32 0.0, %v6003
    %v6494 = vsub.f32 0.0, %v6005
    %v6495 = vsub.f32 0.0, %v6397
    %v6496 = vsub.f32 0.0, %v5103
    %v6497 = vsub.f32 0.0, %v5105
    %v6498 = vsub.f32 0.0, %v5555
    %v6499 = vsub.f32 0.0, %v5557
    %v6500 = vsub.f32 0.0, %v6007
    %v6501 = vsub.f32 0.0, %v6009
    %v6502 = vsub.f32 0.0, %v6400
    %v6503 = vsub.f32 0.0, %v5109
    %v6504 = vsub.f32 0.0, %v5111
    %v6505 = vsub.f32 0.0, %v5561
    %v6506 = vsub.f32 0.0, %v5563
    %v6507 = vsub.f32 0.0, %v6013
    %v6508 = vsub.f32 0.0, %v6015
    %v6509 = vsub.f32 0.0, %v6405
    %v6510 = vsub.f32 0.0, %v5113
    %v6511 = vsub.f32 0.0, %v5115
    %v6512 = vsub.f32 0.0, %v5565
    %v6513 = vsub.f32 0.0, %v5567
    %v6514 = vsub.f32 0.0, %v6017
    %v6515 = vsub.f32 0.0, %v6019
    %v6516 = vsub.f32 0.0, %v6408
    %v6517 = vsub.f32 0.0, %v5119
    %v6518 = vsub.f32 0.0, %v5121
    %v6519 = vsub.f32 0.0, %v5571
    %v6520 = vsub.f32 0.0, %v5573
    %v6521 = vsub.f32 0.0, %v6023
    %v6522 = vsub.f32 0.0, %v6025
    %v6523 = vsub.f32 0.0, %v6413
    %v6524 = vsub.f32 0.0, %v5123
    %v6525 = vsub.f32 0.0, %v5125
    %v6526 = vsub.f32 0.0, %v5575
    %v6527 = vsub.f32 0.0, %v5577
    %v6528 = vsub.f32 0.0, %v6027
    %v6529 = vsub.f32 0.0, %v6029
    %v6530 = vsub.f32 0.0, %v6416
    %v6531 = vmul.f32 %v6419, 1.442695
    %v6532 = vpow.pop %v6531
    %v6533 = vmul.f32 %v6420, 1.442695
    %v6534 = vpow.pop %v6533
    %v6535 = vmul.f32 %v6421, 1.442695
    %v6536 = vpow.pop %v6535
    %v6537 = vmul.f32 %v6422, 1.442695
    %v6538 = vpow.pop %v6537
    %v6539 = vmul.f32 %v6423, 1.442695
    %v6540 = vpow.pop %v6539
    %v6541 = vmul.f32 %v6424, 1.442695
    %v6542 = vpow.pop %v6541
    %v6543 = vmul.f32 %v6425, 1.442695
    %v6544 = vpow.pop %v6543
    %v6545 = vmul.f32 %v6426, 1.442695
    %v6546 = vpow.pop %v6545
    %v6547 = vmul.f32 %v6427, 1.442695
    %v6548 = vpow.pop %v6547
    %v6549 = vmul.f32 %v6428, 1.442695
    %v6550 = vpow.pop %v6549
    %v6551 = vmul.f32 %v6429, 1.442695
    %v6552 = vpow.pop %v6551
    %v6553 = vmul.f32 %v6430, 1.442695
    %v6554 = vpow.pop %v6553
    %v6555 = vmul.f32 %v6431, 1.442695
    %v6556 = vpow.pop %v6555
    %v6557 = vmul.f32 %v6432, 1.442695
    %v6558 = vpow.pop %v6557
    %v6559 = vmul.f32 %v6433, 1.442695
    %v6560 = vpow.pop %v6559
    %v6561 = vmul.f32 %v6434, 1.442695
    %v6562 = vpow.pop %v6561
    %v6563 = vmul.f32 %v6435, 1.442695
    %v6564 = vpow.pop %v6563
    %v6565 = vmul.f32 %v6436, 1.442695
    %v6566 = vpow.pop %v6565
    %v6567 = vmul.f32 %v6437, 1.442695
    %v6568 = vpow.pop %v6567
    %v6569 = vmul.f32 %v6438, 1.442695
    %v6570 = vpow.pop %v6569
    %v6571 = vmul.f32 %v6439, 1.442695
    %v6572 = vpow.pop %v6571
    %v6573 = vmul.f32 %v6440, 1.442695
    %v6574 = vpow.pop %v6573
    %v6575 = vmul.f32 %v6441, 1.442695
    %v6576 = vpow.pop %v6575
    %v6577 = vmul.f32 %v6442, 1.442695
    %v6578 = vpow.pop %v6577
    %v6579 = vmul.f32 %v6443, 1.442695
    %v6580 = vpow.pop %v6579
    %v6581 = vmul.f32 %v6444, 1.442695
    %v6582 = vpow.pop %v6581
    %v6583 = vmul.f32 %v6445, 1.442695
    %v6584 = vpow.pop %v6583
    %v6585 = vmul.f32 %v6446, 1.442695
    %v6586 = vpow.pop %v6585
    %v6587 = vmul.f32 %v6447, 1.442695
    %v6588 = vpow.pop %v6587
    %v6589 = vmul.f32 %v6448, 1.442695
    %v6590 = vpow.pop %v6589
    %v6591 = vmul.f32 %v6449, 1.442695
    %v6592 = vpow.pop %v6591
    %v6593 = vmul.f32 %v6450, 1.442695
    %v6594 = vpow.pop %v6593
    %v6595 = vmul.f32 %v6451, 1.442695
    %v6596 = vpow.pop %v6595
    %v6597 = vmul.f32 %v6452, 1.442695
    %v6598 = vpow.pop %v6597
    %v6599 = vmul.f32 %v6453, 1.442695
    %v6600 = vpow.pop %v6599
    %v6601 = vmul.f32 %v6454, 1.442695
    %v6602 = vpow.pop %v6601
    %v6603 = vmul.f32 %v6455, 1.442695
    %v6604 = vpow.pop %v6603
    %v6605 = vmul.f32 %v6456, 1.442695
    %v6606 = vpow.pop %v6605
    %v6607 = vmul.f32 %v6457, 1.442695
    %v6608 = vpow.pop %v6607
    %v6609 = vmul.f32 %v6458, 1.442695
    %v6610 = vpow.pop %v6609
    %v6611 = vmul.f32 %v6459, 1.442695
    %v6612 = vpow.pop %v6611
    %v6613 = vmul.f32 %v6460, 1.442695
    %v6614 = vpow.pop %v6613
    %v6615 = vmul.f32 %v6461, 1.442695
    %v6616 = vpow.pop %v6615
    %v6617 = vmul.f32 %v6462, 1.442695
    %v6618 = vpow.pop %v6617
    %v6619 = vmul.f32 %v6463, 1.442695
    %v6620 = vpow.pop %v6619
    %v6621 = vmul.f32 %v6464, 1.442695
    %v6622 = vpow.pop %v6621
    %v6623 = vmul.f32 %v6465, 1.442695
    %v6624 = vpow.pop %v6623
    %v6625 = vmul.f32 %v6466, 1.442695
    %v6626 = vpow.pop %v6625
    %v6627 = vmul.f32 %v6467, 1.442695
    %v6628 = vpow.pop %v6627
    %v6629 = vmul.f32 %v6468, 1.442695
    %v6630 = vpow.pop %v6629
    %v6631 = vmul.f32 %v6469, 1.442695
    %v6632 = vpow.pop %v6631
    %v6633 = vmul.f32 %v6470, 1.442695
    %v6634 = vpow.pop %v6633
    %v6635 = vmul.f32 %v6471, 1.442695
    %v6636 = vpow.pop %v6635
    %v6637 = vmul.f32 %v6472, 1.442695
    %v6638 = vpow.pop %v6637
    %v6639 = vmul.f32 %v6473, 1.442695
    %v6640 = vpow.pop %v6639
    %v6641 = vmul.f32 %v6474, 1.442695
    %v6642 = vpow.pop %v6641
    %v6643 = vmul.f32 %v6475, 1.442695
    %v6644 = vpow.pop %v6643
    %v6645 = vmul.f32 %v6476, 1.442695
    %v6646 = vpow.pop %v6645
    %v6647 = vmul.f32 %v6477, 1.442695
    %v6648 = vpow.pop %v6647
    %v6649 = vmul.f32 %v6478, 1.442695
    %v6650 = vpow.pop %v6649
    %v6651 = vmul.f32 %v6479, 1.442695
    %v6652 = vpow.pop %v6651
    %v6653 = vmul.f32 %v6480, 1.442695
    %v6654 = vpow.pop %v6653
    %v6655 = vmul.f32 %v6481, 1.442695
    %v6656 = vpow.pop %v6655
    %v6657 = vmul.f32 %v6482, 1.442695
    %v6658 = vpow.pop %v6657
    %v6659 = vmul.f32 %v6483, 1.442695
    %v6660 = vpow.pop %v6659
    %v6661 = vmul.f32 %v6484, 1.442695
    %v6662 = vpow.pop %v6661
    %v6663 = vmul.f32 %v6485, 1.442695
    %v6664 = vpow.pop %v6663
    %v6665 = vmul.f32 %v6486, 1.442695
    %v6666 = vpow.pop %v6665
    %v6667 = vmul.f32 %v6487, 1.442695
    %v6668 = vpow.pop %v6667
    %v6669 = vmul.f32 %v6488, 1.442695
    %v6670 = vpow.pop %v6669
    %v6671 = vmul.f32 %v6489, 1.442695
    %v6672 = vpow.pop %v6671
    %v6673 = vmul.f32 %v6490, 1.442695
    %v6674 = vpow.pop %v6673
    %v6675 = vmul.f32 %v6491, 1.442695
    %v6676 = vpow.pop %v6675
    %v6677 = vmul.f32 %v6492, 1.442695
    %v6678 = vpow.pop %v6677
    %v6679 = vmul.f32 %v6493, 1.442695
    %v6680 = vpow.pop %v6679
    %v6681 = vmul.f32 %v6494, 1.442695
    %v6682 = vpow.pop %v6681
    %v6683 = vmul.f32 %v6495, 1.442695
    %v6684 = vpow.pop %v6683
    %v6685 = vmul.f32 %v6496, 1.442695
    %v6686 = vpow.pop %v6685
    %v6687 = vmul.f32 %v6497, 1.442695
    %v6688 = vpow.pop %v6687
    %v6689 = vmul.f32 %v6498, 1.442695
    %v6690 = vpow.pop %v6689
    %v6691 = vmul.f32 %v6499, 1.442695
    %v6692 = vpow.pop %v6691
    %v6693 = vmul.f32 %v6500, 1.442695
    %v6694 = vpow.pop %v6693
    %v6695 = vmul.f32 %v6501, 1.442695
    %v6696 = vpow.pop %v6695
    %v6697 = vmul.f32 %v6502, 1.442695
    %v6698 = vpow.pop %v6697
    %v6699 = vmul.f32 %v6503, 1.442695
    %v6700 = vpow.pop %v6699
    %v6701 = vmul.f32 %v6504, 1.442695
    %v6702 = vpow.pop %v6701
    %v6703 = vmul.f32 %v6505, 1.442695
    %v6704 = vpow.pop %v6703
    %v6705 = vmul.f32 %v6506, 1.442695
    %v6706 = vpow.pop %v6705
    %v6707 = vmul.f32 %v6507, 1.442695
    %v6708 = vpow.pop %v6707
    %v6709 = vmul.f32 %v6508, 1.442695
    %v6710 = vpow.pop %v6709
    %v6711 = vmul.f32 %v6509, 1.442695
    %v6712 = vpow.pop %v6711
    %v6713 = vmul.f32 %v6510, 1.442695
    %v6714 = vpow.pop %v6713
    %v6715 = vmul.f32 %v6511, 1.442695
    %v6716 = vpow.pop %v6715
    %v6717 = vmul.f32 %v6512, 1.442695
    %v6718 = vpow.pop %v6717
    %v6719 = vmul.f32 %v6513, 1.442695
    %v6720 = vpow.pop %v6719
    %v6721 = vmul.f32 %v6514, 1.442695
    %v6722 = vpow.pop %v6721
    %v6723 = vmul.f32 %v6515, 1.442695
    %v6724 = vpow.pop %v6723
    %v6725 = vmul.f32 %v6516, 1.442695
    %v6726 = vpow.pop %v6725
    %v6727 = vmul.f32 %v6517, 1.442695
    %v6728 = vpow.pop %v6727
    %v6729 = vmul.f32 %v6518, 1.442695
    %v6730 = vpow.pop %v6729
    %v6731 = vmul.f32 %v6519, 1.442695
    %v6732 = vpow.pop %v6731
    %v6733 = vmul.f32 %v6520, 1.442695
    %v6734 = vpow.pop %v6733
    %v6735 = vmul.f32 %v6521, 1.442695
    %v6736 = vpow.pop %v6735
    %v6737 = vmul.f32 %v6522, 1.442695
    %v6738 = vpow.pop %v6737
    %v6739 = vmul.f32 %v6523, 1.442695
    %v6740 = vpow.pop %v6739
    %v6741 = vmul.f32 %v6524, 1.442695
    %v6742 = vpow.pop %v6741
    %v6743 = vmul.f32 %v6525, 1.442695
    %v6744 = vpow.pop %v6743
    %v6745 = vmul.f32 %v6526, 1.442695
    %v6746 = vpow.pop %v6745
    %v6747 = vmul.f32 %v6527, 1.442695
    %v6748 = vpow.pop %v6747
    %v6749 = vmul.f32 %v6528, 1.442695
    %v6750 = vpow.pop %v6749
    %v6751 = vmul.f32 %v6529, 1.442695
    %v6752 = vpow.pop %v6751
    %v6753 = vmul.f32 %v6530, 1.442695
    %v6754 = vpow.pop %v6753
    %v6755 = vadd.f32 %v6532, 1.0
    %v6756 = vadd.f32 %v6534, 1.0
    %v6757 = vadd.f32 %v6536, 1.0
    %v6758 = vadd.f32 %v6538, 1.0
    %v6759 = vadd.f32 %v6540, 1.0
    %v6760 = vadd.f32 %v6542, 1.0
    %v6761 = vadd.f32 %v6544, 1.0
    %v6762 = vadd.f32 %v6546, 1.0
    %v6763 = vadd.f32 %v6548, 1.0
    %v6764 = vadd.f32 %v6550, 1.0
    %v6765 = vadd.f32 %v6552, 1.0
    %v6766 = vadd.f32 %v6554, 1.0
    %v6767 = vadd.f32 %v6556, 1.0
    %v6768 = vadd.f32 %v6558, 1.0
    %v6769 = vadd.f32 %v6560, 1.0
    %v6770 = vadd.f32 %v6562, 1.0
    %v6771 = vadd.f32 %v6564, 1.0
    %v6772 = vadd.f32 %v6566, 1.0
    %v6773 = vadd.f32 %v6568, 1.0
    %v6774 = vadd.f32 %v6570, 1.0
    %v6775 = vadd.f32 %v6572, 1.0
    %v6776 = vadd.f32 %v6574, 1.0
    %v6777 = vadd.f32 %v6576, 1.0
    %v6778 = vadd.f32 %v6578, 1.0
    %v6779 = vadd.f32 %v6580, 1.0
    %v6780 = vadd.f32 %v6582, 1.0
    %v6781 = vadd.f32 %v6584, 1.0
    %v6782 = vadd.f32 %v6586, 1.0
    %v6783 = vadd.f32 %v6588, 1.0
    %v6784 = vadd.f32 %v6590, 1.0
    %v6785 = vadd.f32 %v6592, 1.0
    %v6786 = vadd.f32 %v6594, 1.0
    %v6787 = vadd.f32 %v6596, 1.0
    %v6788 = vadd.f32 %v6598, 1.0
    %v6789 = vadd.f32 %v6600, 1.0
    %v6790 = vadd.f32 %v6602, 1.0
    %v6791 = vadd.f32 %v6604, 1.0
    %v6792 = vadd.f32 %v6606, 1.0
    %v6793 = vadd.f32 %v6608, 1.0
    %v6794 = vadd.f32 %v6610, 1.0
    %v6795 = vadd.f32 %v6612, 1.0
    %v6796 = vadd.f32 %v6614, 1.0
    %v6797 = vadd.f32 %v6616, 1.0
    %v6798 = vadd.f32 %v6618, 1.0
    %v6799 = vadd.f32 %v6620, 1.0
    %v6800 = vadd.f32 %v6622, 1.0
    %v6801 = vadd.f32 %v6624, 1.0
    %v6802 = vadd.f32 %v6626, 1.0
    %v6803 = vadd.f32 %v6628, 1.0
    %v6804 = vadd.f32 %v6630, 1.0
    %v6805 = vadd.f32 %v6632, 1.0
    %v6806 = vadd.f32 %v6634, 1.0
    %v6807 = vadd.f32 %v6636, 1.0
    %v6808 = vadd.f32 %v6638, 1.0
    %v6809 = vadd.f32 %v6640, 1.0
    %v6810 = vadd.f32 %v6642, 1.0
    %v6811 = vadd.f32 %v6644, 1.0
    %v6812 = vadd.f32 %v6646, 1.0
    %v6813 = vadd.f32 %v6648, 1.0
    %v6814 = vadd.f32 %v6650, 1.0
    %v6815 = vadd.f32 %v6652, 1.0
    %v6816 = vadd.f32 %v6654, 1.0
    %v6817 = vadd.f32 %v6656, 1.0
    %v6818 = vadd.f32 %v6658, 1.0
    %v6819 = vadd.f32 %v6660, 1.0
    %v6820 = vadd.f32 %v6662, 1.0
    %v6821 = vadd.f32 %v6664, 1.0
    %v6822 = vadd.f32 %v6666, 1.0
    %v6823 = vadd.f32 %v6668, 1.0
    %v6824 = vadd.f32 %v6670, 1.0
    %v6825 = vadd.f32 %v6672, 1.0
    %v6826 = vadd.f32 %v6674, 1.0
    %v6827 = vadd.f32 %v6676, 1.0
    %v6828 = vadd.f32 %v6678, 1.0
    %v6829 = vadd.f32 %v6680, 1.0
    %v6830 = vadd.f32 %v6682, 1.0
    %v6831 = vadd.f32 %v6684, 1.0
    %v6832 = vadd.f32 %v6686, 1.0
    %v6833 = vadd.f32 %v6688, 1.0
    %v6834 = vadd.f32 %v6690, 1.0
    %v6835 = vadd.f32 %v6692, 1.0
    %v6836 = vadd.f32 %v6694, 1.0
    %v6837 = vadd.f32 %v6696, 1.0
    %v6838 = vadd.f32 %v6698, 1.0
    %v6839 = vadd.f32 %v6700, 1.0
    %v6840 = vadd.f32 %v6702, 1.0
    %v6841 = vadd.f32 %v6704, 1.0
    %v6842 = vadd.f32 %v6706, 1.0
    %v6843 = vadd.f32 %v6708, 1.0
    %v6844 = vadd.f32 %v6710, 1.0
    %v6845 = vadd.f32 %v6712, 1.0
    %v6846 = vadd.f32 %v6714, 1.0
    %v6847 = vadd.f32 %v6716, 1.0
    %v6848 = vadd.f32 %v6718, 1.0
    %v6849 = vadd.f32 %v6720, 1.0
    %v6850 = vadd.f32 %v6722, 1.0
    %v6851 = vadd.f32 %v6724, 1.0
    %v6852 = vadd.f32 %v6726, 1.0
    %v6853 = vadd.f32 %v6728, 1.0
    %v6854 = vadd.f32 %v6730, 1.0
    %v6855 = vadd.f32 %v6732, 1.0
    %v6856 = vadd.f32 %v6734, 1.0
    %v6857 = vadd.f32 %v6736, 1.0
    %v6858 = vadd.f32 %v6738, 1.0
    %v6859 = vadd.f32 %v6740, 1.0
    %v6860 = vadd.f32 %v6742, 1.0
    %v6861 = vadd.f32 %v6744, 1.0
    %v6862 = vadd.f32 %v6746, 1.0
    %v6863 = vadd.f32 %v6748, 1.0
    %v6864 = vadd.f32 %v6750, 1.0
    %v6865 = vadd.f32 %v6752, 1.0
    %v6866 = vadd.f32 %v6754, 1.0
    %v6867 = vrcp.pop %v6755
    %v6868 = vrcp.pop %v6756
    %v6869 = vrcp.pop %v6757
    %v6870 = vrcp.pop %v6758
    %v6871 = vrcp.pop %v6759
    %v6872 = vrcp.pop %v6760
    %v6873 = vrcp.pop %v6761
    %v6874 = vrcp.pop %v6762
    %v6875 = vrcp.pop %v6763
    %v6876 = vrcp.pop %v6764
    %v6877 = vrcp.pop %v6765
    %v6878 = vrcp.pop %v6766
    %v6879 = vrcp.pop %v6767
    %v6880 = vrcp.pop %v6768
    %v6881 = vrcp.pop %v6769
    %v6882 = vrcp.pop %v6770
    %v6883 = vrcp.pop %v6771
    %v6884 = vrcp.pop %v6772
    %v6885 = vrcp.pop %v6773
    %v6886 = vrcp.pop %v6774
    %v6887 = vrcp.pop %v6775
    %v6888 = vrcp.pop %v6776
    %v6889 = vrcp.pop %v6777
    %v6890 = vrcp.pop %v6778
    %v6891 = vrcp.pop %v6779
    %v6892 = vrcp.pop %v6780
    %v6893 = vrcp.pop %v6781
    %v6894 = vrcp.pop %v6782
    %v6895 = vrcp.pop %v6783
    %v6896 = vrcp.pop %v6784
    %v6897 = vrcp.pop %v6785
    %v6898 = vrcp.pop %v6786
    %v6899 = vrcp.pop %v6787
    %v6900 = vrcp.pop %v6788
    %v6901 = vrcp.pop %v6789
    %v6902 = vrcp.pop %v6790
    %v6903 = vrcp.pop %v6791
    %v6904 = vrcp.pop %v6792
    %v6905 = vrcp.pop %v6793
    %v6906 = vrcp.pop %v6794
    %v6907 = vrcp.pop %v6795
    %v6908 = vrcp.pop %v6796
    %v6909 = vrcp.pop %v6797
    %v6910 = vrcp.pop %v6798
    %v6911 = vrcp.pop %v6799
    %v6912 = vrcp.pop %v6800
    %v6913 = vrcp.pop %v6801
    %v6914 = vrcp.pop %v6802
    %v6915 = vrcp.pop %v6803
    %v6916 = vrcp.pop %v6804
    %v6917 = vrcp.pop %v6805
    %v6918 = vrcp.pop %v6806
    %v6919 = vrcp.pop %v6807
    %v6920 = vrcp.pop %v6808
    %v6921 = vrcp.pop %v6809
    %v6922 = vrcp.pop %v6810
    %v6923 = vrcp.pop %v6811
    %v6924 = vrcp.pop %v6812
    %v6925 = vrcp.pop %v6813
    %v6926 = vrcp.pop %v6814
    %v6927 = vrcp.pop %v6815
    %v6928 = vrcp.pop %v6816
    %v6929 = vrcp.pop %v6817
    %v6930 = vrcp.pop %v6818
    %v6931 = vrcp.pop %v6819
    %v6932 = vrcp.pop %v6820
    %v6933 = vrcp.pop %v6821
    %v6934 = vrcp.pop %v6822
    %v6935 = vrcp.pop %v6823
    %v6936 = vrcp.pop %v6824
    %v6937 = vrcp.pop %v6825
    %v6938 = vrcp.pop %v6826
    %v6939 = vrcp.pop %v6827
    %v6940 = vrcp.pop %v6828
    %v6941 = vrcp.pop %v6829
    %v6942 = vrcp.pop %v6830
    %v6943 = vrcp.pop %v6831
    %v6944 = vrcp.pop %v6832
    %v6945 = vrcp.pop %v6833
    %v6946 = vrcp.pop %v6834
    %v6947 = vrcp.pop %v6835
    %v6948 = vrcp.pop %v6836
    %v6949 = vrcp.pop %v6837
    %v6950 = vrcp.pop %v6838
    %v6951 = vrcp.pop %v6839
    %v6952 = vrcp.pop %v6840
    %v6953 = vrcp.pop %v6841
    %v6954 = vrcp.pop %v6842
    %v6955 = vrcp.pop %v6843
    %v6956 = vrcp.pop %v6844
    %v6957 = vrcp.pop %v6845
    %v6958 = vrcp.pop %v6846
    %v6959 = vrcp.pop %v6847
    %v6960 = vrcp.pop %v6848
    %v6961 = vrcp.pop %v6849
    %v6962 = vrcp.pop %v6850
    %v6963 = vrcp.pop %v6851
    %v6964 = vrcp.pop %v6852
    %v6965 = vrcp.pop %v6853
    %v6966 = vrcp.pop %v6854
    %v6967 = vrcp.pop %v6855
    %v6968 = vrcp.pop %v6856
    %v6969 = vrcp.pop %v6857
    %v6970 = vrcp.pop %v6858
    %v6971 = vrcp.pop %v6859
    %v6972 = vrcp.pop %v6860
    %v6973 = vrcp.pop %v6861
    %v6974 = vrcp.pop %v6862
    %v6975 = vrcp.pop %v6863
    %v6976 = vrcp.pop %v6864
    %v6977 = vrcp.pop %v6865
    %v6978 = vrcp.pop %v6866
    %v6979 = vpack.c.bf16 %v6874, %v6867
    %v6980 = vpack.c.bf16 %v6875, %v6868
    %v6981 = vpack.c.bf16 %v6876, %v6869
    %v6982 = vpack.c.bf16 %v6877, %v6870
    %v6983 = vpack.c.bf16 %v6878, %v6871
    %v6984 = vpack.c.bf16 %v6879, %v6872
    %v6985 = vpack.c.bf16 %v6880, %v6873
    %v6986 = vpack.c.bf16 %v6888, %v6881
    %v6987 = vpack.c.bf16 %v6889, %v6882
    %v6988 = vpack.c.bf16 %v6890, %v6883
    %v6989 = vpack.c.bf16 %v6891, %v6884
    %v6990 = vpack.c.bf16 %v6892, %v6885
    %v6991 = vpack.c.bf16 %v6893, %v6886
    %v6992 = vpack.c.bf16 %v6894, %v6887
    %v6993 = vpack.c.bf16 %v6902, %v6895
    %v6994 = vpack.c.bf16 %v6903, %v6896
    %v6995 = vpack.c.bf16 %v6904, %v6897
    %v6996 = vpack.c.bf16 %v6905, %v6898
    %v6997 = vpack.c.bf16 %v6906, %v6899
    %v6998 = vpack.c.bf16 %v6907, %v6900
    %v6999 = vpack.c.bf16 %v6908, %v6901
    %v7000 = vpack.c.bf16 %v6916, %v6909
    %v7001 = vpack.c.bf16 %v6917, %v6910
    %v7002 = vpack.c.bf16 %v6918, %v6911
    %v7003 = vpack.c.bf16 %v6919, %v6912
    %v7004 = vpack.c.bf16 %v6920, %v6913
    %v7005 = vpack.c.bf16 %v6921, %v6914
    %v7006 = vpack.c.bf16 %v6922, %v6915
    %v7007 = vpack.c.bf16 %v6930, %v6923
    %v7008 = vpack.c.bf16 %v6931, %v6924
    %v7009 = vpack.c.bf16 %v6932, %v6925
    %v7010 = vpack.c.bf16 %v6933, %v6926
    %v7011 = vpack.c.bf16 %v6934, %v6927
    %v7012 = vpack.c.bf16 %v6935, %v6928
    %v7013 = vpack.c.bf16 %v6936, %v6929
    %v7014 = vpack.c.bf16 %v6944, %v6937
    %v7015 = vpack.c.bf16 %v6945, %v6938
    %v7016 = vpack.c.bf16 %v6946, %v6939
    %v7017 = vpack.c.bf16 %v6947, %v6940
    %v7018 = vpack.c.bf16 %v6948, %v6941
    %v7019 = vpack.c.bf16 %v6949, %v6942
    %v7020 = vpack.c.bf16 %v6950, %v6943
    %v7021 = vpack.c.bf16 %v6958, %v6951
    %v7022 = vpack.c.bf16 %v6959, %v6952
    %v7023 = vpack.c.bf16 %v6960, %v6953
    %v7024 = vpack.c.bf16 %v6961, %v6954
    %v7025 = vpack.c.bf16 %v6962, %v6955
    %v7026 = vpack.c.bf16 %v6963, %v6956
    %v7027 = vpack.c.bf16 %v6964, %v6957
    %v7028 = vpack.c.bf16 %v6972, %v6965
    %v7029 = vpack.c.bf16 %v6973, %v6966
    %v7030 = vpack.c.bf16 %v6974, %v6967
    %v7031 = vpack.c.bf16 %v6975, %v6968
    %v7032 = vpack.c.bf16 %v6976, %v6969
    %v7033 = vpack.c.bf16 %v6977, %v6970
    %v7034 = vpack.c.bf16 %v6978, %v6971
    %v7091 = vunpack.c.l.b16 %v6979
    %v7092 = vunpack.c.l.b16 %v6980
    %v7093 = vunpack.c.l.b16 %v6981
    %v7094 = vunpack.c.l.b16 %v6982
    %v7095 = vunpack.c.l.b16 %v6983
    %v7096 = vunpack.c.l.b16 %v6984
    %v7097 = vunpack.c.l.b16 %v6985
    %v7098 = vunpack.c.h.b16 %v6979
    %v7099 = vunpack.c.h.b16 %v6980
    %v7100 = vunpack.c.h.b16 %v6981
    %v7101 = vunpack.c.h.b16 %v6982
    %v7102 = vunpack.c.h.b16 %v6983
    %v7103 = vunpack.c.h.b16 %v6984
    %v7104 = vunpack.c.h.b16 %v6985
    %v7105 = vunpack.c.l.b16 %v6986
    %v7106 = vunpack.c.l.b16 %v6987
    %v7107 = vunpack.c.l.b16 %v6988
    %v7108 = vunpack.c.l.b16 %v6989
    %v7109 = vunpack.c.l.b16 %v6990
    %v7110 = vunpack.c.l.b16 %v6991
    %v7111 = vunpack.c.l.b16 %v6992
    %v7112 = vunpack.c.h.b16 %v6986
    %v7113 = vunpack.c.h.b16 %v6987
    %v7114 = vunpack.c.h.b16 %v6988
    %v7115 = vunpack.c.h.b16 %v6989
    %v7116 = vunpack.c.h.b16 %v6990
    %v7117 = vunpack.c.h.b16 %v6991
    %v7118 = vunpack.c.h.b16 %v6992
    %v7119 = vunpack.c.l.b16 %v6993
    %v7120 = vunpack.c.l.b16 %v6994
    %v7121 = vunpack.c.l.b16 %v6995
    %v7122 = vunpack.c.l.b16 %v6996
    %v7123 = vunpack.c.l.b16 %v6997
    %v7124 = vunpack.c.l.b16 %v6998
    %v7125 = vunpack.c.l.b16 %v6999
    %v7126 = vunpack.c.h.b16 %v6993
    %v7127 = vunpack.c.h.b16 %v6994
    %v7128 = vunpack.c.h.b16 %v6995
    %v7129 = vunpack.c.h.b16 %v6996
    %v7130 = vunpack.c.h.b16 %v6997
    %v7131 = vunpack.c.h.b16 %v6998
    %v7132 = vunpack.c.h.b16 %v6999
    %v7133 = vunpack.c.l.b16 %v7000
    %v7134 = vunpack.c.l.b16 %v7001
    %v7135 = vunpack.c.l.b16 %v7002
    %v7136 = vunpack.c.l.b16 %v7003
    %v7137 = vunpack.c.l.b16 %v7004
    %v7138 = vunpack.c.l.b16 %v7005
    %v7139 = vunpack.c.l.b16 %v7006
    %v7140 = vunpack.c.h.b16 %v7000
    %v7141 = vunpack.c.h.b16 %v7001
    %v7142 = vunpack.c.h.b16 %v7002
    %v7143 = vunpack.c.h.b16 %v7003
    %v7144 = vunpack.c.h.b16 %v7004
    %v7145 = vunpack.c.h.b16 %v7005
    %v7146 = vunpack.c.h.b16 %v7006
    %v7147 = vunpack.c.l.b16 %v7007
    %v7148 = vunpack.c.l.b16 %v7008
    %v7149 = vunpack.c.l.b16 %v7009
    %v7150 = vunpack.c.l.b16 %v7010
    %v7151 = vunpack.c.l.b16 %v7011
    %v7152 = vunpack.c.l.b16 %v7012
    %v7153 = vunpack.c.l.b16 %v7013
    %v7154 = vunpack.c.h.b16 %v7007
    %v7155 = vunpack.c.h.b16 %v7008
    %v7156 = vunpack.c.h.b16 %v7009
    %v7157 = vunpack.c.h.b16 %v7010
    %v7158 = vunpack.c.h.b16 %v7011
    %v7159 = vunpack.c.h.b16 %v7012
    %v7160 = vunpack.c.h.b16 %v7013
    %v7161 = vunpack.c.l.b16 %v7014
    %v7162 = vunpack.c.l.b16 %v7015
    %v7163 = vunpack.c.l.b16 %v7016
    %v7164 = vunpack.c.l.b16 %v7017
    %v7165 = vunpack.c.l.b16 %v7018
    %v7166 = vunpack.c.l.b16 %v7019
    %v7167 = vunpack.c.l.b16 %v7020
    %v7168 = vunpack.c.h.b16 %v7014
    %v7169 = vunpack.c.h.b16 %v7015
    %v7170 = vunpack.c.h.b16 %v7016
    %v7171 = vunpack.c.h.b16 %v7017
    %v7172 = vunpack.c.h.b16 %v7018
    %v7173 = vunpack.c.h.b16 %v7019
    %v7174 = vunpack.c.h.b16 %v7020
    %v7175 = vunpack.c.l.b16 %v7021
    %v7176 = vunpack.c.l.b16 %v7022
    %v7177 = vunpack.c.l.b16 %v7023
    %v7178 = vunpack.c.l.b16 %v7024
    %v7179 = vunpack.c.l.b16 %v7025
    %v7180 = vunpack.c.l.b16 %v7026
    %v7181 = vunpack.c.l.b16 %v7027
    %v7182 = vunpack.c.h.b16 %v7021
    %v7183 = vunpack.c.h.b16 %v7022
    %v7184 = vunpack.c.h.b16 %v7023
    %v7185 = vunpack.c.h.b16 %v7024
    %v7186 = vunpack.c.h.b16 %v7025
    %v7187 = vunpack.c.h.b16 %v7026
    %v7188 = vunpack.c.h.b16 %v7027
    %v7189 = vunpack.c.l.b16 %v7028
    %v7190 = vunpack.c.l.b16 %v7029
    %v7191 = vunpack.c.l.b16 %v7030
    %v7192 = vunpack.c.l.b16 %v7031
    %v7193 = vunpack.c.l.b16 %v7032
    %v7194 = vunpack.c.l.b16 %v7033
    %v7195 = vunpack.c.l.b16 %v7034
    %v7196 = vunpack.c.h.b16 %v7028
    %v7197 = vunpack.c.h.b16 %v7029
    %v7198 = vunpack.c.h.b16 %v7030
    %v7199 = vunpack.c.h.b16 %v7031
    %v7200 = vunpack.c.h.b16 %v7032
    %v7201 = vunpack.c.h.b16 %v7033
    %v7202 = vunpack.c.h.b16 %v7034
    %v7203 = vpack.c.b16 %v7092, %v7091
    %v7204 = vpack.c.b16 %v7094, %v7093
    %v7205 = vpack.c.b16 %v7096, %v7095
    %v7206 = vpack.c.b16 %v7097, %v7097
    %v7207 = vpack.c.b16 %v7099, %v7098
    %v7208 = vpack.c.b16 %v7101, %v7100
    %v7209 = vpack.c.b16 %v7103, %v7102
    %v7210 = vpack.c.b16 %v7104, %v7104
    %v7211 = vpack.c.b16 %v7106, %v7105
    %v7212 = vpack.c.b16 %v7108, %v7107
    %v7213 = vpack.c.b16 %v7110, %v7109
    %v7214 = vpack.c.b16 %v7111, %v7111
    %v7215 = vpack.c.b16 %v7113, %v7112
    %v7216 = vpack.c.b16 %v7115, %v7114
    %v7217 = vpack.c.b16 %v7117, %v7116
    %v7218 = vpack.c.b16 %v7118, %v7118
    %v7219 = vpack.c.b16 %v7120, %v7119
    %v7220 = vpack.c.b16 %v7122, %v7121
    %v7221 = vpack.c.b16 %v7124, %v7123
    %v7222 = vpack.c.b16 %v7125, %v7125
    %v7223 = vpack.c.b16 %v7127, %v7126
    %v7224 = vpack.c.b16 %v7129, %v7128
    %v7225 = vpack.c.b16 %v7131, %v7130
    %v7226 = vpack.c.b16 %v7132, %v7132
    %v7227 = vpack.c.b16 %v7134, %v7133
    %v7228 = vpack.c.b16 %v7136, %v7135
    %v7229 = vpack.c.b16 %v7138, %v7137
    %v7230 = vpack.c.b16 %v7139, %v7139
    %v7231 = vpack.c.b16 %v7141, %v7140
    %v7232 = vpack.c.b16 %v7143, %v7142
    %v7233 = vpack.c.b16 %v7145, %v7144
    %v7234 = vpack.c.b16 %v7146, %v7146
    %v7235 = vpack.c.b16 %v7148, %v7147
    %v7236 = vpack.c.b16 %v7150, %v7149
    %v7237 = vpack.c.b16 %v7152, %v7151
    %v7238 = vpack.c.b16 %v7153, %v7153
    %v7239 = vpack.c.b16 %v7155, %v7154
    %v7240 = vpack.c.b16 %v7157, %v7156
    %v7241 = vpack.c.b16 %v7159, %v7158
    %v7242 = vpack.c.b16 %v7160, %v7160
    %v7243 = vpack.c.b16 %v7162, %v7161
    %v7244 = vpack.c.b16 %v7164, %v7163
    %v7245 = vpack.c.b16 %v7166, %v7165
    %v7246 = vpack.c.b16 %v7167, %v7167
    %v7247 = vpack.c.b16 %v7169, %v7168
    %v7248 = vpack.c.b16 %v7171, %v7170
    %v7249 = vpack.c.b16 %v7173, %v7172
    %v7250 = vpack.c.b16 %v7174, %v7174
    %v7251 = vpack.c.b16 %v7176, %v7175
    %v7252 = vpack.c.b16 %v7178, %v7177
    %v7253 = vpack.c.b16 %v7180, %v7179
    %v7254 = vpack.c.b16 %v7181, %v7181
    %v7255 = vpack.c.b16 %v7183, %v7182
    %v7256 = vpack.c.b16 %v7185, %v7184
    %v7257 = vpack.c.b16 %v7187, %v7186
    %v7258 = vpack.c.b16 %v7188, %v7188
    %v7259 = vpack.c.b16 %v7190, %v7189
    %v7260 = vpack.c.b16 %v7192, %v7191
    %v7261 = vpack.c.b16 %v7194, %v7193
    %v7262 = vpack.c.b16 %v7195, %v7195
    %v7263 = vpack.c.b16 %v7197, %v7196
    %v7264 = vpack.c.b16 %v7199, %v7198
    %v7265 = vpack.c.b16 %v7201, %v7200
    %v7266 = vpack.c.b16 %v7202, %v7202
    %7331 = vst [vmem:[%s7] sm:$0xff] %v7203
    %7332 = vst [vmem:[%s7 + $0x8] sm:$0xff] %v7204
    %7333 = vst [vmem:[%s7 + $0x10] sm:$0xff] %v7205
    %7334 = vst [vmem:[%s7 + $0x18] sm:$0xf] %v7206
    %7335 = vst [vmem:[%s7 + $0x1c] sm:$0xff] %v7207
    %7336 = vst [vmem:[%s7 + $0x24] sm:$0xff] %v7208
    %7337 = vst [vmem:[%s7 + $0x2c] sm:$0xff] %v7209
    %7338 = vst [vmem:[%s7 + $0x34] sm:$0xf] %v7210
    %7339 = vst [vmem:[%s7 + $0x38] sm:$0xff] %v7211
    %7340 = vst [vmem:[%s7 + $0x40] sm:$0xff] %v7212
    %7341 = vst [vmem:[%s7 + $0x48] sm:$0xff] %v7213
    %7342 = vst [vmem:[%s7 + $0x50] sm:$0xf] %v7214
    %7343 = vst [vmem:[%s7 + $0x54] sm:$0xff] %v7215
    %7344 = vst [vmem:[%s7 + $0x5c] sm:$0xff] %v7216
    %7345 = vst [vmem:[%s7 + $0x64] sm:$0xff] %v7217
    %7346 = vst [vmem:[%s7 + $0x6c] sm:$0xf] %v7218
    %7347 = vst [vmem:[%s7 + $0x70] sm:$0xff] %v7219
    %7348 = vst [vmem:[%s7 + $0x78] sm:$0xff] %v7220
    %7349 = vst [vmem:[%s7 + $0x80] sm:$0xff] %v7221
    %7350 = vst [vmem:[%s7 + $0x88] sm:$0xf] %v7222
    %7351 = vst [vmem:[%s7 + $0x8c] sm:$0xff] %v7223
    %7352 = vst [vmem:[%s7 + $0x94] sm:$0xff] %v7224
    %7353 = vst [vmem:[%s7 + $0x9c] sm:$0xff] %v7225
    %7354 = vst [vmem:[%s7 + $0xa4] sm:$0xf] %v7226
    %7355 = vst [vmem:[%s7 + $0xa8] sm:$0xff] %v7227
    %7356 = vst [vmem:[%s7 + $0xb0] sm:$0xff] %v7228
    %7357 = vst [vmem:[%s7 + $0xb8] sm:$0xff] %v7229
    %7358 = vst [vmem:[%s7 + $0xc0] sm:$0xf] %v7230
    %7359 = vst [vmem:[%s7 + $0xc4] sm:$0xff] %v7231
    %7360 = vst [vmem:[%s7 + $0xcc] sm:$0xff] %v7232
    %7361 = vst [vmem:[%s7 + $0xd4] sm:$0xff] %v7233
    %7362 = vst [vmem:[%s7 + $0xdc] sm:$0xf] %v7234
    %7363 = vst [vmem:[%s7 + $0xe0] sm:$0xff] %v7235
    %7364 = vst [vmem:[%s7 + $0xe8] sm:$0xff] %v7236
    %7365 = vst [vmem:[%s7 + $0xf0] sm:$0xff] %v7237
    %7366 = vst [vmem:[%s7 + $0xf8] sm:$0xf] %v7238
    %7367 = vst [vmem:[%s7 + $0xfc] sm:$0xff] %v7239
    %7368 = vst [vmem:[%s7 + $0x104] sm:$0xff] %v7240
    %7369 = vst [vmem:[%s7 + $0x10c] sm:$0xff] %v7241
    %7370 = vst [vmem:[%s7 + $0x114] sm:$0xf] %v7242
    %7371 = vst [vmem:[%s7 + $0x118] sm:$0xff] %v7243
    %7372 = vst [vmem:[%s7 + $0x120] sm:$0xff] %v7244
    %7373 = vst [vmem:[%s7 + $0x128] sm:$0xff] %v7245
    %7374 = vst [vmem:[%s7 + $0x130] sm:$0xf] %v7246
    %7375 = vst [vmem:[%s7 + $0x134] sm:$0xff] %v7247
    %7376 = vst [vmem:[%s7 + $0x13c] sm:$0xff] %v7248
    %7377 = vst [vmem:[%s7 + $0x144] sm:$0xff] %v7249
    %7378 = vst [vmem:[%s7 + $0x14c] sm:$0xf] %v7250
    %7379 = vst [vmem:[%s7 + $0x150] sm:$0xff] %v7251
    %7380 = vst [vmem:[%s7 + $0x158] sm:$0xff] %v7252
    %7381 = vst [vmem:[%s7 + $0x160] sm:$0xff] %v7253
    %7382 = vst [vmem:[%s7 + $0x168] sm:$0xf] %v7254
    %7383 = vst [vmem:[%s7 + $0x16c] sm:$0xff] %v7255
    %7384 = vst [vmem:[%s7 + $0x174] sm:$0xff] %v7256
    %7385 = vst [vmem:[%s7 + $0x17c] sm:$0xff] %v7257
    %7386 = vst [vmem:[%s7 + $0x184] sm:$0xf] %v7258
    %7387 = vst [vmem:[%s7 + $0x188] sm:$0xff] %v7259
    %7388 = vst [vmem:[%s7 + $0x190] sm:$0xff] %v7260
    %7389 = vst [vmem:[%s7 + $0x198] sm:$0xff] %v7261
    %7390 = vst [vmem:[%s7 + $0x1a0] sm:$0xf] %v7262
    %7391 = vst [vmem:[%s7 + $0x1a4] sm:$0xff] %v7263
    %7392 = vst [vmem:[%s7 + $0x1ac] sm:$0xff] %v7264
    %7393 = vst [vmem:[%s7 + $0x1b4] sm:$0xff] %v7265
    %7394 = vst [vmem:[%s7 + $0x1bc] sm:$0xf] %v7266
    // Predicated region
    $region54: #{mnist_vad_forward.1} parent=1 // pred_check
      _
    $region55: #{mnist_vad_forward.1} parent=1 // pred_check_branch
      %7396 = sbr.rel (0) target = $region57
    $region56: #{mnist_vad_forward.1} parent=1 // pred_region
      _
    $region57: #{mnist_vad_forward.1} parent=1 // pred_fallthru
      _
    // Predicated region
    $region58: #{mnist_vad_forward.1} parent=1 // pred_check
      _
    $region59: #{mnist_vad_forward.1} parent=1 // pred_check_branch
      %7398 = sbr.rel (0) target = $region61
    $region60: #{mnist_vad_forward.1} parent=1 // pred_region
      _
    $region61: #{mnist_vad_forward.1} parent=1 // pred_fallthru
      _
    %7399 = vsyncpa [#allocation3], 1
    %7400 = vsyncpa [#allocation5], 1
    %7401 = vsyncpa [#allocation8], 1
    %7402 = vsyncpa [#allocation11], 1

</llo_original>
